<compile_context>
chip_gen: v7x
topology: tpu7x:2x2x1
jax: 0.10.0
libtpu: 0.0.40
codegen_flags: <defaults>
</compile_context>

<pallas_src>
import functools

import jax
import jax.numpy as jnp
from jax import lax
from jax.experimental import pallas as pl
from jax.experimental.pallas import tpu as pltpu

# ---- model configuration (defaults of the PyTorch module) -------------------
LAYERS = 8
W = 256
HW = W // 2                                      # 128
IN_XYZ = 63
IN_DIR = 27
A_DIM = 48
T_DIM = 16
RES_LAYER = (4,)
D_IN = IN_XYZ + IN_DIR + A_DIM + T_DIM           # 154

NUM_PARAMS = 42                                  # flat (reference) param list length
PACK_W = 128                                     # lane-dense packed output width
# packed output columns: 0 sigma | 1:4 rgb | 4 t_sigma | 5:8 t_rgb | 8 t_beta


# ---- shared math for the pure-JAX reference ---------------------------------
def _nerfw_math(xyz, dir_, app, tr_emb, params):
    it = iter(params)
    nx = lambda: next(it)
    relu = lambda v: jnp.maximum(v, 0.0)
    dot = lambda a, w: jnp.dot(a, w, preferred_element_type=jnp.float32)

    enc = relu(dot(xyz, nx()) + nx())
    for i in range(1, LAYERS):
        if i in RES_LAYER:
            w_xyz, w_enc, b = nx(), nx(), nx()
            enc = relu(dot(xyz, w_xyz) + dot(enc, w_enc) + b)
        else:
            w, b = nx(), nx()
            enc = relu(dot(enc, w) + b)

    w, b = nx(), nx()
    static_sigma = jax.nn.softplus(dot(enc, w) + b)

    w, b = nx(), nx()
    scene = dot(enc, w) + b

    w_a, w_d, w_s, b1 = nx(), nx(), nx(), nx()
    h = relu(dot(app, w_a) + dot(dir_, w_d) + dot(scene, w_s) + b1)
    w2, b2 = nx(), nx()
    static_rgb = jax.nn.sigmoid(dot(h, w2) + b2)

    w_t, w_e, b = nx(), nx(), nx()
    t = relu(dot(tr_emb, w_t) + dot(scene, w_e) + b)
    for _ in range(3):
        w, b = nx(), nx()
        t = relu(dot(t, w) + b)

    w, b = nx(), nx()
    t_sigma = jax.nn.softplus(dot(t, w) + b)
    w, b = nx(), nx()
    t_rgb = jax.nn.sigmoid(dot(t, w) + b)
    w, b = nx(), nx()
    t_beta = jax.nn.softplus(dot(t, w) + b)

    return static_sigma, static_rgb, t_sigma, t_rgb, t_beta


# ---- Pallas kernel -----------------------------------------------------------
def nerfw_kernel(*refs, flag):
    f32 = jnp.float32
    bf16 = jnp.bfloat16

    it = iter(refs)
    nx = lambda: next(it)
    xyz_ref = nx()
    da_ref = nx() if flag >= 1 else None          # [dir | appearance], 75 cols
    tre_ref = nx() if flag >= 2 else None         # transient, 16 cols
    w_xyz_ref, w_hh_ref, b_enc_ref = nx(), nx(), nx()
    w_combo_ref, b_dec_ref = nx(), nx()
    if flag >= 1:
        w2_da_ref, b2_ref, wd_head_ref = nx(), nx(), nx()
    if flag >= 2:
        w3_t_ref, w3_hh_ref, b3_ref = nx(), nx(), nx()
    out_ref = nx()

    def dot(a_bf, w):
        # bf16 MXU matmul, f32 accumulation.
        return jnp.dot(a_bf, w, preferred_element_type=f32)

    relu = lambda v: jnp.maximum(v, 0.0)

    # ---- theta1 encoder: 8 layers, xyz re-injected at layer index 4 ---------
    xyz = xyz_ref[...].astype(bf16)
    enc = relu(dot(xyz, w_xyz_ref[0]) + b_enc_ref[0:1, :])
    for i in range(1, LAYERS):
        z = dot(enc.astype(bf16), w_hh_ref[i - 1]) + b_enc_ref[i:i + 1, :]
        if i in RES_LAYER:
            z = z + dot(xyz, w_xyz_ref[1])
        enc = relu(z)

    # ---- one fused matmul for all direct enc consumers ----------------------
    # cols [0:128)  : packed static-sigma head (head biases added via b_dec)
    # cols [128:256): folded final_encode @ theta2-scene weight   (flag >= 1)
    # cols [256:384): folded final_encode @ theta3-scene weight   (flag >= 2)
    combo = dot(enc.astype(bf16), w_combo_ref[...])
    z_dec = combo[:, 0:PACK_W] + b_dec_ref[...]

    if flag >= 1:
        h2 = relu(dot(da_ref[...].astype(bf16), w2_da_ref[...])
                  + combo[:, PACK_W:2 * PACK_W] + b2_ref[...])
        if flag == 1:
            # static rgb head only (cols 1:4 of the packed output)
            z_dec = z_dec + dot(h2.astype(bf16), wd_head_ref[...])
        else:
            # theta3 encode: transient + folded scene -> 4 relu layers of W//2
            t = relu(dot(tre_ref[...].astype(bf16), w3_t_ref[...])
                     + combo[:, 2 * PACK_W:3 * PACK_W] + b3_ref[0:1, :])
            for j in range(3):
                t = relu(dot(t.astype(bf16), w3_hh_ref[j]) + b3_ref[j + 1:j + 2, :])
            # fused static-rgb + transient heads: one K=256 MXU pass
            ht = jnp.concatenate([h2.astype(bf16), t.astype(bf16)], axis=-1)
            z_dec = z_dec + dot(ht, wd_head_ref[...])

    # ---- per-column nonlinearity (shared exp), lane-dense store -------------
    col = lax.broadcasted_iota(jnp.int32, z_dec.shape, 1)
    is_softplus = (col == 0) | (col == 4) | (col == 8)
    is_sigmoid = ((col >= 1) & (col <= 3)) | ((col >= 5) & (col <= 7))
    e = jnp.exp(-jnp.abs(z_dec))                       # one EUP exp for both
    inv = pl.reciprocal(1.0 + e, approx=True)
    sigmoid = jnp.where(z_dec >= 0, inv, e * inv)
    softplus = jnp.maximum(z_dec, 0.0) + jnp.log(1.0 + e)
    out = jnp.where(is_softplus, softplus, jnp.where(is_sigmoid, sigmoid, 0.0))
    out_ref[...] = out.astype(out_ref.dtype)


def nerfw_forward(x, kernel_params, flag, *, tile_n=2048):
    """NeRFW forward pass.  `flag` is a static Python int (0, 1, 2).

    tile_n=2048 is safe on v7x (64 MiB VMEM); v5e/v6e may use 4096 for very
    large batches.  Small batches are automatically capped to avoid padding.
    """
    n = x.shape[0]
    tile = int(min(tile_n, pl.cdiv(n, 8) * 8))
    n_pad = pl.cdiv(n, tile) * tile
    xp = x if n_pad == n else jnp.pad(x, ((0, n_pad - n), (0, 0)))

    def row_spec(d):
        return pl.BlockSpec((tile, d), lambda i: (i, 0))

    # Only the inputs the specialized kernel actually reads are passed.
    inputs = [xp[:, :IN_XYZ]]
    in_specs = [row_spec(IN_XYZ)]
    if flag >= 1:
        inputs.append(xp[:, IN_XYZ:IN_XYZ + IN_DIR + A_DIM])   # [dir | app]
        in_specs.append(row_spec(IN_DIR + A_DIM))
    if flag >= 2:
        inputs.append(xp[:, IN_XYZ + IN_DIR + A_DIM:])         # transient
        in_specs.append(row_spec(T_DIM))

    # weights / biases: whole array resident, constant block index.
    in_specs += [pl.BlockSpec(p.shape, lambda i, r=p.ndim: (0,) * r)
                 for p in kernel_params]
    out_spec = pl.BlockSpec((tile, PACK_W), lambda i: (i, 0))

    packed = pl.pallas_call(
        functools.partial(nerfw_kernel, flag=flag),
        grid=(n_pad // tile,),
        in_specs=in_specs,
        out_specs=out_spec,
        out_shape=jax.ShapeDtypeStruct((n_pad, PACK_W), jnp.float32),
        compiler_params=pltpu.CompilerParams(
            dimension_semantics=("parallel",),
            vmem_limit_bytes=48 << 20,      # under v7x's 64 MiB physical VMEM
        ),
    )(*inputs, *kernel_params)

    packed = packed[:n]
    static_sigma = packed[:, 0:1]
    if flag == 0:
        return static_sigma
    static_rgb = packed[:, 1:4]
    if flag == 1:
        return static_sigma, static_rgb
    return (static_sigma, static_rgb,
            packed[:, 4:5], packed[:, 5:8], packed[:, 8:9])


# ---- deterministic parameter construction (reference / flat f32 layout) -----
def make_params(key):
    keys = iter(jax.random.split(key, 64))

    def linear(fan_in, fan_out):
        k = next(keys)
        kw, kb = jax.random.split(k)
        bound = 1.0 / float(fan_in) ** 0.5
        w = jax.random.uniform(kw, (fan_in, fan_out), jnp.float32, -bound, bound)
        b = jax.random.uniform(kb, (1, fan_out), jnp.float32, -bound, bound)
        return w, b

    params = []
    w, b = linear(IN_XYZ, W)
    params += [w, b]
    for i in range(1, LAYERS):
        if i in RES_LAYER:
            w, b = linear(IN_XYZ + W, W)
            params += [w[:IN_XYZ], w[IN_XYZ:], b]      # split for [xyz, enc] concat
        else:
            w, b = linear(W, W)
            params += [w, b]
    w, b = linear(W, 1)                                 # theta1_decode (sigma)
    params += [w, b]
    w, b = linear(W, W)                                 # theta1_final_encode
    params += [w, b]
    w, b = linear(A_DIM + IN_DIR + W, HW)               # theta2 layer 1
    params += [w[:A_DIM], w[A_DIM:A_DIM + IN_DIR], w[A_DIM + IN_DIR:], b]
    w, b = linear(HW, 3)                                # theta2 layer 2
    params += [w, b]
    w, b = linear(T_DIM + W, HW)                        # theta3_encode layer 1
    params += [w[:T_DIM], w[T_DIM:], b]
    for _ in range(3):                                  # theta3_encode layers 2..4
        w, b = linear(HW, HW)
        params += [w, b]
    for out_d in (1, 3, 1):                             # theta3 decoders
        w, b = linear(HW, out_d)
        params += [w, b]

    assert len(params) == NUM_PARAMS
    return params


# ---- host-side packing: 42 flat params -> per-flag consolidated arrays ------
def pack_params(params, flag):
    it = iter(params)
    nx = lambda: next(it)
    bf = lambda a: a.astype(jnp.bfloat16)

    w1, b1 = nx(), nx()
    w_xyz_list = [w1, jnp.zeros((IN_XYZ, W), jnp.float32)]
    w_hh, b_enc = [], [b1]
    for i in range(1, LAYERS):
        if i in RES_LAYER:
            w_xyz_list[1] = nx()
            w_hh.append(nx())
            b_enc.append(nx())
        else:
            w_hh.append(nx())
            b_enc.append(nx())
    W_xyz = bf(jnp.stack(w_xyz_list))                 # (2, 63, 256)
    W_hh = bf(jnp.stack(w_hh))                        # (7, 256, 256)
    B_enc = jnp.concatenate(b_enc, axis=0)            # (8, 256)  f32

    w_sig, b_sig = nx(), nx()                         # (256,1), (1,1)
    w_fe, b_fe = nx(), nx()                           # (256,256), (1,256)
    w2_a, w2_d, w2_s, b2_1 = nx(), nx(), nx(), nx()
    w2_2, b2_2 = nx(), nx()                           # (128,3), (1,3)
    w3_t, w3_e, b3_1 = nx(), nx(), nx()
    w3_hh, b3_rest = [], []
    for _ in range(3):
        w3_hh.append(nx())
        b3_rest.append(nx())
    w_ts, b_ts = nx(), nx()
    w_tr, b_tr = nx(), nx()
    w_tb, b_tb = nx(), nx()

    # Packed static-sigma head (column 0) + packed head biases.
    wd_sigma = jnp.zeros((W, PACK_W), jnp.float32).at[:, 0:1].set(w_sig)
    b_dec = jnp.zeros((1, PACK_W), jnp.float32).at[:, 0:1].set(b_sig)
    combo_cols = [wd_sigma]

    args_mid, args_tail = [], []
    if flag >= 1:
        # Fold theta1_final_encode into the theta2 "scene" weight (f32, then bf16).
        w2_scene_f = jnp.dot(w_fe, w2_s)              # (256, 128)
        b2 = b2_1 + jnp.dot(b_fe, w2_s)               # (1, 128)
        combo_cols.append(w2_scene_f)
        b_dec = b_dec.at[:, 1:4].set(b2_2)
        # Merge dir + appearance weights to match the [dir | app] input stream.
        w2_da = jnp.concatenate([w2_d, w2_a], axis=0)  # (75, 128)
        wd_srgb = jnp.zeros((HW, PACK_W), jnp.float32).at[:, 1:4].set(w2_2)
        wd_head = wd_srgb
        if flag >= 2:
            # Fold theta1_final_encode into the theta3 "scene" weight.
            w3_scene_f = jnp.dot(w_fe, w3_e)           # (256, 128)
            b3_0 = b3_1 + jnp.dot(b_fe, w3_e)          # (1, 128)
            combo_cols.append(w3_scene_f)
            B3 = jnp.concatenate([b3_0] + b3_rest, axis=0)   # (4, 128)
            W3_hh = bf(jnp.stack(w3_hh))               # (3, 128, 128)
            wd_t = (jnp.zeros((HW, PACK_W), jnp.float32)
                    .at[:, 4:5].set(w_ts).at[:, 5:8].set(w_tr).at[:, 8:9].set(w_tb))
            b_dec = (b_dec.at[:, 4:5].set(b_ts)
                     .at[:, 5:8].set(b_tr).at[:, 8:9].set(b_tb))
            # Fused (h2 || t) head weight: one K=256 MXU pass.
            wd_head = jnp.concatenate([wd_srgb, wd_t], axis=0)   # (256, 128)
            args_tail = [bf(w3_t), W3_hh, B3]
        args_mid = [bf(w2_da), b2, bf(wd_head)]

    # N-concatenated enc-consumer weight: (256, 128 * k), k = 1 + (flag>=1) + (flag>=2)
    W_combo = bf(jnp.concatenate(combo_cols, axis=1))

    return tuple([W_xyz, W_hh, B_enc, W_combo, b_dec] + args_mid + args_tail)


# ---- pure-JAX f32 reference --------------------------------------------------
def nerfw_reference(x, params, flag):
    x = x.astype(jnp.float32)
    xyz = x[:, :IN_XYZ]
    dir_ = x[:, IN_XYZ:IN_XYZ + IN_DIR]
    app = x[:, IN_XYZ + IN_DIR:IN_XYZ + IN_DIR + A_DIM]
    tr_emb = x[:, IN_XYZ + IN_DIR + A_DIM:]
    outs = _nerfw_math(xyz, dir_, app, tr_emb, params)
    if flag == 0:
        return outs[0]
    if flag == 1:
        return outs[0], outs[1]
    return outs


if __name__ == "__main__":
    key = jax.random.PRNGKey(0)
    kx, kp = jax.random.split(key)

    N_POINTS = 250           # not a tile multiple -> exercises padding path
    x = jax.random.normal(kx, (N_POINTS, D_IN), jnp.float32) * 0.5
    params = make_params(kp)

    names = {
        0: ("static_sigma",),
        1: ("static_sigma", "static_rgb"),
        2: ("static_sigma", "static_rgb", "transient_sigma",
            "transient_rgb", "transient_beta"),
    }

    for flag in (0, 1, 2):
        kparams = pack_params(params, flag)
        run = jax.jit(functools.partial(nerfw_forward, flag=flag))
        outs = jax.block_until_ready(run(x, kparams))
        refs = nerfw_reference(x, params, flag)
        if flag == 0:
            outs, refs = (outs,), (refs,)
        for name, o, r in zip(names[flag], outs, refs):
            assert o.shape == r.shape, (flag, name, o.shape, r.shape)
            # bf16 matmul inputs (f32 accumulation) -> looser tolerance vs f32 ref
            assert jnp.allclose(o, r, rtol=2e-2, atol=2e-2), (
                flag, name, float(jnp.max(jnp.abs(o - r))))

    print("KERNEL_OK")
</pallas_src>

<mosaic_0001>
module attributes {stable_mosaic.version = 11 : i64} {
  func.func @nerfw_kernel(%arg0: i32, %arg1: memref<256x63xf32, #tpu.memory_space<vmem>>, %arg2: memref<2x63x256xbf16, #tpu.memory_space<vmem>>, %arg3: memref<7x256x256xbf16, #tpu.memory_space<vmem>>, %arg4: memref<8x256xf32, #tpu.memory_space<vmem>>, %arg5: memref<256x128xbf16, #tpu.memory_space<vmem>>, %arg6: memref<1x128xf32, #tpu.memory_space<vmem>>, %arg7: memref<256x128xf32, #tpu.memory_space<vmem>>) attributes {dimension_semantics = [#tpu.dimension_semantics<parallel>], iteration_bounds = array<i64: 1>, scalar_prefetch = 0 : i64, scratch_operands = 0 : i64, tpu.core_type = #tpu.core_type<tc>, window_params = [{transform_indices = @transform_0, window_bounds = array<i64: 256, 63>}, {pipeline_mode = #tpu.pipeline_mode<synchronous>, transform_indices = @transform_1, window_bounds = array<i64: 2, 63, 256>}, {pipeline_mode = #tpu.pipeline_mode<synchronous>, transform_indices = @transform_2, window_bounds = array<i64: 7, 256, 256>}, {pipeline_mode = #tpu.pipeline_mode<synchronous>, transform_indices = @transform_3, window_bounds = array<i64: 8, 256>}, {pipeline_mode = #tpu.pipeline_mode<synchronous>, transform_indices = @transform_4, window_bounds = array<i64: 256, 128>}, {pipeline_mode = #tpu.pipeline_mode<synchronous>, transform_indices = @transform_5, window_bounds = array<i64: 1, 128>}, {transform_indices = @transform_6, window_bounds = array<i64: 256, 128>}]} {
    %c0 = arith.constant 0 : index
    %c0_0 = arith.constant 0 : index
    %0 = vector.load %arg1[%c0, %c0_0] : memref<256x63xf32, #tpu.memory_space<vmem>>, vector<256x63xf32>
    %1 = arith.truncf %0 : vector<256x63xf32> to vector<256x63xbf16>
    %c0_1 = arith.constant 0 : index
    %c0_2 = arith.constant 0 : index
    %c0_3 = arith.constant 0 : index
    %2 = vector.load %arg2[%c0_1, %c0_2, %c0_3] : memref<2x63x256xbf16, #tpu.memory_space<vmem>>, vector<1x63x256xbf16>
    %3 = vector.shape_cast %2 : vector<1x63x256xbf16> to vector<63x256xbf16>
    %cst = arith.constant dense<0.000000e+00> : vector<256x256xf32>
    %4 = tpu.matmul %1, %3, %cst {dimension_numbers = #tpu.dot_dimension_numbers<[1], [0], [0], [1], [0, 0, 1, 1], [], []>} : vector<256x63xbf16>, vector<63x256xbf16>, vector<256x256xf32> -> vector<256x256xf32>
    %c0_4 = arith.constant 0 : index
    %c0_5 = arith.constant 0 : index
    %5 = vector.load %arg4[%c0_4, %c0_5] : memref<8x256xf32, #tpu.memory_space<vmem>>, vector<1x256xf32>
    %6 = vector.broadcast %5 : vector<1x256xf32> to vector<256x256xf32>
    %7 = arith.addf %4, %6 : vector<256x256xf32>
    %cst_6 = arith.constant 0.000000e+00 : f32
    %8 = vector.broadcast %cst_6 : f32 to vector<256x256xf32>
    %9 = arith.maximumf %7, %8 : vector<256x256xf32>
    %10 = arith.truncf %9 : vector<256x256xf32> to vector<256x256xbf16>
    %c0_7 = arith.constant 0 : index
    %c0_8 = arith.constant 0 : index
    %c0_9 = arith.constant 0 : index
    %11 = vector.load %arg3[%c0_7, %c0_8, %c0_9] : memref<7x256x256xbf16, #tpu.memory_space<vmem>>, vector<1x256x256xbf16>
    %12 = vector.shape_cast %11 : vector<1x256x256xbf16> to vector<256x256xbf16>
    %cst_10 = arith.constant dense<0.000000e+00> : vector<256x256xf32>
    %13 = tpu.matmul %10, %12, %cst_10 {dimension_numbers = #tpu.dot_dimension_numbers<[1], [0], [0], [1], [0, 0, 1, 1], [], []>} : vector<256x256xbf16>, vector<256x256xbf16>, vector<256x256xf32> -> vector<256x256xf32>
    %c1 = arith.constant 1 : index
    %c0_11 = arith.constant 0 : index
    %14 = vector.load %arg4[%c1, %c0_11] : memref<8x256xf32, #tpu.memory_space<vmem>>, vector<1x256xf32>
    %15 = vector.broadcast %14 : vector<1x256xf32> to vector<256x256xf32>
    %16 = arith.addf %13, %15 : vector<256x256xf32>
    %cst_12 = arith.constant 0.000000e+00 : f32
    %17 = vector.broadcast %cst_12 : f32 to vector<256x256xf32>
    %18 = arith.maximumf %16, %17 : vector<256x256xf32>
    %19 = arith.truncf %18 : vector<256x256xf32> to vector<256x256xbf16>
    %c1_13 = arith.constant 1 : index
    %c0_14 = arith.constant 0 : index
    %c0_15 = arith.constant 0 : index
    %20 = vector.load %arg3[%c1_13, %c0_14, %c0_15] : memref<7x256x256xbf16, #tpu.memory_space<vmem>>, vector<1x256x256xbf16>
    %21 = vector.shape_cast %20 : vector<1x256x256xbf16> to vector<256x256xbf16>
    %cst_16 = arith.constant dense<0.000000e+00> : vector<256x256xf32>
    %22 = tpu.matmul %19, %21, %cst_16 {dimension_numbers = #tpu.dot_dimension_numbers<[1], [0], [0], [1], [0, 0, 1, 1], [], []>} : vector<256x256xbf16>, vector<256x256xbf16>, vector<256x256xf32> -> vector<256x256xf32>
    %c2 = arith.constant 2 : index
    %c0_17 = arith.constant 0 : index
    %23 = vector.load %arg4[%c2, %c0_17] : memref<8x256xf32, #tpu.memory_space<vmem>>, vector<1x256xf32>
    %24 = vector.broadcast %23 : vector<1x256xf32> to vector<256x256xf32>
    %25 = arith.addf %22, %24 : vector<256x256xf32>
    %cst_18 = arith.constant 0.000000e+00 : f32
    %26 = vector.broadcast %cst_18 : f32 to vector<256x256xf32>
    %27 = arith.maximumf %25, %26 : vector<256x256xf32>
    %28 = arith.truncf %27 : vector<256x256xf32> to vector<256x256xbf16>
    %c2_19 = arith.constant 2 : index
    %c0_20 = arith.constant 0 : index
    %c0_21 = arith.constant 0 : index
    %29 = vector.load %arg3[%c2_19, %c0_20, %c0_21] : memref<7x256x256xbf16, #tpu.memory_space<vmem>>, vector<1x256x256xbf16>
    %30 = vector.shape_cast %29 : vector<1x256x256xbf16> to vector<256x256xbf16>
    %cst_22 = arith.constant dense<0.000000e+00> : vector<256x256xf32>
    %31 = tpu.matmul %28, %30, %cst_22 {dimension_numbers = #tpu.dot_dimension_numbers<[1], [0], [0], [1], [0, 0, 1, 1], [], []>} : vector<256x256xbf16>, vector<256x256xbf16>, vector<256x256xf32> -> vector<256x256xf32>
    %c3 = arith.constant 3 : index
    %c0_23 = arith.constant 0 : index
    %32 = vector.load %arg4[%c3, %c0_23] : memref<8x256xf32, #tpu.memory_space<vmem>>, vector<1x256xf32>
    %33 = vector.broadcast %32 : vector<1x256xf32> to vector<256x256xf32>
    %34 = arith.addf %31, %33 : vector<256x256xf32>
    %cst_24 = arith.constant 0.000000e+00 : f32
    %35 = vector.broadcast %cst_24 : f32 to vector<256x256xf32>
    %36 = arith.maximumf %34, %35 : vector<256x256xf32>
    %37 = arith.truncf %36 : vector<256x256xf32> to vector<256x256xbf16>
    %c3_25 = arith.constant 3 : index
    %c0_26 = arith.constant 0 : index
    %c0_27 = arith.constant 0 : index
    %38 = vector.load %arg3[%c3_25, %c0_26, %c0_27] : memref<7x256x256xbf16, #tpu.memory_space<vmem>>, vector<1x256x256xbf16>
    %39 = vector.shape_cast %38 : vector<1x256x256xbf16> to vector<256x256xbf16>
    %cst_28 = arith.constant dense<0.000000e+00> : vector<256x256xf32>
    %40 = tpu.matmul %37, %39, %cst_28 {dimension_numbers = #tpu.dot_dimension_numbers<[1], [0], [0], [1], [0, 0, 1, 1], [], []>} : vector<256x256xbf16>, vector<256x256xbf16>, vector<256x256xf32> -> vector<256x256xf32>
    %c4 = arith.constant 4 : index
    %c0_29 = arith.constant 0 : index
    %41 = vector.load %arg4[%c4, %c0_29] : memref<8x256xf32, #tpu.memory_space<vmem>>, vector<1x256xf32>
    %42 = vector.broadcast %41 : vector<1x256xf32> to vector<256x256xf32>
    %43 = arith.addf %40, %42 : vector<256x256xf32>
    %c1_30 = arith.constant 1 : index
    %c0_31 = arith.constant 0 : index
    %c0_32 = arith.constant 0 : index
    %44 = vector.load %arg2[%c1_30, %c0_31, %c0_32] : memref<2x63x256xbf16, #tpu.memory_space<vmem>>, vector<1x63x256xbf16>
    %45 = vector.shape_cast %44 : vector<1x63x256xbf16> to vector<63x256xbf16>
    %cst_33 = arith.constant dense<0.000000e+00> : vector<256x256xf32>
    %46 = tpu.matmul %1, %45, %cst_33 {dimension_numbers = #tpu.dot_dimension_numbers<[1], [0], [0], [1], [0, 0, 1, 1], [], []>} : vector<256x63xbf16>, vector<63x256xbf16>, vector<256x256xf32> -> vector<256x256xf32>
    %47 = arith.addf %43, %46 : vector<256x256xf32>
    %cst_34 = arith.constant 0.000000e+00 : f32
    %48 = vector.broadcast %cst_34 : f32 to vector<256x256xf32>
    %49 = arith.maximumf %47, %48 : vector<256x256xf32>
    %50 = arith.truncf %49 : vector<256x256xf32> to vector<256x256xbf16>
    %c4_35 = arith.constant 4 : index
    %c0_36 = arith.constant 0 : index
    %c0_37 = arith.constant 0 : index
    %51 = vector.load %arg3[%c4_35, %c0_36, %c0_37] : memref<7x256x256xbf16, #tpu.memory_space<vmem>>, vector<1x256x256xbf16>
    %52 = vector.shape_cast %51 : vector<1x256x256xbf16> to vector<256x256xbf16>
    %cst_38 = arith.constant dense<0.000000e+00> : vector<256x256xf32>
    %53 = tpu.matmul %50, %52, %cst_38 {dimension_numbers = #tpu.dot_dimension_numbers<[1], [0], [0], [1], [0, 0, 1, 1], [], []>} : vector<256x256xbf16>, vector<256x256xbf16>, vector<256x256xf32> -> vector<256x256xf32>
    %c5 = arith.constant 5 : index
    %c0_39 = arith.constant 0 : index
    %54 = vector.load %arg4[%c5, %c0_39] : memref<8x256xf32, #tpu.memory_space<vmem>>, vector<1x256xf32>
    %55 = vector.broadcast %54 : vector<1x256xf32> to vector<256x256xf32>
    %56 = arith.addf %53, %55 : vector<256x256xf32>
    %cst_40 = arith.constant 0.000000e+00 : f32
    %57 = vector.broadcast %cst_40 : f32 to vector<256x256xf32>
    %58 = arith.maximumf %56, %57 : vector<256x256xf32>
    %59 = arith.truncf %58 : vector<256x256xf32> to vector<256x256xbf16>
    %c5_41 = arith.constant 5 : index
    %c0_42 = arith.constant 0 : index
    %c0_43 = arith.constant 0 : index
    %60 = vector.load %arg3[%c5_41, %c0_42, %c0_43] : memref<7x256x256xbf16, #tpu.memory_space<vmem>>, vector<1x256x256xbf16>
    %61 = vector.shape_cast %60 : vector<1x256x256xbf16> to vector<256x256xbf16>
    %cst_44 = arith.constant dense<0.000000e+00> : vector<256x256xf32>
    %62 = tpu.matmul %59, %61, %cst_44 {dimension_numbers = #tpu.dot_dimension_numbers<[1], [0], [0], [1], [0, 0, 1, 1], [], []>} : vector<256x256xbf16>, vector<256x256xbf16>, vector<256x256xf32> -> vector<256x256xf32>
    %c6 = arith.constant 6 : index
    %c0_45 = arith.constant 0 : index
    %63 = vector.load %arg4[%c6, %c0_45] : memref<8x256xf32, #tpu.memory_space<vmem>>, vector<1x256xf32>
    %64 = vector.broadcast %63 : vector<1x256xf32> to vector<256x256xf32>
    %65 = arith.addf %62, %64 : vector<256x256xf32>
    %cst_46 = arith.constant 0.000000e+00 : f32
    %66 = vector.broadcast %cst_46 : f32 to vector<256x256xf32>
    %67 = arith.maximumf %65, %66 : vector<256x256xf32>
    %68 = arith.truncf %67 : vector<256x256xf32> to vector<256x256xbf16>
    %c6_47 = arith.constant 6 : index
    %c0_48 = arith.constant 0 : index
    %c0_49 = arith.constant 0 : index
    %69 = vector.load %arg3[%c6_47, %c0_48, %c0_49] : memref<7x256x256xbf16, #tpu.memory_space<vmem>>, vector<1x256x256xbf16>
    %70 = vector.shape_cast %69 : vector<1x256x256xbf16> to vector<256x256xbf16>
    %cst_50 = arith.constant dense<0.000000e+00> : vector<256x256xf32>
    %71 = tpu.matmul %68, %70, %cst_50 {dimension_numbers = #tpu.dot_dimension_numbers<[1], [0], [0], [1], [0, 0, 1, 1], [], []>} : vector<256x256xbf16>, vector<256x256xbf16>, vector<256x256xf32> -> vector<256x256xf32>
    %c7 = arith.constant 7 : index
    %c0_51 = arith.constant 0 : index
    %72 = vector.load %arg4[%c7, %c0_51] : memref<8x256xf32, #tpu.memory_space<vmem>>, vector<1x256xf32>
    %73 = vector.broadcast %72 : vector<1x256xf32> to vector<256x256xf32>
    %74 = arith.addf %71, %73 : vector<256x256xf32>
    %cst_52 = arith.constant 0.000000e+00 : f32
    %75 = vector.broadcast %cst_52 : f32 to vector<256x256xf32>
    %76 = arith.maximumf %74, %75 : vector<256x256xf32>
    %77 = arith.truncf %76 : vector<256x256xf32> to vector<256x256xbf16>
    %c0_53 = arith.constant 0 : index
    %c0_54 = arith.constant 0 : index
    %78 = vector.load %arg5[%c0_53, %c0_54] : memref<256x128xbf16, #tpu.memory_space<vmem>>, vector<256x128xbf16>
    %cst_55 = arith.constant dense<0.000000e+00> : vector<256x128xf32>
    %79 = tpu.matmul %77, %78, %cst_55 {dimension_numbers = #tpu.dot_dimension_numbers<[1], [0], [0], [1], [0, 0, 1, 1], [], []>} : vector<256x256xbf16>, vector<256x128xbf16>, vector<256x128xf32> -> vector<256x128xf32>
    %c0_56 = arith.constant 0 : index
    %c0_57 = arith.constant 0 : index
    %80 = vector.load %arg6[%c0_56, %c0_57] : memref<1x128xf32, #tpu.memory_space<vmem>>, vector<1x128xf32>
    %81 = vector.broadcast %80 : vector<1x128xf32> to vector<256x128xf32>
    %82 = arith.addf %79, %81 : vector<256x128xf32>
    %83 = tpu.iota {dimensions = array<i32: 1>} : vector<256x128xi32>
    %c0_i32 = arith.constant 0 : i32
    %84 = vector.broadcast %c0_i32 : i32 to vector<256x128xi32>
    %85 = arith.cmpi eq, %83, %84 : vector<256x128xi32>
    %c4_i32 = arith.constant 4 : i32
    %86 = vector.broadcast %c4_i32 : i32 to vector<256x128xi32>
    %87 = arith.cmpi eq, %83, %86 : vector<256x128xi32>
    %88 = arith.ori %85, %87 : vector<256x128xi1>
    %c8_i32 = arith.constant 8 : i32
    %89 = vector.broadcast %c8_i32 : i32 to vector<256x128xi32>
    %90 = arith.cmpi eq, %83, %89 : vector<256x128xi32>
    %91 = arith.ori %88, %90 : vector<256x128xi1>
    %c1_i32 = arith.constant 1 : i32
    %92 = vector.broadcast %c1_i32 : i32 to vector<256x128xi32>
    %93 = arith.cmpi sge, %83, %92 : vector<256x128xi32>
    %c3_i32 = arith.constant 3 : i32
    %94 = vector.broadcast %c3_i32 : i32 to vector<256x128xi32>
    %95 = arith.cmpi sle, %83, %94 : vector<256x128xi32>
    %96 = arith.andi %93, %95 : vector<256x128xi1>
    %c5_i32 = arith.constant 5 : i32
    %97 = vector.broadcast %c5_i32 : i32 to vector<256x128xi32>
    %98 = arith.cmpi sge, %83, %97 : vector<256x128xi32>
    %c7_i32 = arith.constant 7 : i32
    %99 = vector.broadcast %c7_i32 : i32 to vector<256x128xi32>
    %100 = arith.cmpi sle, %83, %99 : vector<256x128xi32>
    %101 = arith.andi %98, %100 : vector<256x128xi1>
    %102 = arith.ori %96, %101 : vector<256x128xi1>
    %103 = math.absf %82 : vector<256x128xf32>
    %cst_58 = arith.constant 0.000000e+00 : f32
    %104 = vector.broadcast %cst_58 : f32 to vector<256x128xf32>
    %105 = arith.subf %104, %103 : vector<256x128xf32>
    %106 = math.exp %105 : vector<256x128xf32>
    %cst_59 = arith.constant 1.000000e+00 : f32
    %107 = vector.broadcast %cst_59 : f32 to vector<256x128xf32>
    %108 = arith.addf %107, %106 : vector<256x128xf32>
    %109 = tpu.reciprocal %108 {approx = true} : vector<256x128xf32> -> vector<256x128xf32>
    %cst_60 = arith.constant 0.000000e+00 : f32
    %110 = vector.broadcast %cst_60 : f32 to vector<256x128xf32>
    %111 = arith.cmpf oge, %82, %110 : vector<256x128xf32>
    %112 = arith.mulf %106, %109 : vector<256x128xf32>
    %113 = arith.select %111, %109, %112 : vector<256x128xi1>, vector<256x128xf32>
    %cst_61 = arith.constant 0.000000e+00 : f32
    %114 = vector.broadcast %cst_61 : f32 to vector<256x128xf32>
    %115 = arith.maximumf %82, %114 : vector<256x128xf32>
    %cst_62 = arith.constant 1.000000e+00 : f32
    %116 = vector.broadcast %cst_62 : f32 to vector<256x128xf32>
    %117 = arith.addf %116, %106 : vector<256x128xf32>
    %118 = math.log %117 : vector<256x128xf32>
    %119 = arith.addf %115, %118 : vector<256x128xf32>
    %cst_63 = arith.constant 0.000000e+00 : f32
    %120 = vector.broadcast %cst_63 : f32 to vector<256x128xf32>
    %121 = arith.select %102, %113, %120 : vector<256x128xi1>, vector<256x128xf32>
    %122 = arith.select %91, %119, %121 : vector<256x128xi1>, vector<256x128xf32>
    %c0_64 = arith.constant 0 : index
    %c0_65 = arith.constant 0 : index
    %123 = vector.load %arg7[%c0_64, %c0_65] : memref<256x128xf32, #tpu.memory_space<vmem>>, vector<256x128xf32>
    tpu.vector_store %arg7[%c0_64, %c0_65], %122 {strides = array<i32>} : memref<256x128xf32, #tpu.memory_space<vmem>>, vector<256x128xf32>,
    return
  }
  func.func @transform_0(%arg0: i32) -> (i32, i32) {
    %c0_i32 = arith.constant 0 : i32
    %c0_i32_0 = arith.constant 0 : i32
    return %arg0, %c0_i32 : i32, i32
  }
  func.func @transform_1(%arg0: i32) -> (i32, i32, i32) {
    %c0_i32 = arith.constant 0 : i32
    %c0_i32_0 = arith.constant 0 : i32
    %c0_i32_1 = arith.constant 0 : i32
    %c0_i32_2 = arith.constant 0 : i32
    return %c0_i32, %c0_i32_0, %c0_i32_1 : i32, i32, i32
  }
  func.func @transform_2(%arg0: i32) -> (i32, i32, i32) {
    %c0_i32 = arith.constant 0 : i32
    %c0_i32_0 = arith.constant 0 : i32
    %c0_i32_1 = arith.constant 0 : i32
    %c0_i32_2 = arith.constant 0 : i32
    return %c0_i32, %c0_i32_0, %c0_i32_1 : i32, i32, i32
  }
  func.func @transform_3(%arg0: i32) -> (i32, i32) {
    %c0_i32 = arith.constant 0 : i32
    %c0_i32_0 = arith.constant 0 : i32
    %c0_i32_1 = arith.constant 0 : i32
    return %c0_i32, %c0_i32_0 : i32, i32
  }
  func.func @transform_4(%arg0: i32) -> (i32, i32) {
    %c0_i32 = arith.constant 0 : i32
    %c0_i32_0 = arith.constant 0 : i32
    %c0_i32_1 = arith.constant 0 : i32
    return %c0_i32, %c0_i32_0 : i32, i32
  }
  func.func @transform_5(%arg0: i32) -> (i32, i32) {
    %c0_i32 = arith.constant 0 : i32
    %c0_i32_0 = arith.constant 0 : i32
    %c0_i32_1 = arith.constant 0 : i32
    return %c0_i32, %c0_i32_0 : i32, i32
  }
  func.func @transform_6(%arg0: i32) -> (i32, i32) {
    %c0_i32 = arith.constant 0 : i32
    %c0_i32_0 = arith.constant 0 : i32
    return %arg0, %c0_i32 : i32, i32
  }
}

</mosaic_0001>

<llo_original>
// kernel: nerfw_forward.1
$region0: #{nerfw_forward.1}
  #allocation0 [shape = 'u32[]', space=smem, size = 0x4, offset = 0x4, fixed_abs, tag = 'smem constant byte address 0x4 - core index']
  #allocation1 [shape = 'u32[144,128]{1,0:T(1,128)}', space=vmem, size = 0x12000, scoped, tag = 'internal scratch']
  %s0 = inlined_call_operand.vmem [shape: f32[256,63], index: 0, kind: input, shape index: {}]
  %s1 = inlined_call_operand.vmem [shape: bf16[2,63,256], index: 1, kind: input, shape index: {}]
  %s2 = inlined_call_operand.vmem [shape: bf16[7,256,256], index: 2, kind: input, shape index: {}]
  %s3 = inlined_call_operand.vmem [shape: f32[8,256], index: 3, kind: input, shape index: {}]
  %s4 = inlined_call_operand.hbm [shape: bf16[256,128], index: 4, kind: input, shape index: {}]
  %s5 = inlined_call_operand.vmem [shape: f32[1,128], index: 5, kind: input, shape index: {}]
  %s6 = inlined_call_operand.vmem [shape: f32[256,128], index: 6, kind: output, shape index: {}]
  %s7 = sld [smem:[#allocation0]]
  $region38: #{nerfw_forward.1} parent=0
    _
  %s9 = ssub.s32 1, %s7
  %s10 = scalar_select 0, %s9, %s7
  $region1: #{nerfw_forward.1} parent=0
    #allocation2 [shape = 'u8[65536]{0}', space=vmem, size = 0x10000, scoped, tag = 'input window, operand 4, single buffered']
    #allocation3 [shape = 's32[1]{0}', space=sflag, size = 0x4, scoped, tag = 'scoped memory for nerfw_forward.1']
    %11 = vsyncpa [#allocation3], 0
    // Predicated region
    $region2: #{nerfw_forward.1} parent=1 // pred_check
      _
    $region3: #{nerfw_forward.1} parent=1 // pred_check_branch
      %13 = sbr.rel (0) target = $region5
    $region4: #{nerfw_forward.1} parent=1 // pred_region
      _
    $region5: #{nerfw_forward.1} parent=1 // pred_fallthru
      _
    // Predicated region
    $region6: #{nerfw_forward.1} parent=1 // pred_check
      _
    $region7: #{nerfw_forward.1} parent=1 // pred_check_branch
      %15 = sbr.rel (0) target = $region9
    $region8: #{nerfw_forward.1} parent=1 // pred_region
      _
    $region9: #{nerfw_forward.1} parent=1 // pred_fallthru
      _
    // Predicated region
    $region10: #{nerfw_forward.1} parent=1 // pred_check
      _
    $region11: #{nerfw_forward.1} parent=1 // pred_check_branch
      %17 = sbr.rel (0) target = $region13
    $region12: #{nerfw_forward.1} parent=1 // pred_region
      _
    $region13: #{nerfw_forward.1} parent=1 // pred_fallthru
      _
    // Predicated region
    $region14: #{nerfw_forward.1} parent=1 // pred_check
      _
    $region15: #{nerfw_forward.1} parent=1 // pred_check_branch
      %19 = sbr.rel (0) target = $region17
    $region16: #{nerfw_forward.1} parent=1 // pred_region
      _
    $region17: #{nerfw_forward.1} parent=1 // pred_fallthru
      _
    // Predicated region
    $region18: #{nerfw_forward.1} parent=1 // pred_check
      _
    $region19: #{nerfw_forward.1} parent=1 // pred_check_branch
      %21 = sbr.rel (0) target = $region21
    $region20: #{nerfw_forward.1} parent=1 // pred_region
      %s23 = ssub.s32 2048, 2048
      %24 = vsyncadd [#allocation3], %s23
      %s25 = sshll.u32 [#allocation2], 4
      %s26 = int_to_ptr.vmem [resolvable:$true] %s25
      %31 = dma.hbm_to_vmem [thread:$0]  %s4, 2048, %s26, [#allocation3], 64, 64, 4
    $region21: #{nerfw_forward.1} parent=1 // pred_fallthru
      _
    // Predicated region
    $region22: #{nerfw_forward.1} parent=1 // pred_check
      _
    $region23: #{nerfw_forward.1} parent=1 // pred_check_branch
      %33 = sbr.rel (0) target = $region25
    $region24: #{nerfw_forward.1} parent=1 // pred_region
      _
    $region25: #{nerfw_forward.1} parent=1 // pred_fallthru
      _
    // Predicated region
    $region26: #{nerfw_forward.1} parent=1 // pred_check
      _
    $region27: #{nerfw_forward.1} parent=1 // pred_check_branch
      %35 = sbr.rel (0) target = $region29
    $region28: #{nerfw_forward.1} parent=1 // pred_region
      %36 = dma.done [#allocation3], 2048
    $region29: #{nerfw_forward.1} parent=1 // pred_fallthru
      _
    %v38 = vld [vmem:[%s0] sm:$0xff]
    %v39 = vld [vmem:[%s0 + $0x8] sm:$0xff]
    %v40 = vld [vmem:[%s0 + $0x10] sm:$0xff]
    %v41 = vld [vmem:[%s0 + $0x18] sm:$0xff]
    %v42 = vld [vmem:[%s0 + $0x20] sm:$0xff]
    %v43 = vld [vmem:[%s0 + $0x28] sm:$0xff]
    %v44 = vld [vmem:[%s0 + $0x30] sm:$0xff]
    %v45 = vld [vmem:[%s0 + $0x38] sm:$0xff]
    %v46 = vld [vmem:[%s0 + $0x40] sm:$0xff]
    %v47 = vld [vmem:[%s0 + $0x48] sm:$0xff]
    %v48 = vld [vmem:[%s0 + $0x50] sm:$0xff]
    %v49 = vld [vmem:[%s0 + $0x58] sm:$0xff]
    %v50 = vld [vmem:[%s0 + $0x60] sm:$0xff]
    %v51 = vld [vmem:[%s0 + $0x68] sm:$0xff]
    %v52 = vld [vmem:[%s0 + $0x70] sm:$0xff]
    %v53 = vld [vmem:[%s0 + $0x78] sm:$0xff]
    %v54 = vld [vmem:[%s0 + $0x80] sm:$0xff]
    %v55 = vld [vmem:[%s0 + $0x88] sm:$0xff]
    %v56 = vld [vmem:[%s0 + $0x90] sm:$0xff]
    %v57 = vld [vmem:[%s0 + $0x98] sm:$0xff]
    %v58 = vld [vmem:[%s0 + $0xa0] sm:$0xff]
    %v59 = vld [vmem:[%s0 + $0xa8] sm:$0xff]
    %v60 = vld [vmem:[%s0 + $0xb0] sm:$0xff]
    %v61 = vld [vmem:[%s0 + $0xb8] sm:$0xff]
    %v62 = vld [vmem:[%s0 + $0xc0] sm:$0xff]
    %v63 = vld [vmem:[%s0 + $0xc8] sm:$0xff]
    %v64 = vld [vmem:[%s0 + $0xd0] sm:$0xff]
    %v65 = vld [vmem:[%s0 + $0xd8] sm:$0xff]
    %v66 = vld [vmem:[%s0 + $0xe0] sm:$0xff]
    %v67 = vld [vmem:[%s0 + $0xe8] sm:$0xff]
    %v68 = vld [vmem:[%s0 + $0xf0] sm:$0xff]
    %v69 = vld [vmem:[%s0 + $0xf8] sm:$0xff]
    %v70 = vpack.c.bf16 %v39, %v38
    %v71 = vpack.c.bf16 %v41, %v40
    %v72 = vpack.c.bf16 %v43, %v42
    %v73 = vpack.c.bf16 %v45, %v44
    %v74 = vpack.c.bf16 %v47, %v46
    %v75 = vpack.c.bf16 %v49, %v48
    %v76 = vpack.c.bf16 %v51, %v50
    %v77 = vpack.c.bf16 %v53, %v52
    %v78 = vpack.c.bf16 %v55, %v54
    %v79 = vpack.c.bf16 %v57, %v56
    %v80 = vpack.c.bf16 %v59, %v58
    %v81 = vpack.c.bf16 %v61, %v60
    %v82 = vpack.c.bf16 %v63, %v62
    %v83 = vpack.c.bf16 %v65, %v64
    %v84 = vpack.c.bf16 %v67, %v66
    %v85 = vpack.c.bf16 %v69, %v68
    %v86 = vld [vmem:[%s1] sm:$0xff]
    %v87 = vld [vmem:[%s1 + $0x8] sm:$0xff]
    %v88 = vld [vmem:[%s1 + $0x10] sm:$0xff]
    %v89 = vld [vmem:[%s1 + $0x18] sm:$0xff]
    %v90 = vld [vmem:[%s1 + $0x20] sm:$0xff]
    %v91 = vld [vmem:[%s1 + $0x28] sm:$0xff]
    %v92 = vld [vmem:[%s1 + $0x30] sm:$0xff]
    %v93 = vld [vmem:[%s1 + $0x38] sm:$0xff]
    %v94 = vld [vmem:[%s3] ss:$8 sm:$0x3]
    %v96 = vlaneseq
    %v97 = vshrl.u32 %v96, 7
    %v98 = vsub.s32 0, %v97
    %v99 = vrot.slane %v94, %v98
    %v100 = vlaneseq
    %v101 = vshrl.u32 %v100, 7
    %v102 = vsub.s32 1, %v101
    %v103 = vrot.slane %v94, %v102
    %v114 = vunpack.c.l.b16 %v86
    %v115 = vunpack.c.h.b16 %v86
    %v116 = vunpack.c.l.b16 %v87
    %v117 = vunpack.c.h.b16 %v87
    %v118 = vunpack.c.l.b16 %v88
    %v119 = vunpack.c.h.b16 %v88
    %v120 = vunpack.c.l.b16 %v89
    %v121 = vunpack.c.h.b16 %v89
    %v122 = vunpack.c.l.b16 %v90
    %v123 = vunpack.c.h.b16 %v90
    %v124 = vunpack.c.l.b16 %v91
    %v125 = vunpack.c.h.b16 %v91
    %v126 = vunpack.c.l.b16 %v92
    %v127 = vunpack.c.h.b16 %v92
    %v128 = vunpack.c.l.b16 %v93
    %v129 = vunpack.c.h.b16 %v93
    %v130 = vpack.c.b16 %v116, %v114
    %v131 = vpack.c.b16 %v117, %v115
    %v132 = vpack.c.b16 %v120, %v118
    %v133 = vpack.c.b16 %v121, %v119
    %v134 = vpack.c.b16 %v124, %v122
    %v135 = vpack.c.b16 %v125, %v123
    %v136 = vpack.c.b16 %v128, %v126
    %v137 = vpack.c.b16 %v129, %v127
    %vm144 = vcmask 515072
    %v146 = vsel %vm144, %v70, 0
    %v149 = vsel %vm144, %v71, 0
    %v152 = vsel %vm144, %v72, 0
    %v155 = vsel %vm144, %v73, 0
    %v158 = vsel %vm144, %v74, 0
    %v161 = vsel %vm144, %v75, 0
    %v164 = vsel %vm144, %v76, 0
    %v167 = vsel %vm144, %v77, 0
    %v170 = vsel %vm144, %v78, 0
    %v173 = vsel %vm144, %v79, 0
    %v176 = vsel %vm144, %v80, 0
    %v179 = vsel %vm144, %v81, 0
    %v182 = vsel %vm144, %v82, 0
    %v185 = vsel %vm144, %v83, 0
    %v188 = vsel %vm144, %v84, 0
    %v191 = vsel %vm144, %v85, 0
    %vm193 = vcmask 1046528
    %vm194 = vcmask 1047552
    %v195 = vsel %vm193, 4294967295, 65535
    %v196 = vsel %vm194, %v195, 0
    %v198 = vand.u32 %v136, %v196
    %v201 = vand.u32 %v137, %v196
    %203 = vmatprep.subr.bf16.mxu0 %v131
    %204 = vmatpush1.bf16.msra.mxu0 %v130
    %205 = vmatprep.subr.bf16.mxu0 %v133
    %206 = vmatpush1.bf16.msra.mxu0 %v132
    %207 = vmatprep.subr.bf16.mxu0 %v135
    %208 = vmatpush1.bf16.msra.mxu0 %v134
    %209 = vmatprep.subr.bf16.mxu0 %v201
    %210 = vmatpush1.bf16.msra.mxu0 %v198
    %211 = vmatprep.subr.bf16.mxu0 0
    %212 = vmatpush1.bf16.msra.mxu0 0
    %213 = vmatprep.subr.bf16.mxu0 0
    %214 = vmatpush1.bf16.msra.mxu0 0
    %215 = vmatprep.subr.bf16.mxu0 0
    %216 = vmatpush1.bf16.msra.mxu0 0
    %217 = vmatprep.subr.bf16.mxu0 0
    %218 = vmatpush1.bf16.msra.mxu0 0
    %219 = vmatprep.subr.bf16.mxu0 0
    %220 = vmatpush1.bf16.msra.mxu0 0
    %221 = vmatprep.subr.bf16.mxu0 0
    %222 = vmatpush1.bf16.msra.mxu0 0
    %223 = vmatprep.subr.bf16.mxu0 0
    %224 = vmatpush1.bf16.msra.mxu0 0
    %225 = vmatprep.subr.bf16.mxu0 0
    %226 = vmatpush1.bf16.msra.mxu0 0
    %227 = vmatprep.subr.bf16.mxu0 0
    %228 = vmatpush1.bf16.msra.mxu0 0
    %229 = vmatprep.subr.bf16.mxu0 0
    %230 = vmatpush1.bf16.msra.mxu0 0
    %231 = vmatprep.subr.bf16.mxu0 0
    %232 = vmatpush1.bf16.msra.mxu0 0
    %233 = vmatprep.subr.bf16.mxu0 0
    %234 = vmatpush1.bf16.msra.mxu0 0
    %235 = vmatprep.mubr.bf16.mxu0 0
    %236 = vmatmul.mubr.bf16.gmra.mrb[0].mxu0 %v146
    %v237 = vpop.f32.mrb[0].mxu0
    %v238 = vadd.f32 %v99, %v237
    %v239 = vpop.f32.mrb[0].mxu0
    %v240 = vadd.f32 %v103, %v239
    %v241 = vpop.f32.mrb[0].mxu0
    %v242 = vadd.f32 %v99, %v241
    %v243 = vpop.f32.mrb[0].mxu0
    %v244 = vadd.f32 %v103, %v243
    %245 = vmatprep.mubr.bf16.mxu0 0
    %246 = vmatmul.mubr.bf16.gmra.mrb[0].mxu0 %v149
    %v247 = vpop.f32.mrb[0].mxu0
    %v248 = vadd.f32 %v99, %v247
    %v249 = vpop.f32.mrb[0].mxu0
    %v250 = vadd.f32 %v103, %v249
    %v251 = vpop.f32.mrb[0].mxu0
    %v252 = vadd.f32 %v99, %v251
    %v253 = vpop.f32.mrb[0].mxu0
    %v254 = vadd.f32 %v103, %v253
    %255 = vmatprep.mubr.bf16.mxu0 0
    %256 = vmatmul.mubr.bf16.gmra.mrb[0].mxu0 %v152
    %v257 = vpop.f32.mrb[0].mxu0
    %v258 = vadd.f32 %v99, %v257
    %v259 = vpop.f32.mrb[0].mxu0
    %v260 = vadd.f32 %v103, %v259
    %v261 = vpop.f32.mrb[0].mxu0
    %v262 = vadd.f32 %v99, %v261
    %v263 = vpop.f32.mrb[0].mxu0
    %v264 = vadd.f32 %v103, %v263
    %265 = vmatprep.mubr.bf16.mxu0 0
    %266 = vmatmul.mubr.bf16.gmra.mrb[0].mxu0 %v155
    %v267 = vpop.f32.mrb[0].mxu0
    %v268 = vadd.f32 %v99, %v267
    %v269 = vpop.f32.mrb[0].mxu0
    %v270 = vadd.f32 %v103, %v269
    %v271 = vpop.f32.mrb[0].mxu0
    %v272 = vadd.f32 %v99, %v271
    %v273 = vpop.f32.mrb[0].mxu0
    %v274 = vadd.f32 %v103, %v273
    %275 = vmatprep.mubr.bf16.mxu0 0
    %276 = vmatmul.mubr.bf16.gmra.mrb[0].mxu0 %v158
    %v277 = vpop.f32.mrb[0].mxu0
    %v278 = vadd.f32 %v99, %v277
    %v279 = vpop.f32.mrb[0].mxu0
    %v280 = vadd.f32 %v103, %v279
    %v281 = vpop.f32.mrb[0].mxu0
    %v282 = vadd.f32 %v99, %v281
    %v283 = vpop.f32.mrb[0].mxu0
    %v284 = vadd.f32 %v103, %v283
    %285 = vmatprep.mubr.bf16.mxu0 0
    %286 = vmatmul.mubr.bf16.gmra.mrb[0].mxu0 %v161
    %v287 = vpop.f32.mrb[0].mxu0
    %v288 = vadd.f32 %v99, %v287
    %v289 = vpop.f32.mrb[0].mxu0
    %v290 = vadd.f32 %v103, %v289
    %v291 = vpop.f32.mrb[0].mxu0
    %v292 = vadd.f32 %v99, %v291
    %v293 = vpop.f32.mrb[0].mxu0
    %v294 = vadd.f32 %v103, %v293
    %295 = vmatprep.mubr.bf16.mxu0 0
    %296 = vmatmul.mubr.bf16.gmra.mrb[0].mxu0 %v164
    %v297 = vpop.f32.mrb[0].mxu0
    %v298 = vadd.f32 %v99, %v297
    %v299 = vpop.f32.mrb[0].mxu0
    %v300 = vadd.f32 %v103, %v299
    %v301 = vpop.f32.mrb[0].mxu0
    %v302 = vadd.f32 %v99, %v301
    %v303 = vpop.f32.mrb[0].mxu0
    %v304 = vadd.f32 %v103, %v303
    %305 = vmatprep.mubr.bf16.mxu0 0
    %306 = vmatmul.mubr.bf16.gmra.mrb[0].mxu0 %v167
    %v307 = vpop.f32.mrb[0].mxu0
    %v308 = vadd.f32 %v99, %v307
    %v309 = vpop.f32.mrb[0].mxu0
    %v310 = vadd.f32 %v103, %v309
    %v311 = vpop.f32.mrb[0].mxu0
    %v312 = vadd.f32 %v99, %v311
    %v313 = vpop.f32.mrb[0].mxu0
    %v314 = vadd.f32 %v103, %v313
    %315 = vmatprep.mubr.bf16.mxu0 0
    %316 = vmatmul.mubr.bf16.gmra.mrb[0].mxu0 %v170
    %v317 = vpop.f32.mrb[0].mxu0
    %v318 = vadd.f32 %v99, %v317
    %v319 = vpop.f32.mrb[0].mxu0
    %v320 = vadd.f32 %v103, %v319
    %v321 = vpop.f32.mrb[0].mxu0
    %v322 = vadd.f32 %v99, %v321
    %v323 = vpop.f32.mrb[0].mxu0
    %v324 = vadd.f32 %v103, %v323
    %325 = vmatprep.mubr.bf16.mxu0 0
    %326 = vmatmul.mubr.bf16.gmra.mrb[0].mxu0 %v173
    %v327 = vpop.f32.mrb[0].mxu0
    %v328 = vadd.f32 %v99, %v327
    %v329 = vpop.f32.mrb[0].mxu0
    %v330 = vadd.f32 %v103, %v329
    %v331 = vpop.f32.mrb[0].mxu0
    %v332 = vadd.f32 %v99, %v331
    %v333 = vpop.f32.mrb[0].mxu0
    %v334 = vadd.f32 %v103, %v333
    %335 = vmatprep.mubr.bf16.mxu0 0
    %336 = vmatmul.mubr.bf16.gmra.mrb[0].mxu0 %v176
    %v337 = vpop.f32.mrb[0].mxu0
    %v338 = vadd.f32 %v99, %v337
    %v339 = vpop.f32.mrb[0].mxu0
    %v340 = vadd.f32 %v103, %v339
    %v341 = vpop.f32.mrb[0].mxu0
    %v342 = vadd.f32 %v99, %v341
    %v343 = vpop.f32.mrb[0].mxu0
    %v344 = vadd.f32 %v103, %v343
    %345 = vmatprep.mubr.bf16.mxu0 0
    %346 = vmatmul.mubr.bf16.gmra.mrb[0].mxu0 %v179
    %v347 = vpop.f32.mrb[0].mxu0
    %v348 = vadd.f32 %v99, %v347
    %v349 = vpop.f32.mrb[0].mxu0
    %v350 = vadd.f32 %v103, %v349
    %v351 = vpop.f32.mrb[0].mxu0
    %v352 = vadd.f32 %v99, %v351
    %v353 = vpop.f32.mrb[0].mxu0
    %v354 = vadd.f32 %v103, %v353
    %355 = vmatprep.mubr.bf16.mxu0 0
    %356 = vmatmul.mubr.bf16.gmra.mrb[0].mxu0 %v182
    %v357 = vpop.f32.mrb[0].mxu0
    %v358 = vadd.f32 %v99, %v357
    %v359 = vpop.f32.mrb[0].mxu0
    %v360 = vadd.f32 %v103, %v359
    %v361 = vpop.f32.mrb[0].mxu0
    %v362 = vadd.f32 %v99, %v361
    %v363 = vpop.f32.mrb[0].mxu0
    %v364 = vadd.f32 %v103, %v363
    %365 = vmatprep.mubr.bf16.mxu0 0
    %366 = vmatmul.mubr.bf16.gmra.mrb[0].mxu0 %v185
    %v367 = vpop.f32.mrb[0].mxu0
    %v368 = vadd.f32 %v99, %v367
    %v369 = vpop.f32.mrb[0].mxu0
    %v370 = vadd.f32 %v103, %v369
    %v371 = vpop.f32.mrb[0].mxu0
    %v372 = vadd.f32 %v99, %v371
    %v373 = vpop.f32.mrb[0].mxu0
    %v374 = vadd.f32 %v103, %v373
    %375 = vmatprep.mubr.bf16.mxu0 0
    %376 = vmatmul.mubr.bf16.gmra.mrb[0].mxu0 %v188
    %v377 = vpop.f32.mrb[0].mxu0
    %v378 = vadd.f32 %v99, %v377
    %v379 = vpop.f32.mrb[0].mxu0
    %v380 = vadd.f32 %v103, %v379
    %v381 = vpop.f32.mrb[0].mxu0
    %v382 = vadd.f32 %v99, %v381
    %v383 = vpop.f32.mrb[0].mxu0
    %v384 = vadd.f32 %v103, %v383
    %385 = vmatprep.mubr.bf16.mxu0 0
    %386 = vmatmul.mubr.bf16.gmra.mrb[0].mxu0 %v191
    %v387 = vpop.f32.mrb[0].mxu0
    %v388 = vadd.f32 %v99, %v387
    %v389 = vpop.f32.mrb[0].mxu0
    %v390 = vadd.f32 %v103, %v389
    %v391 = vpop.f32.mrb[0].mxu0
    %v392 = vadd.f32 %v99, %v391
    %v393 = vpop.f32.mrb[0].mxu0
    %v394 = vadd.f32 %v103, %v393
    %395 = vdwg.mxu0
    %v396 = vmax.f32 %v238, 0.0
    %v397 = vmax.f32 %v240, 0.0
    %v398 = vmax.f32 %v242, 0.0
    %v399 = vmax.f32 %v244, 0.0
    %v400 = vmax.f32 %v248, 0.0
    %v401 = vmax.f32 %v250, 0.0
    %v402 = vmax.f32 %v252, 0.0
    %v403 = vmax.f32 %v254, 0.0
    %v404 = vmax.f32 %v258, 0.0
    %v405 = vmax.f32 %v260, 0.0
    %v406 = vmax.f32 %v262, 0.0
    %v407 = vmax.f32 %v264, 0.0
    %v408 = vmax.f32 %v268, 0.0
    %v409 = vmax.f32 %v270, 0.0
    %v410 = vmax.f32 %v272, 0.0
    %v411 = vmax.f32 %v274, 0.0
    %v412 = vmax.f32 %v278, 0.0
    %v413 = vmax.f32 %v280, 0.0
    %v414 = vmax.f32 %v282, 0.0
    %v415 = vmax.f32 %v284, 0.0
    %v416 = vmax.f32 %v288, 0.0
    %v417 = vmax.f32 %v290, 0.0
    %v418 = vmax.f32 %v292, 0.0
    %v419 = vmax.f32 %v294, 0.0
    %v420 = vmax.f32 %v298, 0.0
    %v421 = vmax.f32 %v300, 0.0
    %v422 = vmax.f32 %v302, 0.0
    %v423 = vmax.f32 %v304, 0.0
    %v424 = vmax.f32 %v308, 0.0
    %v425 = vmax.f32 %v310, 0.0
    %v426 = vmax.f32 %v312, 0.0
    %v427 = vmax.f32 %v314, 0.0
    %v428 = vmax.f32 %v318, 0.0
    %v429 = vmax.f32 %v320, 0.0
    %v430 = vmax.f32 %v322, 0.0
    %v431 = vmax.f32 %v324, 0.0
    %v432 = vmax.f32 %v328, 0.0
    %v433 = vmax.f32 %v330, 0.0
    %v434 = vmax.f32 %v332, 0.0
    %v435 = vmax.f32 %v334, 0.0
    %v436 = vmax.f32 %v338, 0.0
    %v437 = vmax.f32 %v340, 0.0
    %v438 = vmax.f32 %v342, 0.0
    %v439 = vmax.f32 %v344, 0.0
    %v440 = vmax.f32 %v348, 0.0
    %v441 = vmax.f32 %v350, 0.0
    %v442 = vmax.f32 %v352, 0.0
    %v443 = vmax.f32 %v354, 0.0
    %v444 = vmax.f32 %v358, 0.0
    %v445 = vmax.f32 %v360, 0.0
    %v446 = vmax.f32 %v362, 0.0
    %v447 = vmax.f32 %v364, 0.0
    %v448 = vmax.f32 %v368, 0.0
    %v449 = vmax.f32 %v370, 0.0
    %v450 = vmax.f32 %v372, 0.0
    %v451 = vmax.f32 %v374, 0.0
    %v452 = vmax.f32 %v378, 0.0
    %v453 = vmax.f32 %v380, 0.0
    %v454 = vmax.f32 %v382, 0.0
    %v455 = vmax.f32 %v384, 0.0
    %v456 = vmax.f32 %v388, 0.0
    %v457 = vmax.f32 %v390, 0.0
    %v458 = vmax.f32 %v392, 0.0
    %v459 = vmax.f32 %v394, 0.0
    %v460 = vpack.c.bf16 %v398, %v396
    %v461 = vpack.c.bf16 %v399, %v397
    %v462 = vpack.c.bf16 %v402, %v400
    %v463 = vpack.c.bf16 %v403, %v401
    %v464 = vpack.c.bf16 %v406, %v404
    %v465 = vpack.c.bf16 %v407, %v405
    %v466 = vpack.c.bf16 %v410, %v408
    %v467 = vpack.c.bf16 %v411, %v409
    %v468 = vpack.c.bf16 %v414, %v412
    %v469 = vpack.c.bf16 %v415, %v413
    %v470 = vpack.c.bf16 %v418, %v416
    %v471 = vpack.c.bf16 %v419, %v417
    %v472 = vpack.c.bf16 %v422, %v420
    %v473 = vpack.c.bf16 %v423, %v421
    %v474 = vpack.c.bf16 %v426, %v424
    %v475 = vpack.c.bf16 %v427, %v425
    %v476 = vpack.c.bf16 %v430, %v428
    %v477 = vpack.c.bf16 %v431, %v429
    %v478 = vpack.c.bf16 %v434, %v432
    %v479 = vpack.c.bf16 %v435, %v433
    %v480 = vpack.c.bf16 %v438, %v436
    %v481 = vpack.c.bf16 %v439, %v437
    %v482 = vpack.c.bf16 %v442, %v440
    %v483 = vpack.c.bf16 %v443, %v441
    %v484 = vpack.c.bf16 %v446, %v444
    %v485 = vpack.c.bf16 %v447, %v445
    %v486 = vpack.c.bf16 %v450, %v448
    %v487 = vpack.c.bf16 %v451, %v449
    %v488 = vpack.c.bf16 %v454, %v452
    %v489 = vpack.c.bf16 %v455, %v453
    %v490 = vpack.c.bf16 %v458, %v456
    %v491 = vpack.c.bf16 %v459, %v457
    %v492 = vld [vmem:[%s2] sm:$0xff]
    %v493 = vld [vmem:[%s2 + $0x8] sm:$0xff]
    %v494 = vld [vmem:[%s2 + $0x10] sm:$0xff]
    %v495 = vld [vmem:[%s2 + $0x18] sm:$0xff]
    %v496 = vld [vmem:[%s2 + $0x20] sm:$0xff]
    %v497 = vld [vmem:[%s2 + $0x28] sm:$0xff]
    %v498 = vld [vmem:[%s2 + $0x30] sm:$0xff]
    %v499 = vld [vmem:[%s2 + $0x38] sm:$0xff]
    %v500 = vld [vmem:[%s2 + $0x40] sm:$0xff]
    %v501 = vld [vmem:[%s2 + $0x48] sm:$0xff]
    %v502 = vld [vmem:[%s2 + $0x50] sm:$0xff]
    %v503 = vld [vmem:[%s2 + $0x58] sm:$0xff]
    %v504 = vld [vmem:[%s2 + $0x60] sm:$0xff]
    %v505 = vld [vmem:[%s2 + $0x68] sm:$0xff]
    %v506 = vld [vmem:[%s2 + $0x70] sm:$0xff]
    %v507 = vld [vmem:[%s2 + $0x78] sm:$0xff]
    %v508 = vld [vmem:[%s2 + $0x80] sm:$0xff]
    %v509 = vld [vmem:[%s2 + $0x88] sm:$0xff]
    %v510 = vld [vmem:[%s2 + $0x90] sm:$0xff]
    %v511 = vld [vmem:[%s2 + $0x98] sm:$0xff]
    %v512 = vld [vmem:[%s2 + $0xa0] sm:$0xff]
    %v513 = vld [vmem:[%s2 + $0xa8] sm:$0xff]
    %v514 = vld [vmem:[%s2 + $0xb0] sm:$0xff]
    %v515 = vld [vmem:[%s2 + $0xb8] sm:$0xff]
    %v516 = vld [vmem:[%s2 + $0xc0] sm:$0xff]
    %v517 = vld [vmem:[%s2 + $0xc8] sm:$0xff]
    %v518 = vld [vmem:[%s2 + $0xd0] sm:$0xff]
    %v519 = vld [vmem:[%s2 + $0xd8] sm:$0xff]
    %v520 = vld [vmem:[%s2 + $0xe0] sm:$0xff]
    %v521 = vld [vmem:[%s2 + $0xe8] sm:$0xff]
    %v522 = vld [vmem:[%s2 + $0xf0] sm:$0xff]
    %v523 = vld [vmem:[%s2 + $0xf8] sm:$0xff]
    %s524 = scalar_lea.vmem %s3, 1
    %v525 = vld [vmem:[%s524] ss:$8 sm:$0x3]
    %v527 = vlaneseq
    %v528 = vshrl.u32 %v527, 7
    %v529 = vsub.s32 0, %v528
    %v530 = vrot.slane %v525, %v529
    %v531 = vlaneseq
    %v532 = vshrl.u32 %v531, 7
    %v533 = vsub.s32 1, %v532
    %v534 = vrot.slane %v525, %v533
    %v569 = vunpack.c.l.b16 %v492
    %v570 = vunpack.c.h.b16 %v492
    %v571 = vunpack.c.l.b16 %v493
    %v572 = vunpack.c.h.b16 %v493
    %v573 = vunpack.c.l.b16 %v494
    %v574 = vunpack.c.h.b16 %v494
    %v575 = vunpack.c.l.b16 %v495
    %v576 = vunpack.c.h.b16 %v495
    %v577 = vunpack.c.l.b16 %v496
    %v578 = vunpack.c.h.b16 %v496
    %v579 = vunpack.c.l.b16 %v497
    %v580 = vunpack.c.h.b16 %v497
    %v581 = vunpack.c.l.b16 %v498
    %v582 = vunpack.c.h.b16 %v498
    %v583 = vunpack.c.l.b16 %v499
    %v584 = vunpack.c.h.b16 %v499
    %v585 = vunpack.c.l.b16 %v500
    %v586 = vunpack.c.h.b16 %v500
    %v587 = vunpack.c.l.b16 %v501
    %v588 = vunpack.c.h.b16 %v501
    %v589 = vunpack.c.l.b16 %v502
    %v590 = vunpack.c.h.b16 %v502
    %v591 = vunpack.c.l.b16 %v503
    %v592 = vunpack.c.h.b16 %v503
    %v593 = vunpack.c.l.b16 %v504
    %v594 = vunpack.c.h.b16 %v504
    %v595 = vunpack.c.l.b16 %v505
    %v596 = vunpack.c.h.b16 %v505
    %v597 = vunpack.c.l.b16 %v506
    %v598 = vunpack.c.h.b16 %v506
    %v599 = vunpack.c.l.b16 %v507
    %v600 = vunpack.c.h.b16 %v507
    %v601 = vunpack.c.l.b16 %v508
    %v602 = vunpack.c.h.b16 %v508
    %v603 = vunpack.c.l.b16 %v509
    %v604 = vunpack.c.h.b16 %v509
    %v605 = vunpack.c.l.b16 %v510
    %v606 = vunpack.c.h.b16 %v510
    %v607 = vunpack.c.l.b16 %v511
    %v608 = vunpack.c.h.b16 %v511
    %v609 = vunpack.c.l.b16 %v512
    %v610 = vunpack.c.h.b16 %v512
    %v611 = vunpack.c.l.b16 %v513
    %v612 = vunpack.c.h.b16 %v513
    %v613 = vunpack.c.l.b16 %v514
    %v614 = vunpack.c.h.b16 %v514
    %v615 = vunpack.c.l.b16 %v515
    %v616 = vunpack.c.h.b16 %v515
    %v617 = vunpack.c.l.b16 %v516
    %v618 = vunpack.c.h.b16 %v516
    %v619 = vunpack.c.l.b16 %v517
    %v620 = vunpack.c.h.b16 %v517
    %v621 = vunpack.c.l.b16 %v518
    %v622 = vunpack.c.h.b16 %v518
    %v623 = vunpack.c.l.b16 %v519
    %v624 = vunpack.c.h.b16 %v519
    %v625 = vunpack.c.l.b16 %v520
    %v626 = vunpack.c.h.b16 %v520
    %v627 = vunpack.c.l.b16 %v521
    %v628 = vunpack.c.h.b16 %v521
    %v629 = vunpack.c.l.b16 %v522
    %v630 = vunpack.c.h.b16 %v522
    %v631 = vunpack.c.l.b16 %v523
    %v632 = vunpack.c.h.b16 %v523
    %v633 = vpack.c.b16 %v571, %v569
    %v634 = vpack.c.b16 %v572, %v570
    %v635 = vpack.c.b16 %v575, %v573
    %v636 = vpack.c.b16 %v576, %v574
    %v637 = vpack.c.b16 %v579, %v577
    %v638 = vpack.c.b16 %v580, %v578
    %v639 = vpack.c.b16 %v583, %v581
    %v640 = vpack.c.b16 %v584, %v582
    %v641 = vpack.c.b16 %v587, %v585
    %v642 = vpack.c.b16 %v588, %v586
    %v643 = vpack.c.b16 %v591, %v589
    %v644 = vpack.c.b16 %v592, %v590
    %v645 = vpack.c.b16 %v595, %v593
    %v646 = vpack.c.b16 %v596, %v594
    %v647 = vpack.c.b16 %v599, %v597
    %v648 = vpack.c.b16 %v600, %v598
    %v649 = vpack.c.b16 %v603, %v601
    %v650 = vpack.c.b16 %v604, %v602
    %v651 = vpack.c.b16 %v607, %v605
    %v652 = vpack.c.b16 %v608, %v606
    %v653 = vpack.c.b16 %v611, %v609
    %v654 = vpack.c.b16 %v612, %v610
    %v655 = vpack.c.b16 %v615, %v613
    %v656 = vpack.c.b16 %v616, %v614
    %v657 = vpack.c.b16 %v619, %v617
    %v658 = vpack.c.b16 %v620, %v618
    %v659 = vpack.c.b16 %v623, %v621
    %v660 = vpack.c.b16 %v624, %v622
    %v661 = vpack.c.b16 %v627, %v625
    %v662 = vpack.c.b16 %v628, %v626
    %v663 = vpack.c.b16 %v631, %v629
    %v664 = vpack.c.b16 %v632, %v630
    %697 = vmatprep.subr.bf16.mxu0 %v634
    %698 = vmatpush1.bf16.msra.mxu0 %v633
    %699 = vmatprep.subr.bf16.mxu0 %v636
    %700 = vmatpush1.bf16.msra.mxu0 %v635
    %701 = vmatprep.subr.bf16.mxu0 %v638
    %702 = vmatpush1.bf16.msra.mxu0 %v637
    %703 = vmatprep.subr.bf16.mxu0 %v640
    %704 = vmatpush1.bf16.msra.mxu0 %v639
    %705 = vmatprep.subr.bf16.mxu0 %v642
    %706 = vmatpush1.bf16.msra.mxu0 %v641
    %707 = vmatprep.subr.bf16.mxu0 %v644
    %708 = vmatpush1.bf16.msra.mxu0 %v643
    %709 = vmatprep.subr.bf16.mxu0 %v646
    %710 = vmatpush1.bf16.msra.mxu0 %v645
    %711 = vmatprep.subr.bf16.mxu0 %v648
    %712 = vmatpush1.bf16.msra.mxu0 %v647
    %713 = vmatprep.subr.bf16.mxu0 %v650
    %714 = vmatpush1.bf16.msra.mxu0 %v649
    %715 = vmatprep.subr.bf16.mxu0 %v652
    %716 = vmatpush1.bf16.msra.mxu0 %v651
    %717 = vmatprep.subr.bf16.mxu0 %v654
    %718 = vmatpush1.bf16.msra.mxu0 %v653
    %719 = vmatprep.subr.bf16.mxu0 %v656
    %720 = vmatpush1.bf16.msra.mxu0 %v655
    %721 = vmatprep.subr.bf16.mxu0 %v658
    %722 = vmatpush1.bf16.msra.mxu0 %v657
    %723 = vmatprep.subr.bf16.mxu0 %v660
    %724 = vmatpush1.bf16.msra.mxu0 %v659
    %725 = vmatprep.subr.bf16.mxu0 %v662
    %726 = vmatpush1.bf16.msra.mxu0 %v661
    %727 = vmatprep.subr.bf16.mxu0 %v664
    %728 = vmatpush1.bf16.msra.mxu0 %v663
    %729 = vmatprep.mubr.bf16.mxu0 %v461
    %730 = vmatmul.mubr.bf16.gmra.mrb[0].mxu0 %v460
    %v731 = vpop.f32.mrb[0].mxu0
    %v732 = vadd.f32 %v530, %v731
    %v733 = vpop.f32.mrb[0].mxu0
    %v734 = vadd.f32 %v534, %v733
    %v735 = vpop.f32.mrb[0].mxu0
    %v736 = vadd.f32 %v530, %v735
    %v737 = vpop.f32.mrb[0].mxu0
    %v738 = vadd.f32 %v534, %v737
    %739 = vmatprep.mubr.bf16.mxu0 %v463
    %740 = vmatmul.mubr.bf16.gmra.mrb[0].mxu0 %v462
    %v741 = vpop.f32.mrb[0].mxu0
    %v742 = vadd.f32 %v530, %v741
    %v743 = vpop.f32.mrb[0].mxu0
    %v744 = vadd.f32 %v534, %v743
    %v745 = vpop.f32.mrb[0].mxu0
    %v746 = vadd.f32 %v530, %v745
    %v747 = vpop.f32.mrb[0].mxu0
    %v748 = vadd.f32 %v534, %v747
    %749 = vmatprep.mubr.bf16.mxu0 %v465
    %750 = vmatmul.mubr.bf16.gmra.mrb[0].mxu0 %v464
    %v751 = vpop.f32.mrb[0].mxu0
    %v752 = vadd.f32 %v530, %v751
    %v753 = vpop.f32.mrb[0].mxu0
    %v754 = vadd.f32 %v534, %v753
    %v755 = vpop.f32.mrb[0].mxu0
    %v756 = vadd.f32 %v530, %v755
    %v757 = vpop.f32.mrb[0].mxu0
    %v758 = vadd.f32 %v534, %v757
    %759 = vmatprep.mubr.bf16.mxu0 %v467
    %760 = vmatmul.mubr.bf16.gmra.mrb[0].mxu0 %v466
    %v761 = vpop.f32.mrb[0].mxu0
    %v762 = vadd.f32 %v530, %v761
    %v763 = vpop.f32.mrb[0].mxu0
    %v764 = vadd.f32 %v534, %v763
    %v765 = vpop.f32.mrb[0].mxu0
    %v766 = vadd.f32 %v530, %v765
    %v767 = vpop.f32.mrb[0].mxu0
    %v768 = vadd.f32 %v534, %v767
    %769 = vmatprep.mubr.bf16.mxu0 %v469
    %770 = vmatmul.mubr.bf16.gmra.mrb[0].mxu0 %v468
    %v771 = vpop.f32.mrb[0].mxu0
    %v772 = vadd.f32 %v530, %v771
    %v773 = vpop.f32.mrb[0].mxu0
    %v774 = vadd.f32 %v534, %v773
    %v775 = vpop.f32.mrb[0].mxu0
    %v776 = vadd.f32 %v530, %v775
    %v777 = vpop.f32.mrb[0].mxu0
    %v778 = vadd.f32 %v534, %v777
    %779 = vmatprep.mubr.bf16.mxu0 %v471
    %780 = vmatmul.mubr.bf16.gmra.mrb[0].mxu0 %v470
    %v781 = vpop.f32.mrb[0].mxu0
    %v782 = vadd.f32 %v530, %v781
    %v783 = vpop.f32.mrb[0].mxu0
    %v784 = vadd.f32 %v534, %v783
    %v785 = vpop.f32.mrb[0].mxu0
    %v786 = vadd.f32 %v530, %v785
    %v787 = vpop.f32.mrb[0].mxu0
    %v788 = vadd.f32 %v534, %v787
    %789 = vmatprep.mubr.bf16.mxu0 %v473
    %790 = vmatmul.mubr.bf16.gmra.mrb[0].mxu0 %v472
    %v791 = vpop.f32.mrb[0].mxu0
    %v792 = vadd.f32 %v530, %v791
    %v793 = vpop.f32.mrb[0].mxu0
    %v794 = vadd.f32 %v534, %v793
    %v795 = vpop.f32.mrb[0].mxu0
    %v796 = vadd.f32 %v530, %v795
    %v797 = vpop.f32.mrb[0].mxu0
    %v798 = vadd.f32 %v534, %v797
    %799 = vmatprep.mubr.bf16.mxu0 %v475
    %800 = vmatmul.mubr.bf16.gmra.mrb[0].mxu0 %v474
    %v801 = vpop.f32.mrb[0].mxu0
    %v802 = vadd.f32 %v530, %v801
    %v803 = vpop.f32.mrb[0].mxu0
    %v804 = vadd.f32 %v534, %v803
    %v805 = vpop.f32.mrb[0].mxu0
    %v806 = vadd.f32 %v530, %v805
    %v807 = vpop.f32.mrb[0].mxu0
    %v808 = vadd.f32 %v534, %v807
    %809 = vmatprep.mubr.bf16.mxu0 %v477
    %810 = vmatmul.mubr.bf16.gmra.mrb[0].mxu0 %v476
    %v811 = vpop.f32.mrb[0].mxu0
    %v812 = vadd.f32 %v530, %v811
    %v813 = vpop.f32.mrb[0].mxu0
    %v814 = vadd.f32 %v534, %v813
    %v815 = vpop.f32.mrb[0].mxu0
    %v816 = vadd.f32 %v530, %v815
    %v817 = vpop.f32.mrb[0].mxu0
    %v818 = vadd.f32 %v534, %v817
    %819 = vmatprep.mubr.bf16.mxu0 %v479
    %820 = vmatmul.mubr.bf16.gmra.mrb[0].mxu0 %v478
    %v821 = vpop.f32.mrb[0].mxu0
    %v822 = vadd.f32 %v530, %v821
    %v823 = vpop.f32.mrb[0].mxu0
    %v824 = vadd.f32 %v534, %v823
    %v825 = vpop.f32.mrb[0].mxu0
    %v826 = vadd.f32 %v530, %v825
    %v827 = vpop.f32.mrb[0].mxu0
    %v828 = vadd.f32 %v534, %v827
    %829 = vmatprep.mubr.bf16.mxu0 %v481
    %830 = vmatmul.mubr.bf16.gmra.mrb[0].mxu0 %v480
    %v831 = vpop.f32.mrb[0].mxu0
    %v832 = vadd.f32 %v530, %v831
    %v833 = vpop.f32.mrb[0].mxu0
    %v834 = vadd.f32 %v534, %v833
    %v835 = vpop.f32.mrb[0].mxu0
    %v836 = vadd.f32 %v530, %v835
    %v837 = vpop.f32.mrb[0].mxu0
    %v838 = vadd.f32 %v534, %v837
    %839 = vmatprep.mubr.bf16.mxu0 %v483
    %840 = vmatmul.mubr.bf16.gmra.mrb[0].mxu0 %v482
    %v841 = vpop.f32.mrb[0].mxu0
    %v842 = vadd.f32 %v530, %v841
    %v843 = vpop.f32.mrb[0].mxu0
    %v844 = vadd.f32 %v534, %v843
    %v845 = vpop.f32.mrb[0].mxu0
    %v846 = vadd.f32 %v530, %v845
    %v847 = vpop.f32.mrb[0].mxu0
    %v848 = vadd.f32 %v534, %v847
    %849 = vmatprep.mubr.bf16.mxu0 %v485
    %850 = vmatmul.mubr.bf16.gmra.mrb[0].mxu0 %v484
    %v851 = vpop.f32.mrb[0].mxu0
    %v852 = vadd.f32 %v530, %v851
    %v853 = vpop.f32.mrb[0].mxu0
    %v854 = vadd.f32 %v534, %v853
    %v855 = vpop.f32.mrb[0].mxu0
    %v856 = vadd.f32 %v530, %v855
    %v857 = vpop.f32.mrb[0].mxu0
    %v858 = vadd.f32 %v534, %v857
    %859 = vmatprep.mubr.bf16.mxu0 %v487
    %860 = vmatmul.mubr.bf16.gmra.mrb[0].mxu0 %v486
    %v861 = vpop.f32.mrb[0].mxu0
    %v862 = vadd.f32 %v530, %v861
    %v863 = vpop.f32.mrb[0].mxu0
    %v864 = vadd.f32 %v534, %v863
    %v865 = vpop.f32.mrb[0].mxu0
    %v866 = vadd.f32 %v530, %v865
    %v867 = vpop.f32.mrb[0].mxu0
    %v868 = vadd.f32 %v534, %v867
    %869 = vmatprep.mubr.bf16.mxu0 %v489
    %870 = vmatmul.mubr.bf16.gmra.mrb[0].mxu0 %v488
    %v871 = vpop.f32.mrb[0].mxu0
    %v872 = vadd.f32 %v530, %v871
    %v873 = vpop.f32.mrb[0].mxu0
    %v874 = vadd.f32 %v534, %v873
    %v875 = vpop.f32.mrb[0].mxu0
    %v876 = vadd.f32 %v530, %v875
    %v877 = vpop.f32.mrb[0].mxu0
    %v878 = vadd.f32 %v534, %v877
    %879 = vmatprep.mubr.bf16.mxu0 %v491
    %880 = vmatmul.mubr.bf16.gmra.mrb[0].mxu0 %v490
    %v881 = vpop.f32.mrb[0].mxu0
    %v882 = vadd.f32 %v530, %v881
    %v883 = vpop.f32.mrb[0].mxu0
    %v884 = vadd.f32 %v534, %v883
    %v885 = vpop.f32.mrb[0].mxu0
    %v886 = vadd.f32 %v530, %v885
    %v887 = vpop.f32.mrb[0].mxu0
    %v888 = vadd.f32 %v534, %v887
    %889 = vdwg.mxu0
    %v890 = vmax.f32 %v732, 0.0
    %v891 = vmax.f32 %v734, 0.0
    %v892 = vmax.f32 %v736, 0.0
    %v893 = vmax.f32 %v738, 0.0
    %v894 = vmax.f32 %v742, 0.0
    %v895 = vmax.f32 %v744, 0.0
    %v896 = vmax.f32 %v746, 0.0
    %v897 = vmax.f32 %v748, 0.0
    %v898 = vmax.f32 %v752, 0.0
    %v899 = vmax.f32 %v754, 0.0
    %v900 = vmax.f32 %v756, 0.0
    %v901 = vmax.f32 %v758, 0.0
    %v902 = vmax.f32 %v762, 0.0
    %v903 = vmax.f32 %v764, 0.0
    %v904 = vmax.f32 %v766, 0.0
    %v905 = vmax.f32 %v768, 0.0
    %v906 = vmax.f32 %v772, 0.0
    %v907 = vmax.f32 %v774, 0.0
    %v908 = vmax.f32 %v776, 0.0
    %v909 = vmax.f32 %v778, 0.0
    %v910 = vmax.f32 %v782, 0.0
    %v911 = vmax.f32 %v784, 0.0
    %v912 = vmax.f32 %v786, 0.0
    %v913 = vmax.f32 %v788, 0.0
    %v914 = vmax.f32 %v792, 0.0
    %v915 = vmax.f32 %v794, 0.0
    %v916 = vmax.f32 %v796, 0.0
    %v917 = vmax.f32 %v798, 0.0
    %v918 = vmax.f32 %v802, 0.0
    %v919 = vmax.f32 %v804, 0.0
    %v920 = vmax.f32 %v806, 0.0
    %v921 = vmax.f32 %v808, 0.0
    %v922 = vmax.f32 %v812, 0.0
    %v923 = vmax.f32 %v814, 0.0
    %v924 = vmax.f32 %v816, 0.0
    %v925 = vmax.f32 %v818, 0.0
    %v926 = vmax.f32 %v822, 0.0
    %v927 = vmax.f32 %v824, 0.0
    %v928 = vmax.f32 %v826, 0.0
    %v929 = vmax.f32 %v828, 0.0
    %v930 = vmax.f32 %v832, 0.0
    %v931 = vmax.f32 %v834, 0.0
    %v932 = vmax.f32 %v836, 0.0
    %v933 = vmax.f32 %v838, 0.0
    %v934 = vmax.f32 %v842, 0.0
    %v935 = vmax.f32 %v844, 0.0
    %v936 = vmax.f32 %v846, 0.0
    %v937 = vmax.f32 %v848, 0.0
    %v938 = vmax.f32 %v852, 0.0
    %v939 = vmax.f32 %v854, 0.0
    %v940 = vmax.f32 %v856, 0.0
    %v941 = vmax.f32 %v858, 0.0
    %v942 = vmax.f32 %v862, 0.0
    %v943 = vmax.f32 %v864, 0.0
    %v944 = vmax.f32 %v866, 0.0
    %v945 = vmax.f32 %v868, 0.0
    %v946 = vmax.f32 %v872, 0.0
    %v947 = vmax.f32 %v874, 0.0
    %v948 = vmax.f32 %v876, 0.0
    %v949 = vmax.f32 %v878, 0.0
    %v950 = vmax.f32 %v882, 0.0
    %v951 = vmax.f32 %v884, 0.0
    %v952 = vmax.f32 %v886, 0.0
    %v953 = vmax.f32 %v888, 0.0
    %v954 = vpack.c.bf16 %v892, %v890
    %v955 = vpack.c.bf16 %v893, %v891
    %v956 = vpack.c.bf16 %v896, %v894
    %v957 = vpack.c.bf16 %v897, %v895
    %v958 = vpack.c.bf16 %v900, %v898
    %v959 = vpack.c.bf16 %v901, %v899
    %v960 = vpack.c.bf16 %v904, %v902
    %v961 = vpack.c.bf16 %v905, %v903
    %v962 = vpack.c.bf16 %v908, %v906
    %v963 = vpack.c.bf16 %v909, %v907
    %v964 = vpack.c.bf16 %v912, %v910
    %v965 = vpack.c.bf16 %v913, %v911
    %v966 = vpack.c.bf16 %v916, %v914
    %v967 = vpack.c.bf16 %v917, %v915
    %v968 = vpack.c.bf16 %v920, %v918
    %v969 = vpack.c.bf16 %v921, %v919
    %v970 = vpack.c.bf16 %v924, %v922
    %v971 = vpack.c.bf16 %v925, %v923
    %v972 = vpack.c.bf16 %v928, %v926
    %v973 = vpack.c.bf16 %v929, %v927
    %v974 = vpack.c.bf16 %v932, %v930
    %v975 = vpack.c.bf16 %v933, %v931
    %v976 = vpack.c.bf16 %v936, %v934
    %v977 = vpack.c.bf16 %v937, %v935
    %v978 = vpack.c.bf16 %v940, %v938
    %v979 = vpack.c.bf16 %v941, %v939
    %v980 = vpack.c.bf16 %v944, %v942
    %v981 = vpack.c.bf16 %v945, %v943
    %v982 = vpack.c.bf16 %v948, %v946
    %v983 = vpack.c.bf16 %v949, %v947
    %v984 = vpack.c.bf16 %v952, %v950
    %v985 = vpack.c.bf16 %v953, %v951
    %s986 = scalar_lea.vmem %s2, 256
    %v987 = vld [vmem:[%s986] sm:$0xff]
    %v988 = vld [vmem:[%s986 + $0x8] sm:$0xff]
    %v989 = vld [vmem:[%s986 + $0x10] sm:$0xff]
    %v990 = vld [vmem:[%s986 + $0x18] sm:$0xff]
    %v991 = vld [vmem:[%s986 + $0x20] sm:$0xff]
    %v992 = vld [vmem:[%s986 + $0x28] sm:$0xff]
    %v993 = vld [vmem:[%s986 + $0x30] sm:$0xff]
    %v994 = vld [vmem:[%s986 + $0x38] sm:$0xff]
    %v995 = vld [vmem:[%s986 + $0x40] sm:$0xff]
    %v996 = vld [vmem:[%s986 + $0x48] sm:$0xff]
    %v997 = vld [vmem:[%s986 + $0x50] sm:$0xff]
    %v998 = vld [vmem:[%s986 + $0x58] sm:$0xff]
    %v999 = vld [vmem:[%s986 + $0x60] sm:$0xff]
    %v1000 = vld [vmem:[%s986 + $0x68] sm:$0xff]
    %v1001 = vld [vmem:[%s986 + $0x70] sm:$0xff]
    %v1002 = vld [vmem:[%s986 + $0x78] sm:$0xff]
    %v1003 = vld [vmem:[%s986 + $0x80] sm:$0xff]
    %v1004 = vld [vmem:[%s986 + $0x88] sm:$0xff]
    %v1005 = vld [vmem:[%s986 + $0x90] sm:$0xff]
    %v1006 = vld [vmem:[%s986 + $0x98] sm:$0xff]
    %v1007 = vld [vmem:[%s986 + $0xa0] sm:$0xff]
    %v1008 = vld [vmem:[%s986 + $0xa8] sm:$0xff]
    %v1009 = vld [vmem:[%s986 + $0xb0] sm:$0xff]
    %v1010 = vld [vmem:[%s986 + $0xb8] sm:$0xff]
    %v1011 = vld [vmem:[%s986 + $0xc0] sm:$0xff]
    %v1012 = vld [vmem:[%s986 + $0xc8] sm:$0xff]
    %v1013 = vld [vmem:[%s986 + $0xd0] sm:$0xff]
    %v1014 = vld [vmem:[%s986 + $0xd8] sm:$0xff]
    %v1015 = vld [vmem:[%s986 + $0xe0] sm:$0xff]
    %v1016 = vld [vmem:[%s986 + $0xe8] sm:$0xff]
    %v1017 = vld [vmem:[%s986 + $0xf0] sm:$0xff]
    %v1018 = vld [vmem:[%s986 + $0xf8] sm:$0xff]
    %s1019 = scalar_lea.vmem %s3, 2
    %v1020 = vld [vmem:[%s1019] ss:$8 sm:$0x3]
    %v1022 = vlaneseq
    %v1023 = vshrl.u32 %v1022, 7
    %v1024 = vsub.s32 0, %v1023
    %v1025 = vrot.slane %v1020, %v1024
    %v1026 = vlaneseq
    %v1027 = vshrl.u32 %v1026, 7
    %v1028 = vsub.s32 1, %v1027
    %v1029 = vrot.slane %v1020, %v1028
    %v1064 = vunpack.c.l.b16 %v987
    %v1065 = vunpack.c.h.b16 %v987
    %v1066 = vunpack.c.l.b16 %v988
    %v1067 = vunpack.c.h.b16 %v988
    %v1068 = vunpack.c.l.b16 %v989
    %v1069 = vunpack.c.h.b16 %v989
    %v1070 = vunpack.c.l.b16 %v990
    %v1071 = vunpack.c.h.b16 %v990
    %v1072 = vunpack.c.l.b16 %v991
    %v1073 = vunpack.c.h.b16 %v991
    %v1074 = vunpack.c.l.b16 %v992
    %v1075 = vunpack.c.h.b16 %v992
    %v1076 = vunpack.c.l.b16 %v993
    %v1077 = vunpack.c.h.b16 %v993
    %v1078 = vunpack.c.l.b16 %v994
    %v1079 = vunpack.c.h.b16 %v994
    %v1080 = vunpack.c.l.b16 %v995
    %v1081 = vunpack.c.h.b16 %v995
    %v1082 = vunpack.c.l.b16 %v996
    %v1083 = vunpack.c.h.b16 %v996
    %v1084 = vunpack.c.l.b16 %v997
    %v1085 = vunpack.c.h.b16 %v997
    %v1086 = vunpack.c.l.b16 %v998
    %v1087 = vunpack.c.h.b16 %v998
    %v1088 = vunpack.c.l.b16 %v999
    %v1089 = vunpack.c.h.b16 %v999
    %v1090 = vunpack.c.l.b16 %v1000
    %v1091 = vunpack.c.h.b16 %v1000
    %v1092 = vunpack.c.l.b16 %v1001
    %v1093 = vunpack.c.h.b16 %v1001
    %v1094 = vunpack.c.l.b16 %v1002
    %v1095 = vunpack.c.h.b16 %v1002
    %v1096 = vunpack.c.l.b16 %v1003
    %v1097 = vunpack.c.h.b16 %v1003
    %v1098 = vunpack.c.l.b16 %v1004
    %v1099 = vunpack.c.h.b16 %v1004
    %v1100 = vunpack.c.l.b16 %v1005
    %v1101 = vunpack.c.h.b16 %v1005
    %v1102 = vunpack.c.l.b16 %v1006
    %v1103 = vunpack.c.h.b16 %v1006
    %v1104 = vunpack.c.l.b16 %v1007
    %v1105 = vunpack.c.h.b16 %v1007
    %v1106 = vunpack.c.l.b16 %v1008
    %v1107 = vunpack.c.h.b16 %v1008
    %v1108 = vunpack.c.l.b16 %v1009
    %v1109 = vunpack.c.h.b16 %v1009
    %v1110 = vunpack.c.l.b16 %v1010
    %v1111 = vunpack.c.h.b16 %v1010
    %v1112 = vunpack.c.l.b16 %v1011
    %v1113 = vunpack.c.h.b16 %v1011
    %v1114 = vunpack.c.l.b16 %v1012
    %v1115 = vunpack.c.h.b16 %v1012
    %v1116 = vunpack.c.l.b16 %v1013
    %v1117 = vunpack.c.h.b16 %v1013
    %v1118 = vunpack.c.l.b16 %v1014
    %v1119 = vunpack.c.h.b16 %v1014
    %v1120 = vunpack.c.l.b16 %v1015
    %v1121 = vunpack.c.h.b16 %v1015
    %v1122 = vunpack.c.l.b16 %v1016
    %v1123 = vunpack.c.h.b16 %v1016
    %v1124 = vunpack.c.l.b16 %v1017
    %v1125 = vunpack.c.h.b16 %v1017
    %v1126 = vunpack.c.l.b16 %v1018
    %v1127 = vunpack.c.h.b16 %v1018
    %v1128 = vpack.c.b16 %v1066, %v1064
    %v1129 = vpack.c.b16 %v1067, %v1065
    %v1130 = vpack.c.b16 %v1070, %v1068
    %v1131 = vpack.c.b16 %v1071, %v1069
    %v1132 = vpack.c.b16 %v1074, %v1072
    %v1133 = vpack.c.b16 %v1075, %v1073
    %v1134 = vpack.c.b16 %v1078, %v1076
    %v1135 = vpack.c.b16 %v1079, %v1077
    %v1136 = vpack.c.b16 %v1082, %v1080
    %v1137 = vpack.c.b16 %v1083, %v1081
    %v1138 = vpack.c.b16 %v1086, %v1084
    %v1139 = vpack.c.b16 %v1087, %v1085
    %v1140 = vpack.c.b16 %v1090, %v1088
    %v1141 = vpack.c.b16 %v1091, %v1089
    %v1142 = vpack.c.b16 %v1094, %v1092
    %v1143 = vpack.c.b16 %v1095, %v1093
    %v1144 = vpack.c.b16 %v1098, %v1096
    %v1145 = vpack.c.b16 %v1099, %v1097
    %v1146 = vpack.c.b16 %v1102, %v1100
    %v1147 = vpack.c.b16 %v1103, %v1101
    %v1148 = vpack.c.b16 %v1106, %v1104
    %v1149 = vpack.c.b16 %v1107, %v1105
    %v1150 = vpack.c.b16 %v1110, %v1108
    %v1151 = vpack.c.b16 %v1111, %v1109
    %v1152 = vpack.c.b16 %v1114, %v1112
    %v1153 = vpack.c.b16 %v1115, %v1113
    %v1154 = vpack.c.b16 %v1118, %v1116
    %v1155 = vpack.c.b16 %v1119, %v1117
    %v1156 = vpack.c.b16 %v1122, %v1120
    %v1157 = vpack.c.b16 %v1123, %v1121
    %v1158 = vpack.c.b16 %v1126, %v1124
    %v1159 = vpack.c.b16 %v1127, %v1125
    %1192 = vmatprep.subr.bf16.mxu0 %v1129
    %1193 = vmatpush1.bf16.msra.mxu0 %v1128
    %1194 = vmatprep.subr.bf16.mxu0 %v1131
    %1195 = vmatpush1.bf16.msra.mxu0 %v1130
    %1196 = vmatprep.subr.bf16.mxu0 %v1133
    %1197 = vmatpush1.bf16.msra.mxu0 %v1132
    %1198 = vmatprep.subr.bf16.mxu0 %v1135
    %1199 = vmatpush1.bf16.msra.mxu0 %v1134
    %1200 = vmatprep.subr.bf16.mxu0 %v1137
    %1201 = vmatpush1.bf16.msra.mxu0 %v1136
    %1202 = vmatprep.subr.bf16.mxu0 %v1139
    %1203 = vmatpush1.bf16.msra.mxu0 %v1138
    %1204 = vmatprep.subr.bf16.mxu0 %v1141
    %1205 = vmatpush1.bf16.msra.mxu0 %v1140
    %1206 = vmatprep.subr.bf16.mxu0 %v1143
    %1207 = vmatpush1.bf16.msra.mxu0 %v1142
    %1208 = vmatprep.subr.bf16.mxu0 %v1145
    %1209 = vmatpush1.bf16.msra.mxu0 %v1144
    %1210 = vmatprep.subr.bf16.mxu0 %v1147
    %1211 = vmatpush1.bf16.msra.mxu0 %v1146
    %1212 = vmatprep.subr.bf16.mxu0 %v1149
    %1213 = vmatpush1.bf16.msra.mxu0 %v1148
    %1214 = vmatprep.subr.bf16.mxu0 %v1151
    %1215 = vmatpush1.bf16.msra.mxu0 %v1150
    %1216 = vmatprep.subr.bf16.mxu0 %v1153
    %1217 = vmatpush1.bf16.msra.mxu0 %v1152
    %1218 = vmatprep.subr.bf16.mxu0 %v1155
    %1219 = vmatpush1.bf16.msra.mxu0 %v1154
    %1220 = vmatprep.subr.bf16.mxu0 %v1157
    %1221 = vmatpush1.bf16.msra.mxu0 %v1156
    %1222 = vmatprep.subr.bf16.mxu0 %v1159
    %1223 = vmatpush1.bf16.msra.mxu0 %v1158
    %1224 = vmatprep.mubr.bf16.mxu0 %v955
    %1225 = vmatmul.mubr.bf16.gmra.mrb[0].mxu0 %v954
    %v1226 = vpop.f32.mrb[0].mxu0
    %v1227 = vadd.f32 %v1025, %v1226
    %v1228 = vpop.f32.mrb[0].mxu0
    %v1229 = vadd.f32 %v1029, %v1228
    %v1230 = vpop.f32.mrb[0].mxu0
    %v1231 = vadd.f32 %v1025, %v1230
    %v1232 = vpop.f32.mrb[0].mxu0
    %v1233 = vadd.f32 %v1029, %v1232
    %1234 = vmatprep.mubr.bf16.mxu0 %v957
    %1235 = vmatmul.mubr.bf16.gmra.mrb[0].mxu0 %v956
    %v1236 = vpop.f32.mrb[0].mxu0
    %v1237 = vadd.f32 %v1025, %v1236
    %v1238 = vpop.f32.mrb[0].mxu0
    %v1239 = vadd.f32 %v1029, %v1238
    %v1240 = vpop.f32.mrb[0].mxu0
    %v1241 = vadd.f32 %v1025, %v1240
    %v1242 = vpop.f32.mrb[0].mxu0
    %v1243 = vadd.f32 %v1029, %v1242
    %1244 = vmatprep.mubr.bf16.mxu0 %v959
    %1245 = vmatmul.mubr.bf16.gmra.mrb[0].mxu0 %v958
    %v1246 = vpop.f32.mrb[0].mxu0
    %v1247 = vadd.f32 %v1025, %v1246
    %v1248 = vpop.f32.mrb[0].mxu0
    %v1249 = vadd.f32 %v1029, %v1248
    %v1250 = vpop.f32.mrb[0].mxu0
    %v1251 = vadd.f32 %v1025, %v1250
    %v1252 = vpop.f32.mrb[0].mxu0
    %v1253 = vadd.f32 %v1029, %v1252
    %1254 = vmatprep.mubr.bf16.mxu0 %v961
    %1255 = vmatmul.mubr.bf16.gmra.mrb[0].mxu0 %v960
    %v1256 = vpop.f32.mrb[0].mxu0
    %v1257 = vadd.f32 %v1025, %v1256
    %v1258 = vpop.f32.mrb[0].mxu0
    %v1259 = vadd.f32 %v1029, %v1258
    %v1260 = vpop.f32.mrb[0].mxu0
    %v1261 = vadd.f32 %v1025, %v1260
    %v1262 = vpop.f32.mrb[0].mxu0
    %v1263 = vadd.f32 %v1029, %v1262
    %1264 = vmatprep.mubr.bf16.mxu0 %v963
    %1265 = vmatmul.mubr.bf16.gmra.mrb[0].mxu0 %v962
    %v1266 = vpop.f32.mrb[0].mxu0
    %v1267 = vadd.f32 %v1025, %v1266
    %v1268 = vpop.f32.mrb[0].mxu0
    %v1269 = vadd.f32 %v1029, %v1268
    %v1270 = vpop.f32.mrb[0].mxu0
    %v1271 = vadd.f32 %v1025, %v1270
    %v1272 = vpop.f32.mrb[0].mxu0
    %v1273 = vadd.f32 %v1029, %v1272
    %1274 = vmatprep.mubr.bf16.mxu0 %v965
    %1275 = vmatmul.mubr.bf16.gmra.mrb[0].mxu0 %v964
    %v1276 = vpop.f32.mrb[0].mxu0
    %v1277 = vadd.f32 %v1025, %v1276
    %v1278 = vpop.f32.mrb[0].mxu0
    %v1279 = vadd.f32 %v1029, %v1278
    %v1280 = vpop.f32.mrb[0].mxu0
    %v1281 = vadd.f32 %v1025, %v1280
    %v1282 = vpop.f32.mrb[0].mxu0
    %v1283 = vadd.f32 %v1029, %v1282
    %1284 = vmatprep.mubr.bf16.mxu0 %v967
    %1285 = vmatmul.mubr.bf16.gmra.mrb[0].mxu0 %v966
    %v1286 = vpop.f32.mrb[0].mxu0
    %v1287 = vadd.f32 %v1025, %v1286
    %v1288 = vpop.f32.mrb[0].mxu0
    %v1289 = vadd.f32 %v1029, %v1288
    %v1290 = vpop.f32.mrb[0].mxu0
    %v1291 = vadd.f32 %v1025, %v1290
    %v1292 = vpop.f32.mrb[0].mxu0
    %v1293 = vadd.f32 %v1029, %v1292
    %1294 = vmatprep.mubr.bf16.mxu0 %v969
    %1295 = vmatmul.mubr.bf16.gmra.mrb[0].mxu0 %v968
    %v1296 = vpop.f32.mrb[0].mxu0
    %v1297 = vadd.f32 %v1025, %v1296
    %v1298 = vpop.f32.mrb[0].mxu0
    %v1299 = vadd.f32 %v1029, %v1298
    %v1300 = vpop.f32.mrb[0].mxu0
    %v1301 = vadd.f32 %v1025, %v1300
    %v1302 = vpop.f32.mrb[0].mxu0
    %v1303 = vadd.f32 %v1029, %v1302
    %1304 = vmatprep.mubr.bf16.mxu0 %v971
    %1305 = vmatmul.mubr.bf16.gmra.mrb[0].mxu0 %v970
    %v1306 = vpop.f32.mrb[0].mxu0
    %v1307 = vadd.f32 %v1025, %v1306
    %v1308 = vpop.f32.mrb[0].mxu0
    %v1309 = vadd.f32 %v1029, %v1308
    %v1310 = vpop.f32.mrb[0].mxu0
    %v1311 = vadd.f32 %v1025, %v1310
    %v1312 = vpop.f32.mrb[0].mxu0
    %v1313 = vadd.f32 %v1029, %v1312
    %1314 = vmatprep.mubr.bf16.mxu0 %v973
    %1315 = vmatmul.mubr.bf16.gmra.mrb[0].mxu0 %v972
    %v1316 = vpop.f32.mrb[0].mxu0
    %v1317 = vadd.f32 %v1025, %v1316
    %v1318 = vpop.f32.mrb[0].mxu0
    %v1319 = vadd.f32 %v1029, %v1318
    %v1320 = vpop.f32.mrb[0].mxu0
    %v1321 = vadd.f32 %v1025, %v1320
    %v1322 = vpop.f32.mrb[0].mxu0
    %v1323 = vadd.f32 %v1029, %v1322
    %1324 = vmatprep.mubr.bf16.mxu0 %v975
    %1325 = vmatmul.mubr.bf16.gmra.mrb[0].mxu0 %v974
    %v1326 = vpop.f32.mrb[0].mxu0
    %v1327 = vadd.f32 %v1025, %v1326
    %v1328 = vpop.f32.mrb[0].mxu0
    %v1329 = vadd.f32 %v1029, %v1328
    %v1330 = vpop.f32.mrb[0].mxu0
    %v1331 = vadd.f32 %v1025, %v1330
    %v1332 = vpop.f32.mrb[0].mxu0
    %v1333 = vadd.f32 %v1029, %v1332
    %1334 = vmatprep.mubr.bf16.mxu0 %v977
    %1335 = vmatmul.mubr.bf16.gmra.mrb[0].mxu0 %v976
    %v1336 = vpop.f32.mrb[0].mxu0
    %v1337 = vadd.f32 %v1025, %v1336
    %v1338 = vpop.f32.mrb[0].mxu0
    %v1339 = vadd.f32 %v1029, %v1338
    %v1340 = vpop.f32.mrb[0].mxu0
    %v1341 = vadd.f32 %v1025, %v1340
    %v1342 = vpop.f32.mrb[0].mxu0
    %v1343 = vadd.f32 %v1029, %v1342
    %1344 = vmatprep.mubr.bf16.mxu0 %v979
    %1345 = vmatmul.mubr.bf16.gmra.mrb[0].mxu0 %v978
    %v1346 = vpop.f32.mrb[0].mxu0
    %v1347 = vadd.f32 %v1025, %v1346
    %v1348 = vpop.f32.mrb[0].mxu0
    %v1349 = vadd.f32 %v1029, %v1348
    %v1350 = vpop.f32.mrb[0].mxu0
    %v1351 = vadd.f32 %v1025, %v1350
    %v1352 = vpop.f32.mrb[0].mxu0
    %v1353 = vadd.f32 %v1029, %v1352
    %1354 = vmatprep.mubr.bf16.mxu0 %v981
    %1355 = vmatmul.mubr.bf16.gmra.mrb[0].mxu0 %v980
    %v1356 = vpop.f32.mrb[0].mxu0
    %v1357 = vadd.f32 %v1025, %v1356
    %v1358 = vpop.f32.mrb[0].mxu0
    %v1359 = vadd.f32 %v1029, %v1358
    %v1360 = vpop.f32.mrb[0].mxu0
    %v1361 = vadd.f32 %v1025, %v1360
    %v1362 = vpop.f32.mrb[0].mxu0
    %v1363 = vadd.f32 %v1029, %v1362
    %1364 = vmatprep.mubr.bf16.mxu0 %v983
    %1365 = vmatmul.mubr.bf16.gmra.mrb[0].mxu0 %v982
    %v1366 = vpop.f32.mrb[0].mxu0
    %v1367 = vadd.f32 %v1025, %v1366
    %v1368 = vpop.f32.mrb[0].mxu0
    %v1369 = vadd.f32 %v1029, %v1368
    %v1370 = vpop.f32.mrb[0].mxu0
    %v1371 = vadd.f32 %v1025, %v1370
    %v1372 = vpop.f32.mrb[0].mxu0
    %v1373 = vadd.f32 %v1029, %v1372
    %1374 = vmatprep.mubr.bf16.mxu0 %v985
    %1375 = vmatmul.mubr.bf16.gmra.mrb[0].mxu0 %v984
    %v1376 = vpop.f32.mrb[0].mxu0
    %v1377 = vadd.f32 %v1025, %v1376
    %v1378 = vpop.f32.mrb[0].mxu0
    %v1379 = vadd.f32 %v1029, %v1378
    %v1380 = vpop.f32.mrb[0].mxu0
    %v1381 = vadd.f32 %v1025, %v1380
    %v1382 = vpop.f32.mrb[0].mxu0
    %v1383 = vadd.f32 %v1029, %v1382
    %1384 = vdwg.mxu0
    %v1385 = vmax.f32 %v1227, 0.0
    %v1386 = vmax.f32 %v1229, 0.0
    %v1387 = vmax.f32 %v1231, 0.0
    %v1388 = vmax.f32 %v1233, 0.0
    %v1389 = vmax.f32 %v1237, 0.0
    %v1390 = vmax.f32 %v1239, 0.0
    %v1391 = vmax.f32 %v1241, 0.0
    %v1392 = vmax.f32 %v1243, 0.0
    %v1393 = vmax.f32 %v1247, 0.0
    %v1394 = vmax.f32 %v1249, 0.0
    %v1395 = vmax.f32 %v1251, 0.0
    %v1396 = vmax.f32 %v1253, 0.0
    %v1397 = vmax.f32 %v1257, 0.0
    %v1398 = vmax.f32 %v1259, 0.0
    %v1399 = vmax.f32 %v1261, 0.0
    %v1400 = vmax.f32 %v1263, 0.0
    %v1401 = vmax.f32 %v1267, 0.0
    %v1402 = vmax.f32 %v1269, 0.0
    %v1403 = vmax.f32 %v1271, 0.0
    %v1404 = vmax.f32 %v1273, 0.0
    %v1405 = vmax.f32 %v1277, 0.0
    %v1406 = vmax.f32 %v1279, 0.0
    %v1407 = vmax.f32 %v1281, 0.0
    %v1408 = vmax.f32 %v1283, 0.0
    %v1409 = vmax.f32 %v1287, 0.0
    %v1410 = vmax.f32 %v1289, 0.0
    %v1411 = vmax.f32 %v1291, 0.0
    %v1412 = vmax.f32 %v1293, 0.0
    %v1413 = vmax.f32 %v1297, 0.0
    %v1414 = vmax.f32 %v1299, 0.0
    %v1415 = vmax.f32 %v1301, 0.0
    %v1416 = vmax.f32 %v1303, 0.0
    %v1417 = vmax.f32 %v1307, 0.0
    %v1418 = vmax.f32 %v1309, 0.0
    %v1419 = vmax.f32 %v1311, 0.0
    %v1420 = vmax.f32 %v1313, 0.0
    %v1421 = vmax.f32 %v1317, 0.0
    %v1422 = vmax.f32 %v1319, 0.0
    %v1423 = vmax.f32 %v1321, 0.0
    %v1424 = vmax.f32 %v1323, 0.0
    %v1425 = vmax.f32 %v1327, 0.0
    %v1426 = vmax.f32 %v1329, 0.0
    %v1427 = vmax.f32 %v1331, 0.0
    %v1428 = vmax.f32 %v1333, 0.0
    %v1429 = vmax.f32 %v1337, 0.0
    %v1430 = vmax.f32 %v1339, 0.0
    %v1431 = vmax.f32 %v1341, 0.0
    %v1432 = vmax.f32 %v1343, 0.0
    %v1433 = vmax.f32 %v1347, 0.0
    %v1434 = vmax.f32 %v1349, 0.0
    %v1435 = vmax.f32 %v1351, 0.0
    %v1436 = vmax.f32 %v1353, 0.0
    %v1437 = vmax.f32 %v1357, 0.0
    %v1438 = vmax.f32 %v1359, 0.0
    %v1439 = vmax.f32 %v1361, 0.0
    %v1440 = vmax.f32 %v1363, 0.0
    %v1441 = vmax.f32 %v1367, 0.0
    %v1442 = vmax.f32 %v1369, 0.0
    %v1443 = vmax.f32 %v1371, 0.0
    %v1444 = vmax.f32 %v1373, 0.0
    %v1445 = vmax.f32 %v1377, 0.0
    %v1446 = vmax.f32 %v1379, 0.0
    %v1447 = vmax.f32 %v1381, 0.0
    %v1448 = vmax.f32 %v1383, 0.0
    %v1449 = vpack.c.bf16 %v1387, %v1385
    %v1450 = vpack.c.bf16 %v1388, %v1386
    %v1451 = vpack.c.bf16 %v1391, %v1389
    %v1452 = vpack.c.bf16 %v1392, %v1390
    %v1453 = vpack.c.bf16 %v1395, %v1393
    %v1454 = vpack.c.bf16 %v1396, %v1394
    %v1455 = vpack.c.bf16 %v1399, %v1397
    %v1456 = vpack.c.bf16 %v1400, %v1398
    %v1457 = vpack.c.bf16 %v1403, %v1401
    %v1458 = vpack.c.bf16 %v1404, %v1402
    %v1459 = vpack.c.bf16 %v1407, %v1405
    %v1460 = vpack.c.bf16 %v1408, %v1406
    %v1461 = vpack.c.bf16 %v1411, %v1409
    %v1462 = vpack.c.bf16 %v1412, %v1410
    %v1463 = vpack.c.bf16 %v1415, %v1413
    %v1464 = vpack.c.bf16 %v1416, %v1414
    %v1465 = vpack.c.bf16 %v1419, %v1417
    %v1466 = vpack.c.bf16 %v1420, %v1418
    %v1467 = vpack.c.bf16 %v1423, %v1421
    %v1468 = vpack.c.bf16 %v1424, %v1422
    %v1469 = vpack.c.bf16 %v1427, %v1425
    %v1470 = vpack.c.bf16 %v1428, %v1426
    %v1471 = vpack.c.bf16 %v1431, %v1429
    %v1472 = vpack.c.bf16 %v1432, %v1430
    %v1473 = vpack.c.bf16 %v1435, %v1433
    %v1474 = vpack.c.bf16 %v1436, %v1434
    %v1475 = vpack.c.bf16 %v1439, %v1437
    %v1476 = vpack.c.bf16 %v1440, %v1438
    %v1477 = vpack.c.bf16 %v1443, %v1441
    %v1478 = vpack.c.bf16 %v1444, %v1442
    %v1479 = vpack.c.bf16 %v1447, %v1445
    %v1480 = vpack.c.bf16 %v1448, %v1446
    %s1481 = scalar_lea.vmem %s2, 512
    %v1482 = vld [vmem:[%s1481] sm:$0xff]
    %v1483 = vld [vmem:[%s1481 + $0x8] sm:$0xff]
    %v1484 = vld [vmem:[%s1481 + $0x10] sm:$0xff]
    %v1485 = vld [vmem:[%s1481 + $0x18] sm:$0xff]
    %v1486 = vld [vmem:[%s1481 + $0x20] sm:$0xff]
    %v1487 = vld [vmem:[%s1481 + $0x28] sm:$0xff]
    %v1488 = vld [vmem:[%s1481 + $0x30] sm:$0xff]
    %v1489 = vld [vmem:[%s1481 + $0x38] sm:$0xff]
    %v1490 = vld [vmem:[%s1481 + $0x40] sm:$0xff]
    %v1491 = vld [vmem:[%s1481 + $0x48] sm:$0xff]
    %v1492 = vld [vmem:[%s1481 + $0x50] sm:$0xff]
    %v1493 = vld [vmem:[%s1481 + $0x58] sm:$0xff]
    %v1494 = vld [vmem:[%s1481 + $0x60] sm:$0xff]
    %v1495 = vld [vmem:[%s1481 + $0x68] sm:$0xff]
    %v1496 = vld [vmem:[%s1481 + $0x70] sm:$0xff]
    %v1497 = vld [vmem:[%s1481 + $0x78] sm:$0xff]
    %v1498 = vld [vmem:[%s1481 + $0x80] sm:$0xff]
    %v1499 = vld [vmem:[%s1481 + $0x88] sm:$0xff]
    %v1500 = vld [vmem:[%s1481 + $0x90] sm:$0xff]
    %v1501 = vld [vmem:[%s1481 + $0x98] sm:$0xff]
    %v1502 = vld [vmem:[%s1481 + $0xa0] sm:$0xff]
    %v1503 = vld [vmem:[%s1481 + $0xa8] sm:$0xff]
    %v1504 = vld [vmem:[%s1481 + $0xb0] sm:$0xff]
    %v1505 = vld [vmem:[%s1481 + $0xb8] sm:$0xff]
    %v1506 = vld [vmem:[%s1481 + $0xc0] sm:$0xff]
    %v1507 = vld [vmem:[%s1481 + $0xc8] sm:$0xff]
    %v1508 = vld [vmem:[%s1481 + $0xd0] sm:$0xff]
    %v1509 = vld [vmem:[%s1481 + $0xd8] sm:$0xff]
    %v1510 = vld [vmem:[%s1481 + $0xe0] sm:$0xff]
    %v1511 = vld [vmem:[%s1481 + $0xe8] sm:$0xff]
    %v1512 = vld [vmem:[%s1481 + $0xf0] sm:$0xff]
    %v1513 = vld [vmem:[%s1481 + $0xf8] sm:$0xff]
    %s1514 = scalar_lea.vmem %s3, 3
    %v1515 = vld [vmem:[%s1514] ss:$8 sm:$0x3]
    %v1517 = vlaneseq
    %v1518 = vshrl.u32 %v1517, 7
    %v1519 = vsub.s32 0, %v1518
    %v1520 = vrot.slane %v1515, %v1519
    %v1521 = vlaneseq
    %v1522 = vshrl.u32 %v1521, 7
    %v1523 = vsub.s32 1, %v1522
    %v1524 = vrot.slane %v1515, %v1523
    %v1559 = vunpack.c.l.b16 %v1482
    %v1560 = vunpack.c.h.b16 %v1482
    %v1561 = vunpack.c.l.b16 %v1483
    %v1562 = vunpack.c.h.b16 %v1483
    %v1563 = vunpack.c.l.b16 %v1484
    %v1564 = vunpack.c.h.b16 %v1484
    %v1565 = vunpack.c.l.b16 %v1485
    %v1566 = vunpack.c.h.b16 %v1485
    %v1567 = vunpack.c.l.b16 %v1486
    %v1568 = vunpack.c.h.b16 %v1486
    %v1569 = vunpack.c.l.b16 %v1487
    %v1570 = vunpack.c.h.b16 %v1487
    %v1571 = vunpack.c.l.b16 %v1488
    %v1572 = vunpack.c.h.b16 %v1488
    %v1573 = vunpack.c.l.b16 %v1489
    %v1574 = vunpack.c.h.b16 %v1489
    %v1575 = vunpack.c.l.b16 %v1490
    %v1576 = vunpack.c.h.b16 %v1490
    %v1577 = vunpack.c.l.b16 %v1491
    %v1578 = vunpack.c.h.b16 %v1491
    %v1579 = vunpack.c.l.b16 %v1492
    %v1580 = vunpack.c.h.b16 %v1492
    %v1581 = vunpack.c.l.b16 %v1493
    %v1582 = vunpack.c.h.b16 %v1493
    %v1583 = vunpack.c.l.b16 %v1494
    %v1584 = vunpack.c.h.b16 %v1494
    %v1585 = vunpack.c.l.b16 %v1495
    %v1586 = vunpack.c.h.b16 %v1495
    %v1587 = vunpack.c.l.b16 %v1496
    %v1588 = vunpack.c.h.b16 %v1496
    %v1589 = vunpack.c.l.b16 %v1497
    %v1590 = vunpack.c.h.b16 %v1497
    %v1591 = vunpack.c.l.b16 %v1498
    %v1592 = vunpack.c.h.b16 %v1498
    %v1593 = vunpack.c.l.b16 %v1499
    %v1594 = vunpack.c.h.b16 %v1499
    %v1595 = vunpack.c.l.b16 %v1500
    %v1596 = vunpack.c.h.b16 %v1500
    %v1597 = vunpack.c.l.b16 %v1501
    %v1598 = vunpack.c.h.b16 %v1501
    %v1599 = vunpack.c.l.b16 %v1502
    %v1600 = vunpack.c.h.b16 %v1502
    %v1601 = vunpack.c.l.b16 %v1503
    %v1602 = vunpack.c.h.b16 %v1503
    %v1603 = vunpack.c.l.b16 %v1504
    %v1604 = vunpack.c.h.b16 %v1504
    %v1605 = vunpack.c.l.b16 %v1505
    %v1606 = vunpack.c.h.b16 %v1505
    %v1607 = vunpack.c.l.b16 %v1506
    %v1608 = vunpack.c.h.b16 %v1506
    %v1609 = vunpack.c.l.b16 %v1507
    %v1610 = vunpack.c.h.b16 %v1507
    %v1611 = vunpack.c.l.b16 %v1508
    %v1612 = vunpack.c.h.b16 %v1508
    %v1613 = vunpack.c.l.b16 %v1509
    %v1614 = vunpack.c.h.b16 %v1509
    %v1615 = vunpack.c.l.b16 %v1510
    %v1616 = vunpack.c.h.b16 %v1510
    %v1617 = vunpack.c.l.b16 %v1511
    %v1618 = vunpack.c.h.b16 %v1511
    %v1619 = vunpack.c.l.b16 %v1512
    %v1620 = vunpack.c.h.b16 %v1512
    %v1621 = vunpack.c.l.b16 %v1513
    %v1622 = vunpack.c.h.b16 %v1513
    %v1623 = vpack.c.b16 %v1561, %v1559
    %v1624 = vpack.c.b16 %v1562, %v1560
    %v1625 = vpack.c.b16 %v1565, %v1563
    %v1626 = vpack.c.b16 %v1566, %v1564
    %v1627 = vpack.c.b16 %v1569, %v1567
    %v1628 = vpack.c.b16 %v1570, %v1568
    %v1629 = vpack.c.b16 %v1573, %v1571
    %v1630 = vpack.c.b16 %v1574, %v1572
    %v1631 = vpack.c.b16 %v1577, %v1575
    %v1632 = vpack.c.b16 %v1578, %v1576
    %v1633 = vpack.c.b16 %v1581, %v1579
    %v1634 = vpack.c.b16 %v1582, %v1580
    %v1635 = vpack.c.b16 %v1585, %v1583
    %v1636 = vpack.c.b16 %v1586, %v1584
    %v1637 = vpack.c.b16 %v1589, %v1587
    %v1638 = vpack.c.b16 %v1590, %v1588
    %v1639 = vpack.c.b16 %v1593, %v1591
    %v1640 = vpack.c.b16 %v1594, %v1592
    %v1641 = vpack.c.b16 %v1597, %v1595
    %v1642 = vpack.c.b16 %v1598, %v1596
    %v1643 = vpack.c.b16 %v1601, %v1599
    %v1644 = vpack.c.b16 %v1602, %v1600
    %v1645 = vpack.c.b16 %v1605, %v1603
    %v1646 = vpack.c.b16 %v1606, %v1604
    %v1647 = vpack.c.b16 %v1609, %v1607
    %v1648 = vpack.c.b16 %v1610, %v1608
    %v1649 = vpack.c.b16 %v1613, %v1611
    %v1650 = vpack.c.b16 %v1614, %v1612
    %v1651 = vpack.c.b16 %v1617, %v1615
    %v1652 = vpack.c.b16 %v1618, %v1616
    %v1653 = vpack.c.b16 %v1621, %v1619
    %v1654 = vpack.c.b16 %v1622, %v1620
    %1687 = vmatprep.subr.bf16.mxu0 %v1624
    %1688 = vmatpush1.bf16.msra.mxu0 %v1623
    %1689 = vmatprep.subr.bf16.mxu0 %v1626
    %1690 = vmatpush1.bf16.msra.mxu0 %v1625
    %1691 = vmatprep.subr.bf16.mxu0 %v1628
    %1692 = vmatpush1.bf16.msra.mxu0 %v1627
    %1693 = vmatprep.subr.bf16.mxu0 %v1630
    %1694 = vmatpush1.bf16.msra.mxu0 %v1629
    %1695 = vmatprep.subr.bf16.mxu0 %v1632
    %1696 = vmatpush1.bf16.msra.mxu0 %v1631
    %1697 = vmatprep.subr.bf16.mxu0 %v1634
    %1698 = vmatpush1.bf16.msra.mxu0 %v1633
    %1699 = vmatprep.subr.bf16.mxu0 %v1636
    %1700 = vmatpush1.bf16.msra.mxu0 %v1635
    %1701 = vmatprep.subr.bf16.mxu0 %v1638
    %1702 = vmatpush1.bf16.msra.mxu0 %v1637
    %1703 = vmatprep.subr.bf16.mxu0 %v1640
    %1704 = vmatpush1.bf16.msra.mxu0 %v1639
    %1705 = vmatprep.subr.bf16.mxu0 %v1642
    %1706 = vmatpush1.bf16.msra.mxu0 %v1641
    %1707 = vmatprep.subr.bf16.mxu0 %v1644
    %1708 = vmatpush1.bf16.msra.mxu0 %v1643
    %1709 = vmatprep.subr.bf16.mxu0 %v1646
    %1710 = vmatpush1.bf16.msra.mxu0 %v1645
    %1711 = vmatprep.subr.bf16.mxu0 %v1648
    %1712 = vmatpush1.bf16.msra.mxu0 %v1647
    %1713 = vmatprep.subr.bf16.mxu0 %v1650
    %1714 = vmatpush1.bf16.msra.mxu0 %v1649
    %1715 = vmatprep.subr.bf16.mxu0 %v1652
    %1716 = vmatpush1.bf16.msra.mxu0 %v1651
    %1717 = vmatprep.subr.bf16.mxu0 %v1654
    %1718 = vmatpush1.bf16.msra.mxu0 %v1653
    %1719 = vmatprep.mubr.bf16.mxu0 %v1450
    %1720 = vmatmul.mubr.bf16.gmra.mrb[0].mxu0 %v1449
    %v1721 = vpop.f32.mrb[0].mxu0
    %v1722 = vadd.f32 %v1520, %v1721
    %v1723 = vpop.f32.mrb[0].mxu0
    %v1724 = vadd.f32 %v1524, %v1723
    %v1725 = vpop.f32.mrb[0].mxu0
    %v1726 = vadd.f32 %v1520, %v1725
    %v1727 = vpop.f32.mrb[0].mxu0
    %v1728 = vadd.f32 %v1524, %v1727
    %1729 = vmatprep.mubr.bf16.mxu0 %v1452
    %1730 = vmatmul.mubr.bf16.gmra.mrb[0].mxu0 %v1451
    %v1731 = vpop.f32.mrb[0].mxu0
    %v1732 = vadd.f32 %v1520, %v1731
    %v1733 = vpop.f32.mrb[0].mxu0
    %v1734 = vadd.f32 %v1524, %v1733
    %v1735 = vpop.f32.mrb[0].mxu0
    %v1736 = vadd.f32 %v1520, %v1735
    %v1737 = vpop.f32.mrb[0].mxu0
    %v1738 = vadd.f32 %v1524, %v1737
    %1739 = vmatprep.mubr.bf16.mxu0 %v1454
    %1740 = vmatmul.mubr.bf16.gmra.mrb[0].mxu0 %v1453
    %v1741 = vpop.f32.mrb[0].mxu0
    %v1742 = vadd.f32 %v1520, %v1741
    %v1743 = vpop.f32.mrb[0].mxu0
    %v1744 = vadd.f32 %v1524, %v1743
    %v1745 = vpop.f32.mrb[0].mxu0
    %v1746 = vadd.f32 %v1520, %v1745
    %v1747 = vpop.f32.mrb[0].mxu0
    %v1748 = vadd.f32 %v1524, %v1747
    %1749 = vmatprep.mubr.bf16.mxu0 %v1456
    %1750 = vmatmul.mubr.bf16.gmra.mrb[0].mxu0 %v1455
    %v1751 = vpop.f32.mrb[0].mxu0
    %v1752 = vadd.f32 %v1520, %v1751
    %v1753 = vpop.f32.mrb[0].mxu0
    %v1754 = vadd.f32 %v1524, %v1753
    %v1755 = vpop.f32.mrb[0].mxu0
    %v1756 = vadd.f32 %v1520, %v1755
    %v1757 = vpop.f32.mrb[0].mxu0
    %v1758 = vadd.f32 %v1524, %v1757
    %1759 = vmatprep.mubr.bf16.mxu0 %v1458
    %1760 = vmatmul.mubr.bf16.gmra.mrb[0].mxu0 %v1457
    %v1761 = vpop.f32.mrb[0].mxu0
    %v1762 = vadd.f32 %v1520, %v1761
    %v1763 = vpop.f32.mrb[0].mxu0
    %v1764 = vadd.f32 %v1524, %v1763
    %v1765 = vpop.f32.mrb[0].mxu0
    %v1766 = vadd.f32 %v1520, %v1765
    %v1767 = vpop.f32.mrb[0].mxu0
    %v1768 = vadd.f32 %v1524, %v1767
    %1769 = vmatprep.mubr.bf16.mxu0 %v1460
    %1770 = vmatmul.mubr.bf16.gmra.mrb[0].mxu0 %v1459
    %v1771 = vpop.f32.mrb[0].mxu0
    %v1772 = vadd.f32 %v1520, %v1771
    %v1773 = vpop.f32.mrb[0].mxu0
    %v1774 = vadd.f32 %v1524, %v1773
    %v1775 = vpop.f32.mrb[0].mxu0
    %v1776 = vadd.f32 %v1520, %v1775
    %v1777 = vpop.f32.mrb[0].mxu0
    %v1778 = vadd.f32 %v1524, %v1777
    %1779 = vmatprep.mubr.bf16.mxu0 %v1462
    %1780 = vmatmul.mubr.bf16.gmra.mrb[0].mxu0 %v1461
    %v1781 = vpop.f32.mrb[0].mxu0
    %v1782 = vadd.f32 %v1520, %v1781
    %v1783 = vpop.f32.mrb[0].mxu0
    %v1784 = vadd.f32 %v1524, %v1783
    %v1785 = vpop.f32.mrb[0].mxu0
    %v1786 = vadd.f32 %v1520, %v1785
    %v1787 = vpop.f32.mrb[0].mxu0
    %v1788 = vadd.f32 %v1524, %v1787
    %1789 = vmatprep.mubr.bf16.mxu0 %v1464
    %1790 = vmatmul.mubr.bf16.gmra.mrb[0].mxu0 %v1463
    %v1791 = vpop.f32.mrb[0].mxu0
    %v1792 = vadd.f32 %v1520, %v1791
    %v1793 = vpop.f32.mrb[0].mxu0
    %v1794 = vadd.f32 %v1524, %v1793
    %v1795 = vpop.f32.mrb[0].mxu0
    %v1796 = vadd.f32 %v1520, %v1795
    %v1797 = vpop.f32.mrb[0].mxu0
    %v1798 = vadd.f32 %v1524, %v1797
    %1799 = vmatprep.mubr.bf16.mxu0 %v1466
    %1800 = vmatmul.mubr.bf16.gmra.mrb[0].mxu0 %v1465
    %v1801 = vpop.f32.mrb[0].mxu0
    %v1802 = vadd.f32 %v1520, %v1801
    %v1803 = vpop.f32.mrb[0].mxu0
    %v1804 = vadd.f32 %v1524, %v1803
    %v1805 = vpop.f32.mrb[0].mxu0
    %v1806 = vadd.f32 %v1520, %v1805
    %v1807 = vpop.f32.mrb[0].mxu0
    %v1808 = vadd.f32 %v1524, %v1807
    %1809 = vmatprep.mubr.bf16.mxu0 %v1468
    %1810 = vmatmul.mubr.bf16.gmra.mrb[0].mxu0 %v1467
    %v1811 = vpop.f32.mrb[0].mxu0
    %v1812 = vadd.f32 %v1520, %v1811
    %v1813 = vpop.f32.mrb[0].mxu0
    %v1814 = vadd.f32 %v1524, %v1813
    %v1815 = vpop.f32.mrb[0].mxu0
    %v1816 = vadd.f32 %v1520, %v1815
    %v1817 = vpop.f32.mrb[0].mxu0
    %v1818 = vadd.f32 %v1524, %v1817
    %1819 = vmatprep.mubr.bf16.mxu0 %v1470
    %1820 = vmatmul.mubr.bf16.gmra.mrb[0].mxu0 %v1469
    %v1821 = vpop.f32.mrb[0].mxu0
    %v1822 = vadd.f32 %v1520, %v1821
    %v1823 = vpop.f32.mrb[0].mxu0
    %v1824 = vadd.f32 %v1524, %v1823
    %v1825 = vpop.f32.mrb[0].mxu0
    %v1826 = vadd.f32 %v1520, %v1825
    %v1827 = vpop.f32.mrb[0].mxu0
    %v1828 = vadd.f32 %v1524, %v1827
    %1829 = vmatprep.mubr.bf16.mxu0 %v1472
    %1830 = vmatmul.mubr.bf16.gmra.mrb[0].mxu0 %v1471
    %v1831 = vpop.f32.mrb[0].mxu0
    %v1832 = vadd.f32 %v1520, %v1831
    %v1833 = vpop.f32.mrb[0].mxu0
    %v1834 = vadd.f32 %v1524, %v1833
    %v1835 = vpop.f32.mrb[0].mxu0
    %v1836 = vadd.f32 %v1520, %v1835
    %v1837 = vpop.f32.mrb[0].mxu0
    %v1838 = vadd.f32 %v1524, %v1837
    %1839 = vmatprep.mubr.bf16.mxu0 %v1474
    %1840 = vmatmul.mubr.bf16.gmra.mrb[0].mxu0 %v1473
    %v1841 = vpop.f32.mrb[0].mxu0
    %v1842 = vadd.f32 %v1520, %v1841
    %v1843 = vpop.f32.mrb[0].mxu0
    %v1844 = vadd.f32 %v1524, %v1843
    %v1845 = vpop.f32.mrb[0].mxu0
    %v1846 = vadd.f32 %v1520, %v1845
    %v1847 = vpop.f32.mrb[0].mxu0
    %v1848 = vadd.f32 %v1524, %v1847
    %1849 = vmatprep.mubr.bf16.mxu0 %v1476
    %1850 = vmatmul.mubr.bf16.gmra.mrb[0].mxu0 %v1475
    %v1851 = vpop.f32.mrb[0].mxu0
    %v1852 = vadd.f32 %v1520, %v1851
    %v1853 = vpop.f32.mrb[0].mxu0
    %v1854 = vadd.f32 %v1524, %v1853
    %v1855 = vpop.f32.mrb[0].mxu0
    %v1856 = vadd.f32 %v1520, %v1855
    %v1857 = vpop.f32.mrb[0].mxu0
    %v1858 = vadd.f32 %v1524, %v1857
    %1859 = vmatprep.mubr.bf16.mxu0 %v1478
    %1860 = vmatmul.mubr.bf16.gmra.mrb[0].mxu0 %v1477
    %v1861 = vpop.f32.mrb[0].mxu0
    %v1862 = vadd.f32 %v1520, %v1861
    %v1863 = vpop.f32.mrb[0].mxu0
    %v1864 = vadd.f32 %v1524, %v1863
    %v1865 = vpop.f32.mrb[0].mxu0
    %v1866 = vadd.f32 %v1520, %v1865
    %v1867 = vpop.f32.mrb[0].mxu0
    %v1868 = vadd.f32 %v1524, %v1867
    %1869 = vmatprep.mubr.bf16.mxu0 %v1480
    %1870 = vmatmul.mubr.bf16.gmra.mrb[0].mxu0 %v1479
    %v1871 = vpop.f32.mrb[0].mxu0
    %v1872 = vadd.f32 %v1520, %v1871
    %v1873 = vpop.f32.mrb[0].mxu0
    %v1874 = vadd.f32 %v1524, %v1873
    %v1875 = vpop.f32.mrb[0].mxu0
    %v1876 = vadd.f32 %v1520, %v1875
    %v1877 = vpop.f32.mrb[0].mxu0
    %v1878 = vadd.f32 %v1524, %v1877
    %1879 = vdwg.mxu0
    %v1880 = vmax.f32 %v1722, 0.0
    %v1881 = vmax.f32 %v1724, 0.0
    %v1882 = vmax.f32 %v1726, 0.0
    %v1883 = vmax.f32 %v1728, 0.0
    %v1884 = vmax.f32 %v1732, 0.0
    %v1885 = vmax.f32 %v1734, 0.0
    %v1886 = vmax.f32 %v1736, 0.0
    %v1887 = vmax.f32 %v1738, 0.0
    %v1888 = vmax.f32 %v1742, 0.0
    %v1889 = vmax.f32 %v1744, 0.0
    %v1890 = vmax.f32 %v1746, 0.0
    %v1891 = vmax.f32 %v1748, 0.0
    %v1892 = vmax.f32 %v1752, 0.0
    %v1893 = vmax.f32 %v1754, 0.0
    %v1894 = vmax.f32 %v1756, 0.0
    %v1895 = vmax.f32 %v1758, 0.0
    %v1896 = vmax.f32 %v1762, 0.0
    %v1897 = vmax.f32 %v1764, 0.0
    %v1898 = vmax.f32 %v1766, 0.0
    %v1899 = vmax.f32 %v1768, 0.0
    %v1900 = vmax.f32 %v1772, 0.0
    %v1901 = vmax.f32 %v1774, 0.0
    %v1902 = vmax.f32 %v1776, 0.0
    %v1903 = vmax.f32 %v1778, 0.0
    %v1904 = vmax.f32 %v1782, 0.0
    %v1905 = vmax.f32 %v1784, 0.0
    %v1906 = vmax.f32 %v1786, 0.0
    %v1907 = vmax.f32 %v1788, 0.0
    %v1908 = vmax.f32 %v1792, 0.0
    %v1909 = vmax.f32 %v1794, 0.0
    %v1910 = vmax.f32 %v1796, 0.0
    %v1911 = vmax.f32 %v1798, 0.0
    %v1912 = vmax.f32 %v1802, 0.0
    %v1913 = vmax.f32 %v1804, 0.0
    %v1914 = vmax.f32 %v1806, 0.0
    %v1915 = vmax.f32 %v1808, 0.0
    %v1916 = vmax.f32 %v1812, 0.0
    %v1917 = vmax.f32 %v1814, 0.0
    %v1918 = vmax.f32 %v1816, 0.0
    %v1919 = vmax.f32 %v1818, 0.0
    %v1920 = vmax.f32 %v1822, 0.0
    %v1921 = vmax.f32 %v1824, 0.0
    %v1922 = vmax.f32 %v1826, 0.0
    %v1923 = vmax.f32 %v1828, 0.0
    %v1924 = vmax.f32 %v1832, 0.0
    %v1925 = vmax.f32 %v1834, 0.0
    %v1926 = vmax.f32 %v1836, 0.0
    %v1927 = vmax.f32 %v1838, 0.0
    %v1928 = vmax.f32 %v1842, 0.0
    %v1929 = vmax.f32 %v1844, 0.0
    %v1930 = vmax.f32 %v1846, 0.0
    %v1931 = vmax.f32 %v1848, 0.0
    %v1932 = vmax.f32 %v1852, 0.0
    %v1933 = vmax.f32 %v1854, 0.0
    %v1934 = vmax.f32 %v1856, 0.0
    %v1935 = vmax.f32 %v1858, 0.0
    %v1936 = vmax.f32 %v1862, 0.0
    %v1937 = vmax.f32 %v1864, 0.0
    %v1938 = vmax.f32 %v1866, 0.0
    %v1939 = vmax.f32 %v1868, 0.0
    %v1940 = vmax.f32 %v1872, 0.0
    %v1941 = vmax.f32 %v1874, 0.0
    %v1942 = vmax.f32 %v1876, 0.0
    %v1943 = vmax.f32 %v1878, 0.0
    %v1944 = vpack.c.bf16 %v1882, %v1880
    %v1945 = vpack.c.bf16 %v1883, %v1881
    %v1946 = vpack.c.bf16 %v1886, %v1884
    %v1947 = vpack.c.bf16 %v1887, %v1885
    %v1948 = vpack.c.bf16 %v1890, %v1888
    %v1949 = vpack.c.bf16 %v1891, %v1889
    %v1950 = vpack.c.bf16 %v1894, %v1892
    %v1951 = vpack.c.bf16 %v1895, %v1893
    %v1952 = vpack.c.bf16 %v1898, %v1896
    %v1953 = vpack.c.bf16 %v1899, %v1897
    %v1954 = vpack.c.bf16 %v1902, %v1900
    %v1955 = vpack.c.bf16 %v1903, %v1901
    %v1956 = vpack.c.bf16 %v1906, %v1904
    %v1957 = vpack.c.bf16 %v1907, %v1905
    %v1958 = vpack.c.bf16 %v1910, %v1908
    %v1959 = vpack.c.bf16 %v1911, %v1909
    %v1960 = vpack.c.bf16 %v1914, %v1912
    %v1961 = vpack.c.bf16 %v1915, %v1913
    %v1962 = vpack.c.bf16 %v1918, %v1916
    %v1963 = vpack.c.bf16 %v1919, %v1917
    %v1964 = vpack.c.bf16 %v1922, %v1920
    %v1965 = vpack.c.bf16 %v1923, %v1921
    %v1966 = vpack.c.bf16 %v1926, %v1924
    %v1967 = vpack.c.bf16 %v1927, %v1925
    %v1968 = vpack.c.bf16 %v1930, %v1928
    %v1969 = vpack.c.bf16 %v1931, %v1929
    %v1970 = vpack.c.bf16 %v1934, %v1932
    %v1971 = vpack.c.bf16 %v1935, %v1933
    %v1972 = vpack.c.bf16 %v1938, %v1936
    %v1973 = vpack.c.bf16 %v1939, %v1937
    %v1974 = vpack.c.bf16 %v1942, %v1940
    %v1975 = vpack.c.bf16 %v1943, %v1941
    %s1976 = scalar_lea.vmem %s2, 768
    %v1977 = vld [vmem:[%s1976] sm:$0xff]
    %v1978 = vld [vmem:[%s1976 + $0x8] sm:$0xff]
    %v1979 = vld [vmem:[%s1976 + $0x10] sm:$0xff]
    %v1980 = vld [vmem:[%s1976 + $0x18] sm:$0xff]
    %v1981 = vld [vmem:[%s1976 + $0x20] sm:$0xff]
    %v1982 = vld [vmem:[%s1976 + $0x28] sm:$0xff]
    %v1983 = vld [vmem:[%s1976 + $0x30] sm:$0xff]
    %v1984 = vld [vmem:[%s1976 + $0x38] sm:$0xff]
    %v1985 = vld [vmem:[%s1976 + $0x40] sm:$0xff]
    %v1986 = vld [vmem:[%s1976 + $0x48] sm:$0xff]
    %v1987 = vld [vmem:[%s1976 + $0x50] sm:$0xff]
    %v1988 = vld [vmem:[%s1976 + $0x58] sm:$0xff]
    %v1989 = vld [vmem:[%s1976 + $0x60] sm:$0xff]
    %v1990 = vld [vmem:[%s1976 + $0x68] sm:$0xff]
    %v1991 = vld [vmem:[%s1976 + $0x70] sm:$0xff]
    %v1992 = vld [vmem:[%s1976 + $0x78] sm:$0xff]
    %v1993 = vld [vmem:[%s1976 + $0x80] sm:$0xff]
    %v1994 = vld [vmem:[%s1976 + $0x88] sm:$0xff]
    %v1995 = vld [vmem:[%s1976 + $0x90] sm:$0xff]
    %v1996 = vld [vmem:[%s1976 + $0x98] sm:$0xff]
    %v1997 = vld [vmem:[%s1976 + $0xa0] sm:$0xff]
    %v1998 = vld [vmem:[%s1976 + $0xa8] sm:$0xff]
    %v1999 = vld [vmem:[%s1976 + $0xb0] sm:$0xff]
    %v2000 = vld [vmem:[%s1976 + $0xb8] sm:$0xff]
    %v2001 = vld [vmem:[%s1976 + $0xc0] sm:$0xff]
    %v2002 = vld [vmem:[%s1976 + $0xc8] sm:$0xff]
    %v2003 = vld [vmem:[%s1976 + $0xd0] sm:$0xff]
    %v2004 = vld [vmem:[%s1976 + $0xd8] sm:$0xff]
    %v2005 = vld [vmem:[%s1976 + $0xe0] sm:$0xff]
    %v2006 = vld [vmem:[%s1976 + $0xe8] sm:$0xff]
    %v2007 = vld [vmem:[%s1976 + $0xf0] sm:$0xff]
    %v2008 = vld [vmem:[%s1976 + $0xf8] sm:$0xff]
    %s2009 = scalar_lea.vmem %s3, 4
    %v2010 = vld [vmem:[%s2009] ss:$8 sm:$0x3]
    %v2012 = vlaneseq
    %v2013 = vshrl.u32 %v2012, 7
    %v2014 = vsub.s32 0, %v2013
    %v2015 = vrot.slane %v2010, %v2014
    %v2016 = vlaneseq
    %v2017 = vshrl.u32 %v2016, 7
    %v2018 = vsub.s32 1, %v2017
    %v2019 = vrot.slane %v2010, %v2018
    %v2054 = vunpack.c.l.b16 %v1977
    %v2055 = vunpack.c.h.b16 %v1977
    %v2056 = vunpack.c.l.b16 %v1978
    %v2057 = vunpack.c.h.b16 %v1978
    %v2058 = vunpack.c.l.b16 %v1979
    %v2059 = vunpack.c.h.b16 %v1979
    %v2060 = vunpack.c.l.b16 %v1980
    %v2061 = vunpack.c.h.b16 %v1980
    %v2062 = vunpack.c.l.b16 %v1981
    %v2063 = vunpack.c.h.b16 %v1981
    %v2064 = vunpack.c.l.b16 %v1982
    %v2065 = vunpack.c.h.b16 %v1982
    %v2066 = vunpack.c.l.b16 %v1983
    %v2067 = vunpack.c.h.b16 %v1983
    %v2068 = vunpack.c.l.b16 %v1984
    %v2069 = vunpack.c.h.b16 %v1984
    %v2070 = vunpack.c.l.b16 %v1985
    %v2071 = vunpack.c.h.b16 %v1985
    %v2072 = vunpack.c.l.b16 %v1986
    %v2073 = vunpack.c.h.b16 %v1986
    %v2074 = vunpack.c.l.b16 %v1987
    %v2075 = vunpack.c.h.b16 %v1987
    %v2076 = vunpack.c.l.b16 %v1988
    %v2077 = vunpack.c.h.b16 %v1988
    %v2078 = vunpack.c.l.b16 %v1989
    %v2079 = vunpack.c.h.b16 %v1989
    %v2080 = vunpack.c.l.b16 %v1990
    %v2081 = vunpack.c.h.b16 %v1990
    %v2082 = vunpack.c.l.b16 %v1991
    %v2083 = vunpack.c.h.b16 %v1991
    %v2084 = vunpack.c.l.b16 %v1992
    %v2085 = vunpack.c.h.b16 %v1992
    %v2086 = vunpack.c.l.b16 %v1993
    %v2087 = vunpack.c.h.b16 %v1993
    %v2088 = vunpack.c.l.b16 %v1994
    %v2089 = vunpack.c.h.b16 %v1994
    %v2090 = vunpack.c.l.b16 %v1995
    %v2091 = vunpack.c.h.b16 %v1995
    %v2092 = vunpack.c.l.b16 %v1996
    %v2093 = vunpack.c.h.b16 %v1996
    %v2094 = vunpack.c.l.b16 %v1997
    %v2095 = vunpack.c.h.b16 %v1997
    %v2096 = vunpack.c.l.b16 %v1998
    %v2097 = vunpack.c.h.b16 %v1998
    %v2098 = vunpack.c.l.b16 %v1999
    %v2099 = vunpack.c.h.b16 %v1999
    %v2100 = vunpack.c.l.b16 %v2000
    %v2101 = vunpack.c.h.b16 %v2000
    %v2102 = vunpack.c.l.b16 %v2001
    %v2103 = vunpack.c.h.b16 %v2001
    %v2104 = vunpack.c.l.b16 %v2002
    %v2105 = vunpack.c.h.b16 %v2002
    %v2106 = vunpack.c.l.b16 %v2003
    %v2107 = vunpack.c.h.b16 %v2003
    %v2108 = vunpack.c.l.b16 %v2004
    %v2109 = vunpack.c.h.b16 %v2004
    %v2110 = vunpack.c.l.b16 %v2005
    %v2111 = vunpack.c.h.b16 %v2005
    %v2112 = vunpack.c.l.b16 %v2006
    %v2113 = vunpack.c.h.b16 %v2006
    %v2114 = vunpack.c.l.b16 %v2007
    %v2115 = vunpack.c.h.b16 %v2007
    %v2116 = vunpack.c.l.b16 %v2008
    %v2117 = vunpack.c.h.b16 %v2008
    %v2118 = vpack.c.b16 %v2056, %v2054
    %v2119 = vpack.c.b16 %v2057, %v2055
    %v2120 = vpack.c.b16 %v2060, %v2058
    %v2121 = vpack.c.b16 %v2061, %v2059
    %v2122 = vpack.c.b16 %v2064, %v2062
    %v2123 = vpack.c.b16 %v2065, %v2063
    %v2124 = vpack.c.b16 %v2068, %v2066
    %v2125 = vpack.c.b16 %v2069, %v2067
    %v2126 = vpack.c.b16 %v2072, %v2070
    %v2127 = vpack.c.b16 %v2073, %v2071
    %v2128 = vpack.c.b16 %v2076, %v2074
    %v2129 = vpack.c.b16 %v2077, %v2075
    %v2130 = vpack.c.b16 %v2080, %v2078
    %v2131 = vpack.c.b16 %v2081, %v2079
    %v2132 = vpack.c.b16 %v2084, %v2082
    %v2133 = vpack.c.b16 %v2085, %v2083
    %v2134 = vpack.c.b16 %v2088, %v2086
    %v2135 = vpack.c.b16 %v2089, %v2087
    %v2136 = vpack.c.b16 %v2092, %v2090
    %v2137 = vpack.c.b16 %v2093, %v2091
    %v2138 = vpack.c.b16 %v2096, %v2094
    %v2139 = vpack.c.b16 %v2097, %v2095
    %v2140 = vpack.c.b16 %v2100, %v2098
    %v2141 = vpack.c.b16 %v2101, %v2099
    %v2142 = vpack.c.b16 %v2104, %v2102
    %v2143 = vpack.c.b16 %v2105, %v2103
    %v2144 = vpack.c.b16 %v2108, %v2106
    %v2145 = vpack.c.b16 %v2109, %v2107
    %v2146 = vpack.c.b16 %v2112, %v2110
    %v2147 = vpack.c.b16 %v2113, %v2111
    %v2148 = vpack.c.b16 %v2116, %v2114
    %v2149 = vpack.c.b16 %v2117, %v2115
    %2182 = vmatprep.subr.bf16.mxu0 %v2119
    %2183 = vmatpush1.bf16.msra.mxu0 %v2118
    %2184 = vmatprep.subr.bf16.mxu0 %v2121
    %2185 = vmatpush1.bf16.msra.mxu0 %v2120
    %2186 = vmatprep.subr.bf16.mxu0 %v2123
    %2187 = vmatpush1.bf16.msra.mxu0 %v2122
    %2188 = vmatprep.subr.bf16.mxu0 %v2125
    %2189 = vmatpush1.bf16.msra.mxu0 %v2124
    %2190 = vmatprep.subr.bf16.mxu0 %v2127
    %2191 = vmatpush1.bf16.msra.mxu0 %v2126
    %2192 = vmatprep.subr.bf16.mxu0 %v2129
    %2193 = vmatpush1.bf16.msra.mxu0 %v2128
    %2194 = vmatprep.subr.bf16.mxu0 %v2131
    %2195 = vmatpush1.bf16.msra.mxu0 %v2130
    %2196 = vmatprep.subr.bf16.mxu0 %v2133
    %2197 = vmatpush1.bf16.msra.mxu0 %v2132
    %2198 = vmatprep.subr.bf16.mxu0 %v2135
    %2199 = vmatpush1.bf16.msra.mxu0 %v2134
    %2200 = vmatprep.subr.bf16.mxu0 %v2137
    %2201 = vmatpush1.bf16.msra.mxu0 %v2136
    %2202 = vmatprep.subr.bf16.mxu0 %v2139
    %2203 = vmatpush1.bf16.msra.mxu0 %v2138
    %2204 = vmatprep.subr.bf16.mxu0 %v2141
    %2205 = vmatpush1.bf16.msra.mxu0 %v2140
    %2206 = vmatprep.subr.bf16.mxu0 %v2143
    %2207 = vmatpush1.bf16.msra.mxu0 %v2142
    %2208 = vmatprep.subr.bf16.mxu0 %v2145
    %2209 = vmatpush1.bf16.msra.mxu0 %v2144
    %2210 = vmatprep.subr.bf16.mxu0 %v2147
    %2211 = vmatpush1.bf16.msra.mxu0 %v2146
    %2212 = vmatprep.subr.bf16.mxu0 %v2149
    %2213 = vmatpush1.bf16.msra.mxu0 %v2148
    %2214 = vmatprep.mubr.bf16.mxu0 %v1945
    %2215 = vmatmul.mubr.bf16.gmra.mrb[0].mxu0 %v1944
    %v2216 = vpop.f32.mrb[0].mxu0
    %v2217 = vadd.f32 %v2015, %v2216
    %v2218 = vpop.f32.mrb[0].mxu0
    %v2219 = vadd.f32 %v2019, %v2218
    %v2220 = vpop.f32.mrb[0].mxu0
    %v2221 = vadd.f32 %v2015, %v2220
    %v2222 = vpop.f32.mrb[0].mxu0
    %v2223 = vadd.f32 %v2019, %v2222
    %2224 = vmatprep.mubr.bf16.mxu0 %v1947
    %2225 = vmatmul.mubr.bf16.gmra.mrb[0].mxu0 %v1946
    %v2226 = vpop.f32.mrb[0].mxu0
    %v2227 = vadd.f32 %v2015, %v2226
    %v2228 = vpop.f32.mrb[0].mxu0
    %v2229 = vadd.f32 %v2019, %v2228
    %v2230 = vpop.f32.mrb[0].mxu0
    %v2231 = vadd.f32 %v2015, %v2230
    %v2232 = vpop.f32.mrb[0].mxu0
    %v2233 = vadd.f32 %v2019, %v2232
    %2234 = vmatprep.mubr.bf16.mxu0 %v1949
    %2235 = vmatmul.mubr.bf16.gmra.mrb[0].mxu0 %v1948
    %v2236 = vpop.f32.mrb[0].mxu0
    %v2237 = vadd.f32 %v2015, %v2236
    %v2238 = vpop.f32.mrb[0].mxu0
    %v2239 = vadd.f32 %v2019, %v2238
    %v2240 = vpop.f32.mrb[0].mxu0
    %v2241 = vadd.f32 %v2015, %v2240
    %v2242 = vpop.f32.mrb[0].mxu0
    %v2243 = vadd.f32 %v2019, %v2242
    %2244 = vmatprep.mubr.bf16.mxu0 %v1951
    %2245 = vmatmul.mubr.bf16.gmra.mrb[0].mxu0 %v1950
    %v2246 = vpop.f32.mrb[0].mxu0
    %v2247 = vadd.f32 %v2015, %v2246
    %v2248 = vpop.f32.mrb[0].mxu0
    %v2249 = vadd.f32 %v2019, %v2248
    %v2250 = vpop.f32.mrb[0].mxu0
    %v2251 = vadd.f32 %v2015, %v2250
    %v2252 = vpop.f32.mrb[0].mxu0
    %v2253 = vadd.f32 %v2019, %v2252
    %2254 = vmatprep.mubr.bf16.mxu0 %v1953
    %2255 = vmatmul.mubr.bf16.gmra.mrb[0].mxu0 %v1952
    %v2256 = vpop.f32.mrb[0].mxu0
    %v2257 = vadd.f32 %v2015, %v2256
    %v2258 = vpop.f32.mrb[0].mxu0
    %v2259 = vadd.f32 %v2019, %v2258
    %v2260 = vpop.f32.mrb[0].mxu0
    %v2261 = vadd.f32 %v2015, %v2260
    %v2262 = vpop.f32.mrb[0].mxu0
    %v2263 = vadd.f32 %v2019, %v2262
    %2264 = vmatprep.mubr.bf16.mxu0 %v1955
    %2265 = vmatmul.mubr.bf16.gmra.mrb[0].mxu0 %v1954
    %v2266 = vpop.f32.mrb[0].mxu0
    %v2267 = vadd.f32 %v2015, %v2266
    %v2268 = vpop.f32.mrb[0].mxu0
    %v2269 = vadd.f32 %v2019, %v2268
    %v2270 = vpop.f32.mrb[0].mxu0
    %v2271 = vadd.f32 %v2015, %v2270
    %v2272 = vpop.f32.mrb[0].mxu0
    %v2273 = vadd.f32 %v2019, %v2272
    %2274 = vmatprep.mubr.bf16.mxu0 %v1957
    %2275 = vmatmul.mubr.bf16.gmra.mrb[0].mxu0 %v1956
    %v2276 = vpop.f32.mrb[0].mxu0
    %v2277 = vadd.f32 %v2015, %v2276
    %v2278 = vpop.f32.mrb[0].mxu0
    %v2279 = vadd.f32 %v2019, %v2278
    %v2280 = vpop.f32.mrb[0].mxu0
    %v2281 = vadd.f32 %v2015, %v2280
    %v2282 = vpop.f32.mrb[0].mxu0
    %v2283 = vadd.f32 %v2019, %v2282
    %2284 = vmatprep.mubr.bf16.mxu0 %v1959
    %2285 = vmatmul.mubr.bf16.gmra.mrb[0].mxu0 %v1958
    %v2286 = vpop.f32.mrb[0].mxu0
    %v2287 = vadd.f32 %v2015, %v2286
    %v2288 = vpop.f32.mrb[0].mxu0
    %v2289 = vadd.f32 %v2019, %v2288
    %v2290 = vpop.f32.mrb[0].mxu0
    %v2291 = vadd.f32 %v2015, %v2290
    %v2292 = vpop.f32.mrb[0].mxu0
    %v2293 = vadd.f32 %v2019, %v2292
    %2294 = vmatprep.mubr.bf16.mxu0 %v1961
    %2295 = vmatmul.mubr.bf16.gmra.mrb[0].mxu0 %v1960
    %v2296 = vpop.f32.mrb[0].mxu0
    %v2297 = vadd.f32 %v2015, %v2296
    %v2298 = vpop.f32.mrb[0].mxu0
    %v2299 = vadd.f32 %v2019, %v2298
    %v2300 = vpop.f32.mrb[0].mxu0
    %v2301 = vadd.f32 %v2015, %v2300
    %v2302 = vpop.f32.mrb[0].mxu0
    %v2303 = vadd.f32 %v2019, %v2302
    %2304 = vmatprep.mubr.bf16.mxu0 %v1963
    %2305 = vmatmul.mubr.bf16.gmra.mrb[0].mxu0 %v1962
    %v2306 = vpop.f32.mrb[0].mxu0
    %v2307 = vadd.f32 %v2015, %v2306
    %v2308 = vpop.f32.mrb[0].mxu0
    %v2309 = vadd.f32 %v2019, %v2308
    %v2310 = vpop.f32.mrb[0].mxu0
    %v2311 = vadd.f32 %v2015, %v2310
    %v2312 = vpop.f32.mrb[0].mxu0
    %v2313 = vadd.f32 %v2019, %v2312
    %2314 = vmatprep.mubr.bf16.mxu0 %v1965
    %2315 = vmatmul.mubr.bf16.gmra.mrb[0].mxu0 %v1964
    %v2316 = vpop.f32.mrb[0].mxu0
    %v2317 = vadd.f32 %v2015, %v2316
    %v2318 = vpop.f32.mrb[0].mxu0
    %v2319 = vadd.f32 %v2019, %v2318
    %v2320 = vpop.f32.mrb[0].mxu0
    %v2321 = vadd.f32 %v2015, %v2320
    %v2322 = vpop.f32.mrb[0].mxu0
    %v2323 = vadd.f32 %v2019, %v2322
    %2324 = vmatprep.mubr.bf16.mxu0 %v1967
    %2325 = vmatmul.mubr.bf16.gmra.mrb[0].mxu0 %v1966
    %v2326 = vpop.f32.mrb[0].mxu0
    %v2327 = vadd.f32 %v2015, %v2326
    %v2328 = vpop.f32.mrb[0].mxu0
    %v2329 = vadd.f32 %v2019, %v2328
    %v2330 = vpop.f32.mrb[0].mxu0
    %v2331 = vadd.f32 %v2015, %v2330
    %v2332 = vpop.f32.mrb[0].mxu0
    %v2333 = vadd.f32 %v2019, %v2332
    %2334 = vmatprep.mubr.bf16.mxu0 %v1969
    %2335 = vmatmul.mubr.bf16.gmra.mrb[0].mxu0 %v1968
    %v2336 = vpop.f32.mrb[0].mxu0
    %v2337 = vadd.f32 %v2015, %v2336
    %v2338 = vpop.f32.mrb[0].mxu0
    %v2339 = vadd.f32 %v2019, %v2338
    %v2340 = vpop.f32.mrb[0].mxu0
    %v2341 = vadd.f32 %v2015, %v2340
    %v2342 = vpop.f32.mrb[0].mxu0
    %v2343 = vadd.f32 %v2019, %v2342
    %2344 = vmatprep.mubr.bf16.mxu0 %v1971
    %2345 = vmatmul.mubr.bf16.gmra.mrb[0].mxu0 %v1970
    %v2346 = vpop.f32.mrb[0].mxu0
    %v2347 = vadd.f32 %v2015, %v2346
    %v2348 = vpop.f32.mrb[0].mxu0
    %v2349 = vadd.f32 %v2019, %v2348
    %v2350 = vpop.f32.mrb[0].mxu0
    %v2351 = vadd.f32 %v2015, %v2350
    %v2352 = vpop.f32.mrb[0].mxu0
    %v2353 = vadd.f32 %v2019, %v2352
    %2354 = vmatprep.mubr.bf16.mxu0 %v1973
    %2355 = vmatmul.mubr.bf16.gmra.mrb[0].mxu0 %v1972
    %v2356 = vpop.f32.mrb[0].mxu0
    %v2357 = vadd.f32 %v2015, %v2356
    %v2358 = vpop.f32.mrb[0].mxu0
    %v2359 = vadd.f32 %v2019, %v2358
    %v2360 = vpop.f32.mrb[0].mxu0
    %v2361 = vadd.f32 %v2015, %v2360
    %v2362 = vpop.f32.mrb[0].mxu0
    %v2363 = vadd.f32 %v2019, %v2362
    %2364 = vmatprep.mubr.bf16.mxu0 %v1975
    %2365 = vmatmul.mubr.bf16.gmra.mrb[0].mxu0 %v1974
    %v2366 = vpop.f32.mrb[0].mxu0
    %v2367 = vadd.f32 %v2015, %v2366
    %v2368 = vpop.f32.mrb[0].mxu0
    %v2369 = vadd.f32 %v2019, %v2368
    %v2370 = vpop.f32.mrb[0].mxu0
    %v2371 = vadd.f32 %v2015, %v2370
    %v2372 = vpop.f32.mrb[0].mxu0
    %v2373 = vadd.f32 %v2019, %v2372
    %2374 = vdwg.mxu0
    %s2375 = scalar_lea.vmem %s1, 64
    %v2376 = vld [vmem:[%s2375] sm:$0xff]
    %v2377 = vld [vmem:[%s2375 + $0x8] sm:$0xff]
    %v2378 = vld [vmem:[%s2375 + $0x10] sm:$0xff]
    %v2379 = vld [vmem:[%s2375 + $0x18] sm:$0xff]
    %v2380 = vld [vmem:[%s2375 + $0x20] sm:$0xff]
    %v2381 = vld [vmem:[%s2375 + $0x28] sm:$0xff]
    %v2382 = vld [vmem:[%s2375 + $0x30] sm:$0xff]
    %v2383 = vld [vmem:[%s2375 + $0x38] sm:$0xff]
    %v2392 = vunpack.c.l.b16 %v2376
    %v2393 = vunpack.c.h.b16 %v2376
    %v2394 = vunpack.c.l.b16 %v2377
    %v2395 = vunpack.c.h.b16 %v2377
    %v2396 = vunpack.c.l.b16 %v2378
    %v2397 = vunpack.c.h.b16 %v2378
    %v2398 = vunpack.c.l.b16 %v2379
    %v2399 = vunpack.c.h.b16 %v2379
    %v2400 = vunpack.c.l.b16 %v2380
    %v2401 = vunpack.c.h.b16 %v2380
    %v2402 = vunpack.c.l.b16 %v2381
    %v2403 = vunpack.c.h.b16 %v2381
    %v2404 = vunpack.c.l.b16 %v2382
    %v2405 = vunpack.c.h.b16 %v2382
    %v2406 = vunpack.c.l.b16 %v2383
    %v2407 = vunpack.c.h.b16 %v2383
    %v2408 = vpack.c.b16 %v2394, %v2392
    %v2409 = vpack.c.b16 %v2395, %v2393
    %v2410 = vpack.c.b16 %v2398, %v2396
    %v2411 = vpack.c.b16 %v2399, %v2397
    %v2412 = vpack.c.b16 %v2402, %v2400
    %v2413 = vpack.c.b16 %v2403, %v2401
    %v2414 = vpack.c.b16 %v2406, %v2404
    %v2415 = vpack.c.b16 %v2407, %v2405
    %v2423 = vand.u32 %v2414, %v196
    %v2426 = vand.u32 %v2415, %v196
    %2428 = vmatprep.subr.bf16.mxu0 %v2409
    %2429 = vmatpush1.bf16.msra.mxu0 %v2408
    %2430 = vmatprep.subr.bf16.mxu0 %v2411
    %2431 = vmatpush1.bf16.msra.mxu0 %v2410
    %2432 = vmatprep.subr.bf16.mxu0 %v2413
    %2433 = vmatpush1.bf16.msra.mxu0 %v2412
    %2434 = vmatprep.subr.bf16.mxu0 %v2426
    %2435 = vmatpush1.bf16.msra.mxu0 %v2423
    %2436 = vmatprep.subr.bf16.mxu0 0
    %2437 = vmatpush1.bf16.msra.mxu0 0
    %2438 = vmatprep.subr.bf16.mxu0 0
    %2439 = vmatpush1.bf16.msra.mxu0 0
    %2440 = vmatprep.subr.bf16.mxu0 0
    %2441 = vmatpush1.bf16.msra.mxu0 0
    %2442 = vmatprep.subr.bf16.mxu0 0
    %2443 = vmatpush1.bf16.msra.mxu0 0
    %2444 = vmatprep.subr.bf16.mxu0 0
    %2445 = vmatpush1.bf16.msra.mxu0 0
    %2446 = vmatprep.subr.bf16.mxu0 0
    %2447 = vmatpush1.bf16.msra.mxu0 0
    %2448 = vmatprep.subr.bf16.mxu0 0
    %2449 = vmatpush1.bf16.msra.mxu0 0
    %2450 = vmatprep.subr.bf16.mxu0 0
    %2451 = vmatpush1.bf16.msra.mxu0 0
    %2452 = vmatprep.subr.bf16.mxu0 0
    %2453 = vmatpush1.bf16.msra.mxu0 0
    %2454 = vmatprep.subr.bf16.mxu0 0
    %2455 = vmatpush1.bf16.msra.mxu0 0
    %2456 = vmatprep.subr.bf16.mxu0 0
    %2457 = vmatpush1.bf16.msra.mxu0 0
    %2458 = vmatprep.subr.bf16.mxu0 0
    %2459 = vmatpush1.bf16.msra.mxu0 0
    %2460 = vmatprep.mubr.bf16.mxu0 0
    %2461 = vmatmul.mubr.bf16.gmra.mrb[0].mxu0 %v146
    %v2462 = vpop.f32.mrb[0].mxu0
    %v2463 = vadd.f32 0.0, %v2462
    %v2464 = vpop.f32.mrb[0].mxu0
    %v2465 = vadd.f32 0.0, %v2464
    %v2466 = vpop.f32.mrb[0].mxu0
    %v2467 = vadd.f32 0.0, %v2466
    %v2468 = vpop.f32.mrb[0].mxu0
    %v2469 = vadd.f32 0.0, %v2468
    %2470 = vmatprep.mubr.bf16.mxu0 0
    %2471 = vmatmul.mubr.bf16.gmra.mrb[0].mxu0 %v149
    %v2472 = vpop.f32.mrb[0].mxu0
    %v2473 = vadd.f32 0.0, %v2472
    %v2474 = vpop.f32.mrb[0].mxu0
    %v2475 = vadd.f32 0.0, %v2474
    %v2476 = vpop.f32.mrb[0].mxu0
    %v2477 = vadd.f32 0.0, %v2476
    %v2478 = vpop.f32.mrb[0].mxu0
    %v2479 = vadd.f32 0.0, %v2478
    %2480 = vmatprep.mubr.bf16.mxu0 0
    %2481 = vmatmul.mubr.bf16.gmra.mrb[0].mxu0 %v152
    %v2482 = vpop.f32.mrb[0].mxu0
    %v2483 = vadd.f32 0.0, %v2482
    %v2484 = vpop.f32.mrb[0].mxu0
    %v2485 = vadd.f32 0.0, %v2484
    %v2486 = vpop.f32.mrb[0].mxu0
    %v2487 = vadd.f32 0.0, %v2486
    %v2488 = vpop.f32.mrb[0].mxu0
    %v2489 = vadd.f32 0.0, %v2488
    %2490 = vmatprep.mubr.bf16.mxu0 0
    %2491 = vmatmul.mubr.bf16.gmra.mrb[0].mxu0 %v155
    %v2492 = vpop.f32.mrb[0].mxu0
    %v2493 = vadd.f32 0.0, %v2492
    %v2494 = vpop.f32.mrb[0].mxu0
    %v2495 = vadd.f32 0.0, %v2494
    %v2496 = vpop.f32.mrb[0].mxu0
    %v2497 = vadd.f32 0.0, %v2496
    %v2498 = vpop.f32.mrb[0].mxu0
    %v2499 = vadd.f32 0.0, %v2498
    %2500 = vmatprep.mubr.bf16.mxu0 0
    %2501 = vmatmul.mubr.bf16.gmra.mrb[0].mxu0 %v158
    %v2502 = vpop.f32.mrb[0].mxu0
    %v2503 = vadd.f32 0.0, %v2502
    %v2504 = vpop.f32.mrb[0].mxu0
    %v2505 = vadd.f32 0.0, %v2504
    %v2506 = vpop.f32.mrb[0].mxu0
    %v2507 = vadd.f32 0.0, %v2506
    %v2508 = vpop.f32.mrb[0].mxu0
    %v2509 = vadd.f32 0.0, %v2508
    %2510 = vmatprep.mubr.bf16.mxu0 0
    %2511 = vmatmul.mubr.bf16.gmra.mrb[0].mxu0 %v161
    %v2512 = vpop.f32.mrb[0].mxu0
    %v2513 = vadd.f32 0.0, %v2512
    %v2514 = vpop.f32.mrb[0].mxu0
    %v2515 = vadd.f32 0.0, %v2514
    %v2516 = vpop.f32.mrb[0].mxu0
    %v2517 = vadd.f32 0.0, %v2516
    %v2518 = vpop.f32.mrb[0].mxu0
    %v2519 = vadd.f32 0.0, %v2518
    %2520 = vmatprep.mubr.bf16.mxu0 0
    %2521 = vmatmul.mubr.bf16.gmra.mrb[0].mxu0 %v164
    %v2522 = vpop.f32.mrb[0].mxu0
    %v2523 = vadd.f32 0.0, %v2522
    %v2524 = vpop.f32.mrb[0].mxu0
    %v2525 = vadd.f32 0.0, %v2524
    %v2526 = vpop.f32.mrb[0].mxu0
    %v2527 = vadd.f32 0.0, %v2526
    %v2528 = vpop.f32.mrb[0].mxu0
    %v2529 = vadd.f32 0.0, %v2528
    %2530 = vmatprep.mubr.bf16.mxu0 0
    %2531 = vmatmul.mubr.bf16.gmra.mrb[0].mxu0 %v167
    %v2532 = vpop.f32.mrb[0].mxu0
    %v2533 = vadd.f32 0.0, %v2532
    %v2534 = vpop.f32.mrb[0].mxu0
    %v2535 = vadd.f32 0.0, %v2534
    %v2536 = vpop.f32.mrb[0].mxu0
    %v2537 = vadd.f32 0.0, %v2536
    %v2538 = vpop.f32.mrb[0].mxu0
    %v2539 = vadd.f32 0.0, %v2538
    %2540 = vmatprep.mubr.bf16.mxu0 0
    %2541 = vmatmul.mubr.bf16.gmra.mrb[0].mxu0 %v170
    %v2542 = vpop.f32.mrb[0].mxu0
    %v2543 = vadd.f32 0.0, %v2542
    %v2544 = vpop.f32.mrb[0].mxu0
    %v2545 = vadd.f32 0.0, %v2544
    %v2546 = vpop.f32.mrb[0].mxu0
    %v2547 = vadd.f32 0.0, %v2546
    %v2548 = vpop.f32.mrb[0].mxu0
    %v2549 = vadd.f32 0.0, %v2548
    %2550 = vmatprep.mubr.bf16.mxu0 0
    %2551 = vmatmul.mubr.bf16.gmra.mrb[0].mxu0 %v173
    %v2552 = vpop.f32.mrb[0].mxu0
    %v2553 = vadd.f32 0.0, %v2552
    %v2554 = vpop.f32.mrb[0].mxu0
    %v2555 = vadd.f32 0.0, %v2554
    %v2556 = vpop.f32.mrb[0].mxu0
    %v2557 = vadd.f32 0.0, %v2556
    %v2558 = vpop.f32.mrb[0].mxu0
    %v2559 = vadd.f32 0.0, %v2558
    %2560 = vmatprep.mubr.bf16.mxu0 0
    %2561 = vmatmul.mubr.bf16.gmra.mrb[0].mxu0 %v176
    %v2562 = vpop.f32.mrb[0].mxu0
    %v2563 = vadd.f32 0.0, %v2562
    %v2564 = vpop.f32.mrb[0].mxu0
    %v2565 = vadd.f32 0.0, %v2564
    %v2566 = vpop.f32.mrb[0].mxu0
    %v2567 = vadd.f32 0.0, %v2566
    %v2568 = vpop.f32.mrb[0].mxu0
    %v2569 = vadd.f32 0.0, %v2568
    %2570 = vmatprep.mubr.bf16.mxu0 0
    %2571 = vmatmul.mubr.bf16.gmra.mrb[0].mxu0 %v179
    %v2572 = vpop.f32.mrb[0].mxu0
    %v2573 = vadd.f32 0.0, %v2572
    %v2574 = vpop.f32.mrb[0].mxu0
    %v2575 = vadd.f32 0.0, %v2574
    %v2576 = vpop.f32.mrb[0].mxu0
    %v2577 = vadd.f32 0.0, %v2576
    %v2578 = vpop.f32.mrb[0].mxu0
    %v2579 = vadd.f32 0.0, %v2578
    %2580 = vmatprep.mubr.bf16.mxu0 0
    %2581 = vmatmul.mubr.bf16.gmra.mrb[0].mxu0 %v182
    %v2582 = vpop.f32.mrb[0].mxu0
    %v2583 = vadd.f32 0.0, %v2582
    %v2584 = vpop.f32.mrb[0].mxu0
    %v2585 = vadd.f32 0.0, %v2584
    %v2586 = vpop.f32.mrb[0].mxu0
    %v2587 = vadd.f32 0.0, %v2586
    %v2588 = vpop.f32.mrb[0].mxu0
    %v2589 = vadd.f32 0.0, %v2588
    %2590 = vmatprep.mubr.bf16.mxu0 0
    %2591 = vmatmul.mubr.bf16.gmra.mrb[0].mxu0 %v185
    %v2592 = vpop.f32.mrb[0].mxu0
    %v2593 = vadd.f32 0.0, %v2592
    %v2594 = vpop.f32.mrb[0].mxu0
    %v2595 = vadd.f32 0.0, %v2594
    %v2596 = vpop.f32.mrb[0].mxu0
    %v2597 = vadd.f32 0.0, %v2596
    %v2598 = vpop.f32.mrb[0].mxu0
    %v2599 = vadd.f32 0.0, %v2598
    %2600 = vmatprep.mubr.bf16.mxu0 0
    %2601 = vmatmul.mubr.bf16.gmra.mrb[0].mxu0 %v188
    %v2602 = vpop.f32.mrb[0].mxu0
    %v2603 = vadd.f32 0.0, %v2602
    %v2604 = vpop.f32.mrb[0].mxu0
    %v2605 = vadd.f32 0.0, %v2604
    %v2606 = vpop.f32.mrb[0].mxu0
    %v2607 = vadd.f32 0.0, %v2606
    %v2608 = vpop.f32.mrb[0].mxu0
    %v2609 = vadd.f32 0.0, %v2608
    %2610 = vmatprep.mubr.bf16.mxu0 0
    %2611 = vmatmul.mubr.bf16.gmra.mrb[0].mxu0 %v191
    %v2612 = vpop.f32.mrb[0].mxu0
    %v2613 = vadd.f32 0.0, %v2612
    %v2614 = vpop.f32.mrb[0].mxu0
    %v2615 = vadd.f32 0.0, %v2614
    %v2616 = vpop.f32.mrb[0].mxu0
    %v2617 = vadd.f32 0.0, %v2616
    %v2618 = vpop.f32.mrb[0].mxu0
    %v2619 = vadd.f32 0.0, %v2618
    %2620 = vdwg.mxu0
    %v2621 = vadd.f32 %v2217, %v2463
    %v2622 = vadd.f32 %v2219, %v2465
    %v2623 = vadd.f32 %v2221, %v2467
    %v2624 = vadd.f32 %v2223, %v2469
    %v2625 = vadd.f32 %v2227, %v2473
    %v2626 = vadd.f32 %v2229, %v2475
    %v2627 = vadd.f32 %v2231, %v2477
    %v2628 = vadd.f32 %v2233, %v2479
    %v2629 = vadd.f32 %v2237, %v2483
    %v2630 = vadd.f32 %v2239, %v2485
    %v2631 = vadd.f32 %v2241, %v2487
    %v2632 = vadd.f32 %v2243, %v2489
    %v2633 = vadd.f32 %v2247, %v2493
    %v2634 = vadd.f32 %v2249, %v2495
    %v2635 = vadd.f32 %v2251, %v2497
    %v2636 = vadd.f32 %v2253, %v2499
    %v2637 = vadd.f32 %v2257, %v2503
    %v2638 = vadd.f32 %v2259, %v2505
    %v2639 = vadd.f32 %v2261, %v2507
    %v2640 = vadd.f32 %v2263, %v2509
    %v2641 = vadd.f32 %v2267, %v2513
    %v2642 = vadd.f32 %v2269, %v2515
    %v2643 = vadd.f32 %v2271, %v2517
    %v2644 = vadd.f32 %v2273, %v2519
    %v2645 = vadd.f32 %v2277, %v2523
    %v2646 = vadd.f32 %v2279, %v2525
    %v2647 = vadd.f32 %v2281, %v2527
    %v2648 = vadd.f32 %v2283, %v2529
    %v2649 = vadd.f32 %v2287, %v2533
    %v2650 = vadd.f32 %v2289, %v2535
    %v2651 = vadd.f32 %v2291, %v2537
    %v2652 = vadd.f32 %v2293, %v2539
    %v2653 = vadd.f32 %v2297, %v2543
    %v2654 = vadd.f32 %v2299, %v2545
    %v2655 = vadd.f32 %v2301, %v2547
    %v2656 = vadd.f32 %v2303, %v2549
    %v2657 = vadd.f32 %v2307, %v2553
    %v2658 = vadd.f32 %v2309, %v2555
    %v2659 = vadd.f32 %v2311, %v2557
    %v2660 = vadd.f32 %v2313, %v2559
    %v2661 = vadd.f32 %v2317, %v2563
    %v2662 = vadd.f32 %v2319, %v2565
    %v2663 = vadd.f32 %v2321, %v2567
    %v2664 = vadd.f32 %v2323, %v2569
    %v2665 = vadd.f32 %v2327, %v2573
    %v2666 = vadd.f32 %v2329, %v2575
    %v2667 = vadd.f32 %v2331, %v2577
    %v2668 = vadd.f32 %v2333, %v2579
    %v2669 = vadd.f32 %v2337, %v2583
    %v2670 = vadd.f32 %v2339, %v2585
    %v2671 = vadd.f32 %v2341, %v2587
    %v2672 = vadd.f32 %v2343, %v2589
    %v2673 = vadd.f32 %v2347, %v2593
    %v2674 = vadd.f32 %v2349, %v2595
    %v2675 = vadd.f32 %v2351, %v2597
    %v2676 = vadd.f32 %v2353, %v2599
    %v2677 = vadd.f32 %v2357, %v2603
    %v2678 = vadd.f32 %v2359, %v2605
    %v2679 = vadd.f32 %v2361, %v2607
    %v2680 = vadd.f32 %v2363, %v2609
    %v2681 = vadd.f32 %v2367, %v2613
    %v2682 = vadd.f32 %v2369, %v2615
    %v2683 = vadd.f32 %v2371, %v2617
    %v2684 = vadd.f32 %v2373, %v2619
    %v2685 = vmax.f32 %v2621, 0.0
    %v2686 = vmax.f32 %v2622, 0.0
    %v2687 = vmax.f32 %v2623, 0.0
    %v2688 = vmax.f32 %v2624, 0.0
    %v2689 = vmax.f32 %v2625, 0.0
    %v2690 = vmax.f32 %v2626, 0.0
    %v2691 = vmax.f32 %v2627, 0.0
    %v2692 = vmax.f32 %v2628, 0.0
    %v2693 = vmax.f32 %v2629, 0.0
    %v2694 = vmax.f32 %v2630, 0.0
    %v2695 = vmax.f32 %v2631, 0.0
    %v2696 = vmax.f32 %v2632, 0.0
    %v2697 = vmax.f32 %v2633, 0.0
    %v2698 = vmax.f32 %v2634, 0.0
    %v2699 = vmax.f32 %v2635, 0.0
    %v2700 = vmax.f32 %v2636, 0.0
    %v2701 = vmax.f32 %v2637, 0.0
    %v2702 = vmax.f32 %v2638, 0.0
    %v2703 = vmax.f32 %v2639, 0.0
    %v2704 = vmax.f32 %v2640, 0.0
    %v2705 = vmax.f32 %v2641, 0.0
    %v2706 = vmax.f32 %v2642, 0.0
    %v2707 = vmax.f32 %v2643, 0.0
    %v2708 = vmax.f32 %v2644, 0.0
    %v2709 = vmax.f32 %v2645, 0.0
    %v2710 = vmax.f32 %v2646, 0.0
    %v2711 = vmax.f32 %v2647, 0.0
    %v2712 = vmax.f32 %v2648, 0.0
    %v2713 = vmax.f32 %v2649, 0.0
    %v2714 = vmax.f32 %v2650, 0.0
    %v2715 = vmax.f32 %v2651, 0.0
    %v2716 = vmax.f32 %v2652, 0.0
    %v2717 = vmax.f32 %v2653, 0.0
    %v2718 = vmax.f32 %v2654, 0.0
    %v2719 = vmax.f32 %v2655, 0.0
    %v2720 = vmax.f32 %v2656, 0.0
    %v2721 = vmax.f32 %v2657, 0.0
    %v2722 = vmax.f32 %v2658, 0.0
    %v2723 = vmax.f32 %v2659, 0.0
    %v2724 = vmax.f32 %v2660, 0.0
    %v2725 = vmax.f32 %v2661, 0.0
    %v2726 = vmax.f32 %v2662, 0.0
    %v2727 = vmax.f32 %v2663, 0.0
    %v2728 = vmax.f32 %v2664, 0.0
    %v2729 = vmax.f32 %v2665, 0.0
    %v2730 = vmax.f32 %v2666, 0.0
    %v2731 = vmax.f32 %v2667, 0.0
    %v2732 = vmax.f32 %v2668, 0.0
    %v2733 = vmax.f32 %v2669, 0.0
    %v2734 = vmax.f32 %v2670, 0.0
    %v2735 = vmax.f32 %v2671, 0.0
    %v2736 = vmax.f32 %v2672, 0.0
    %v2737 = vmax.f32 %v2673, 0.0
    %v2738 = vmax.f32 %v2674, 0.0
    %v2739 = vmax.f32 %v2675, 0.0
    %v2740 = vmax.f32 %v2676, 0.0
    %v2741 = vmax.f32 %v2677, 0.0
    %v2742 = vmax.f32 %v2678, 0.0
    %v2743 = vmax.f32 %v2679, 0.0
    %v2744 = vmax.f32 %v2680, 0.0
    %v2745 = vmax.f32 %v2681, 0.0
    %v2746 = vmax.f32 %v2682, 0.0
    %v2747 = vmax.f32 %v2683, 0.0
    %v2748 = vmax.f32 %v2684, 0.0
    %v2749 = vpack.c.bf16 %v2687, %v2685
    %v2750 = vpack.c.bf16 %v2688, %v2686
    %v2751 = vpack.c.bf16 %v2691, %v2689
    %v2752 = vpack.c.bf16 %v2692, %v2690
    %v2753 = vpack.c.bf16 %v2695, %v2693
    %v2754 = vpack.c.bf16 %v2696, %v2694
    %v2755 = vpack.c.bf16 %v2699, %v2697
    %v2756 = vpack.c.bf16 %v2700, %v2698
    %v2757 = vpack.c.bf16 %v2703, %v2701
    %v2758 = vpack.c.bf16 %v2704, %v2702
    %v2759 = vpack.c.bf16 %v2707, %v2705
    %v2760 = vpack.c.bf16 %v2708, %v2706
    %v2761 = vpack.c.bf16 %v2711, %v2709
    %v2762 = vpack.c.bf16 %v2712, %v2710
    %v2763 = vpack.c.bf16 %v2715, %v2713
    %v2764 = vpack.c.bf16 %v2716, %v2714
    %v2765 = vpack.c.bf16 %v2719, %v2717
    %v2766 = vpack.c.bf16 %v2720, %v2718
    %v2767 = vpack.c.bf16 %v2723, %v2721
    %v2768 = vpack.c.bf16 %v2724, %v2722
    %v2769 = vpack.c.bf16 %v2727, %v2725
    %v2770 = vpack.c.bf16 %v2728, %v2726
    %v2771 = vpack.c.bf16 %v2731, %v2729
    %v2772 = vpack.c.bf16 %v2732, %v2730
    %v2773 = vpack.c.bf16 %v2735, %v2733
    %v2774 = vpack.c.bf16 %v2736, %v2734
    %v2775 = vpack.c.bf16 %v2739, %v2737
    %v2776 = vpack.c.bf16 %v2740, %v2738
    %v2777 = vpack.c.bf16 %v2743, %v2741
    %v2778 = vpack.c.bf16 %v2744, %v2742
    %v2779 = vpack.c.bf16 %v2747, %v2745
    %v2780 = vpack.c.bf16 %v2748, %v2746
    %s2781 = scalar_lea.vmem %s2, 1024
    %v2782 = vld [vmem:[%s2781] sm:$0xff]
    %v2783 = vld [vmem:[%s2781 + $0x8] sm:$0xff]
    %v2784 = vld [vmem:[%s2781 + $0x10] sm:$0xff]
    %v2785 = vld [vmem:[%s2781 + $0x18] sm:$0xff]
    %v2786 = vld [vmem:[%s2781 + $0x20] sm:$0xff]
    %v2787 = vld [vmem:[%s2781 + $0x28] sm:$0xff]
    %v2788 = vld [vmem:[%s2781 + $0x30] sm:$0xff]
    %v2789 = vld [vmem:[%s2781 + $0x38] sm:$0xff]
    %v2790 = vld [vmem:[%s2781 + $0x40] sm:$0xff]
    %v2791 = vld [vmem:[%s2781 + $0x48] sm:$0xff]
    %v2792 = vld [vmem:[%s2781 + $0x50] sm:$0xff]
    %v2793 = vld [vmem:[%s2781 + $0x58] sm:$0xff]
    %v2794 = vld [vmem:[%s2781 + $0x60] sm:$0xff]
    %v2795 = vld [vmem:[%s2781 + $0x68] sm:$0xff]
    %v2796 = vld [vmem:[%s2781 + $0x70] sm:$0xff]
    %v2797 = vld [vmem:[%s2781 + $0x78] sm:$0xff]
    %v2798 = vld [vmem:[%s2781 + $0x80] sm:$0xff]
    %v2799 = vld [vmem:[%s2781 + $0x88] sm:$0xff]
    %v2800 = vld [vmem:[%s2781 + $0x90] sm:$0xff]
    %v2801 = vld [vmem:[%s2781 + $0x98] sm:$0xff]
    %v2802 = vld [vmem:[%s2781 + $0xa0] sm:$0xff]
    %v2803 = vld [vmem:[%s2781 + $0xa8] sm:$0xff]
    %v2804 = vld [vmem:[%s2781 + $0xb0] sm:$0xff]
    %v2805 = vld [vmem:[%s2781 + $0xb8] sm:$0xff]
    %v2806 = vld [vmem:[%s2781 + $0xc0] sm:$0xff]
    %v2807 = vld [vmem:[%s2781 + $0xc8] sm:$0xff]
    %v2808 = vld [vmem:[%s2781 + $0xd0] sm:$0xff]
    %v2809 = vld [vmem:[%s2781 + $0xd8] sm:$0xff]
    %v2810 = vld [vmem:[%s2781 + $0xe0] sm:$0xff]
    %v2811 = vld [vmem:[%s2781 + $0xe8] sm:$0xff]
    %v2812 = vld [vmem:[%s2781 + $0xf0] sm:$0xff]
    %v2813 = vld [vmem:[%s2781 + $0xf8] sm:$0xff]
    %s2814 = scalar_lea.vmem %s3, 5
    %v2815 = vld [vmem:[%s2814] ss:$8 sm:$0x3]
    %v2817 = vlaneseq
    %v2818 = vshrl.u32 %v2817, 7
    %v2819 = vsub.s32 0, %v2818
    %v2820 = vrot.slane %v2815, %v2819
    %v2821 = vlaneseq
    %v2822 = vshrl.u32 %v2821, 7
    %v2823 = vsub.s32 1, %v2822
    %v2824 = vrot.slane %v2815, %v2823
    %v2859 = vunpack.c.l.b16 %v2782
    %v2860 = vunpack.c.h.b16 %v2782
    %v2861 = vunpack.c.l.b16 %v2783
    %v2862 = vunpack.c.h.b16 %v2783
    %v2863 = vunpack.c.l.b16 %v2784
    %v2864 = vunpack.c.h.b16 %v2784
    %v2865 = vunpack.c.l.b16 %v2785
    %v2866 = vunpack.c.h.b16 %v2785
    %v2867 = vunpack.c.l.b16 %v2786
    %v2868 = vunpack.c.h.b16 %v2786
    %v2869 = vunpack.c.l.b16 %v2787
    %v2870 = vunpack.c.h.b16 %v2787
    %v2871 = vunpack.c.l.b16 %v2788
    %v2872 = vunpack.c.h.b16 %v2788
    %v2873 = vunpack.c.l.b16 %v2789
    %v2874 = vunpack.c.h.b16 %v2789
    %v2875 = vunpack.c.l.b16 %v2790
    %v2876 = vunpack.c.h.b16 %v2790
    %v2877 = vunpack.c.l.b16 %v2791
    %v2878 = vunpack.c.h.b16 %v2791
    %v2879 = vunpack.c.l.b16 %v2792
    %v2880 = vunpack.c.h.b16 %v2792
    %v2881 = vunpack.c.l.b16 %v2793
    %v2882 = vunpack.c.h.b16 %v2793
    %v2883 = vunpack.c.l.b16 %v2794
    %v2884 = vunpack.c.h.b16 %v2794
    %v2885 = vunpack.c.l.b16 %v2795
    %v2886 = vunpack.c.h.b16 %v2795
    %v2887 = vunpack.c.l.b16 %v2796
    %v2888 = vunpack.c.h.b16 %v2796
    %v2889 = vunpack.c.l.b16 %v2797
    %v2890 = vunpack.c.h.b16 %v2797
    %v2891 = vunpack.c.l.b16 %v2798
    %v2892 = vunpack.c.h.b16 %v2798
    %v2893 = vunpack.c.l.b16 %v2799
    %v2894 = vunpack.c.h.b16 %v2799
    %v2895 = vunpack.c.l.b16 %v2800
    %v2896 = vunpack.c.h.b16 %v2800
    %v2897 = vunpack.c.l.b16 %v2801
    %v2898 = vunpack.c.h.b16 %v2801
    %v2899 = vunpack.c.l.b16 %v2802
    %v2900 = vunpack.c.h.b16 %v2802
    %v2901 = vunpack.c.l.b16 %v2803
    %v2902 = vunpack.c.h.b16 %v2803
    %v2903 = vunpack.c.l.b16 %v2804
    %v2904 = vunpack.c.h.b16 %v2804
    %v2905 = vunpack.c.l.b16 %v2805
    %v2906 = vunpack.c.h.b16 %v2805
    %v2907 = vunpack.c.l.b16 %v2806
    %v2908 = vunpack.c.h.b16 %v2806
    %v2909 = vunpack.c.l.b16 %v2807
    %v2910 = vunpack.c.h.b16 %v2807
    %v2911 = vunpack.c.l.b16 %v2808
    %v2912 = vunpack.c.h.b16 %v2808
    %v2913 = vunpack.c.l.b16 %v2809
    %v2914 = vunpack.c.h.b16 %v2809
    %v2915 = vunpack.c.l.b16 %v2810
    %v2916 = vunpack.c.h.b16 %v2810
    %v2917 = vunpack.c.l.b16 %v2811
    %v2918 = vunpack.c.h.b16 %v2811
    %v2919 = vunpack.c.l.b16 %v2812
    %v2920 = vunpack.c.h.b16 %v2812
    %v2921 = vunpack.c.l.b16 %v2813
    %v2922 = vunpack.c.h.b16 %v2813
    %v2923 = vpack.c.b16 %v2861, %v2859
    %v2924 = vpack.c.b16 %v2862, %v2860
    %v2925 = vpack.c.b16 %v2865, %v2863
    %v2926 = vpack.c.b16 %v2866, %v2864
    %v2927 = vpack.c.b16 %v2869, %v2867
    %v2928 = vpack.c.b16 %v2870, %v2868
    %v2929 = vpack.c.b16 %v2873, %v2871
    %v2930 = vpack.c.b16 %v2874, %v2872
    %v2931 = vpack.c.b16 %v2877, %v2875
    %v2932 = vpack.c.b16 %v2878, %v2876
    %v2933 = vpack.c.b16 %v2881, %v2879
    %v2934 = vpack.c.b16 %v2882, %v2880
    %v2935 = vpack.c.b16 %v2885, %v2883
    %v2936 = vpack.c.b16 %v2886, %v2884
    %v2937 = vpack.c.b16 %v2889, %v2887
    %v2938 = vpack.c.b16 %v2890, %v2888
    %v2939 = vpack.c.b16 %v2893, %v2891
    %v2940 = vpack.c.b16 %v2894, %v2892
    %v2941 = vpack.c.b16 %v2897, %v2895
    %v2942 = vpack.c.b16 %v2898, %v2896
    %v2943 = vpack.c.b16 %v2901, %v2899
    %v2944 = vpack.c.b16 %v2902, %v2900
    %v2945 = vpack.c.b16 %v2905, %v2903
    %v2946 = vpack.c.b16 %v2906, %v2904
    %v2947 = vpack.c.b16 %v2909, %v2907
    %v2948 = vpack.c.b16 %v2910, %v2908
    %v2949 = vpack.c.b16 %v2913, %v2911
    %v2950 = vpack.c.b16 %v2914, %v2912
    %v2951 = vpack.c.b16 %v2917, %v2915
    %v2952 = vpack.c.b16 %v2918, %v2916
    %v2953 = vpack.c.b16 %v2921, %v2919
    %v2954 = vpack.c.b16 %v2922, %v2920
    %2987 = vmatprep.subr.bf16.mxu0 %v2924
    %2988 = vmatpush1.bf16.msra.mxu0 %v2923
    %2989 = vmatprep.subr.bf16.mxu0 %v2926
    %2990 = vmatpush1.bf16.msra.mxu0 %v2925
    %2991 = vmatprep.subr.bf16.mxu0 %v2928
    %2992 = vmatpush1.bf16.msra.mxu0 %v2927
    %2993 = vmatprep.subr.bf16.mxu0 %v2930
    %2994 = vmatpush1.bf16.msra.mxu0 %v2929
    %2995 = vmatprep.subr.bf16.mxu0 %v2932
    %2996 = vmatpush1.bf16.msra.mxu0 %v2931
    %2997 = vmatprep.subr.bf16.mxu0 %v2934
    %2998 = vmatpush1.bf16.msra.mxu0 %v2933
    %2999 = vmatprep.subr.bf16.mxu0 %v2936
    %3000 = vmatpush1.bf16.msra.mxu0 %v2935
    %3001 = vmatprep.subr.bf16.mxu0 %v2938
    %3002 = vmatpush1.bf16.msra.mxu0 %v2937
    %3003 = vmatprep.subr.bf16.mxu0 %v2940
    %3004 = vmatpush1.bf16.msra.mxu0 %v2939
    %3005 = vmatprep.subr.bf16.mxu0 %v2942
    %3006 = vmatpush1.bf16.msra.mxu0 %v2941
    %3007 = vmatprep.subr.bf16.mxu0 %v2944
    %3008 = vmatpush1.bf16.msra.mxu0 %v2943
    %3009 = vmatprep.subr.bf16.mxu0 %v2946
    %3010 = vmatpush1.bf16.msra.mxu0 %v2945
    %3011 = vmatprep.subr.bf16.mxu0 %v2948
    %3012 = vmatpush1.bf16.msra.mxu0 %v2947
    %3013 = vmatprep.subr.bf16.mxu0 %v2950
    %3014 = vmatpush1.bf16.msra.mxu0 %v2949
    %3015 = vmatprep.subr.bf16.mxu0 %v2952
    %3016 = vmatpush1.bf16.msra.mxu0 %v2951
    %3017 = vmatprep.subr.bf16.mxu0 %v2954
    %3018 = vmatpush1.bf16.msra.mxu0 %v2953
    %3019 = vmatprep.mubr.bf16.mxu0 %v2750
    %3020 = vmatmul.mubr.bf16.gmra.mrb[0].mxu0 %v2749
    %v3021 = vpop.f32.mrb[0].mxu0
    %v3022 = vadd.f32 %v2820, %v3021
    %v3023 = vpop.f32.mrb[0].mxu0
    %v3024 = vadd.f32 %v2824, %v3023
    %v3025 = vpop.f32.mrb[0].mxu0
    %v3026 = vadd.f32 %v2820, %v3025
    %v3027 = vpop.f32.mrb[0].mxu0
    %v3028 = vadd.f32 %v2824, %v3027
    %3029 = vmatprep.mubr.bf16.mxu0 %v2752
    %3030 = vmatmul.mubr.bf16.gmra.mrb[0].mxu0 %v2751
    %v3031 = vpop.f32.mrb[0].mxu0
    %v3032 = vadd.f32 %v2820, %v3031
    %v3033 = vpop.f32.mrb[0].mxu0
    %v3034 = vadd.f32 %v2824, %v3033
    %v3035 = vpop.f32.mrb[0].mxu0
    %v3036 = vadd.f32 %v2820, %v3035
    %v3037 = vpop.f32.mrb[0].mxu0
    %v3038 = vadd.f32 %v2824, %v3037
    %3039 = vmatprep.mubr.bf16.mxu0 %v2754
    %3040 = vmatmul.mubr.bf16.gmra.mrb[0].mxu0 %v2753
    %v3041 = vpop.f32.mrb[0].mxu0
    %v3042 = vadd.f32 %v2820, %v3041
    %v3043 = vpop.f32.mrb[0].mxu0
    %v3044 = vadd.f32 %v2824, %v3043
    %v3045 = vpop.f32.mrb[0].mxu0
    %v3046 = vadd.f32 %v2820, %v3045
    %v3047 = vpop.f32.mrb[0].mxu0
    %v3048 = vadd.f32 %v2824, %v3047
    %3049 = vmatprep.mubr.bf16.mxu0 %v2756
    %3050 = vmatmul.mubr.bf16.gmra.mrb[0].mxu0 %v2755
    %v3051 = vpop.f32.mrb[0].mxu0
    %v3052 = vadd.f32 %v2820, %v3051
    %v3053 = vpop.f32.mrb[0].mxu0
    %v3054 = vadd.f32 %v2824, %v3053
    %v3055 = vpop.f32.mrb[0].mxu0
    %v3056 = vadd.f32 %v2820, %v3055
    %v3057 = vpop.f32.mrb[0].mxu0
    %v3058 = vadd.f32 %v2824, %v3057
    %3059 = vmatprep.mubr.bf16.mxu0 %v2758
    %3060 = vmatmul.mubr.bf16.gmra.mrb[0].mxu0 %v2757
    %v3061 = vpop.f32.mrb[0].mxu0
    %v3062 = vadd.f32 %v2820, %v3061
    %v3063 = vpop.f32.mrb[0].mxu0
    %v3064 = vadd.f32 %v2824, %v3063
    %v3065 = vpop.f32.mrb[0].mxu0
    %v3066 = vadd.f32 %v2820, %v3065
    %v3067 = vpop.f32.mrb[0].mxu0
    %v3068 = vadd.f32 %v2824, %v3067
    %3069 = vmatprep.mubr.bf16.mxu0 %v2760
    %3070 = vmatmul.mubr.bf16.gmra.mrb[0].mxu0 %v2759
    %v3071 = vpop.f32.mrb[0].mxu0
    %v3072 = vadd.f32 %v2820, %v3071
    %v3073 = vpop.f32.mrb[0].mxu0
    %v3074 = vadd.f32 %v2824, %v3073
    %v3075 = vpop.f32.mrb[0].mxu0
    %v3076 = vadd.f32 %v2820, %v3075
    %v3077 = vpop.f32.mrb[0].mxu0
    %v3078 = vadd.f32 %v2824, %v3077
    %3079 = vmatprep.mubr.bf16.mxu0 %v2762
    %3080 = vmatmul.mubr.bf16.gmra.mrb[0].mxu0 %v2761
    %v3081 = vpop.f32.mrb[0].mxu0
    %v3082 = vadd.f32 %v2820, %v3081
    %v3083 = vpop.f32.mrb[0].mxu0
    %v3084 = vadd.f32 %v2824, %v3083
    %v3085 = vpop.f32.mrb[0].mxu0
    %v3086 = vadd.f32 %v2820, %v3085
    %v3087 = vpop.f32.mrb[0].mxu0
    %v3088 = vadd.f32 %v2824, %v3087
    %3089 = vmatprep.mubr.bf16.mxu0 %v2764
    %3090 = vmatmul.mubr.bf16.gmra.mrb[0].mxu0 %v2763
    %v3091 = vpop.f32.mrb[0].mxu0
    %v3092 = vadd.f32 %v2820, %v3091
    %v3093 = vpop.f32.mrb[0].mxu0
    %v3094 = vadd.f32 %v2824, %v3093
    %v3095 = vpop.f32.mrb[0].mxu0
    %v3096 = vadd.f32 %v2820, %v3095
    %v3097 = vpop.f32.mrb[0].mxu0
    %v3098 = vadd.f32 %v2824, %v3097
    %3099 = vmatprep.mubr.bf16.mxu0 %v2766
    %3100 = vmatmul.mubr.bf16.gmra.mrb[0].mxu0 %v2765
    %v3101 = vpop.f32.mrb[0].mxu0
    %v3102 = vadd.f32 %v2820, %v3101
    %v3103 = vpop.f32.mrb[0].mxu0
    %v3104 = vadd.f32 %v2824, %v3103
    %v3105 = vpop.f32.mrb[0].mxu0
    %v3106 = vadd.f32 %v2820, %v3105
    %v3107 = vpop.f32.mrb[0].mxu0
    %v3108 = vadd.f32 %v2824, %v3107
    %3109 = vmatprep.mubr.bf16.mxu0 %v2768
    %3110 = vmatmul.mubr.bf16.gmra.mrb[0].mxu0 %v2767
    %v3111 = vpop.f32.mrb[0].mxu0
    %v3112 = vadd.f32 %v2820, %v3111
    %v3113 = vpop.f32.mrb[0].mxu0
    %v3114 = vadd.f32 %v2824, %v3113
    %v3115 = vpop.f32.mrb[0].mxu0
    %v3116 = vadd.f32 %v2820, %v3115
    %v3117 = vpop.f32.mrb[0].mxu0
    %v3118 = vadd.f32 %v2824, %v3117
    %3119 = vmatprep.mubr.bf16.mxu0 %v2770
    %3120 = vmatmul.mubr.bf16.gmra.mrb[0].mxu0 %v2769
    %v3121 = vpop.f32.mrb[0].mxu0
    %v3122 = vadd.f32 %v2820, %v3121
    %v3123 = vpop.f32.mrb[0].mxu0
    %v3124 = vadd.f32 %v2824, %v3123
    %v3125 = vpop.f32.mrb[0].mxu0
    %v3126 = vadd.f32 %v2820, %v3125
    %v3127 = vpop.f32.mrb[0].mxu0
    %v3128 = vadd.f32 %v2824, %v3127
    %3129 = vmatprep.mubr.bf16.mxu0 %v2772
    %3130 = vmatmul.mubr.bf16.gmra.mrb[0].mxu0 %v2771
    %v3131 = vpop.f32.mrb[0].mxu0
    %v3132 = vadd.f32 %v2820, %v3131
    %v3133 = vpop.f32.mrb[0].mxu0
    %v3134 = vadd.f32 %v2824, %v3133
    %v3135 = vpop.f32.mrb[0].mxu0
    %v3136 = vadd.f32 %v2820, %v3135
    %v3137 = vpop.f32.mrb[0].mxu0
    %v3138 = vadd.f32 %v2824, %v3137
    %3139 = vmatprep.mubr.bf16.mxu0 %v2774
    %3140 = vmatmul.mubr.bf16.gmra.mrb[0].mxu0 %v2773
    %v3141 = vpop.f32.mrb[0].mxu0
    %v3142 = vadd.f32 %v2820, %v3141
    %v3143 = vpop.f32.mrb[0].mxu0
    %v3144 = vadd.f32 %v2824, %v3143
    %v3145 = vpop.f32.mrb[0].mxu0
    %v3146 = vadd.f32 %v2820, %v3145
    %v3147 = vpop.f32.mrb[0].mxu0
    %v3148 = vadd.f32 %v2824, %v3147
    %3149 = vmatprep.mubr.bf16.mxu0 %v2776
    %3150 = vmatmul.mubr.bf16.gmra.mrb[0].mxu0 %v2775
    %v3151 = vpop.f32.mrb[0].mxu0
    %v3152 = vadd.f32 %v2820, %v3151
    %v3153 = vpop.f32.mrb[0].mxu0
    %v3154 = vadd.f32 %v2824, %v3153
    %v3155 = vpop.f32.mrb[0].mxu0
    %v3156 = vadd.f32 %v2820, %v3155
    %v3157 = vpop.f32.mrb[0].mxu0
    %v3158 = vadd.f32 %v2824, %v3157
    %3159 = vmatprep.mubr.bf16.mxu0 %v2778
    %3160 = vmatmul.mubr.bf16.gmra.mrb[0].mxu0 %v2777
    %v3161 = vpop.f32.mrb[0].mxu0
    %v3162 = vadd.f32 %v2820, %v3161
    %v3163 = vpop.f32.mrb[0].mxu0
    %v3164 = vadd.f32 %v2824, %v3163
    %v3165 = vpop.f32.mrb[0].mxu0
    %v3166 = vadd.f32 %v2820, %v3165
    %v3167 = vpop.f32.mrb[0].mxu0
    %v3168 = vadd.f32 %v2824, %v3167
    %3169 = vmatprep.mubr.bf16.mxu0 %v2780
    %3170 = vmatmul.mubr.bf16.gmra.mrb[0].mxu0 %v2779
    %v3171 = vpop.f32.mrb[0].mxu0
    %v3172 = vadd.f32 %v2820, %v3171
    %v3173 = vpop.f32.mrb[0].mxu0
    %v3174 = vadd.f32 %v2824, %v3173
    %v3175 = vpop.f32.mrb[0].mxu0
    %v3176 = vadd.f32 %v2820, %v3175
    %v3177 = vpop.f32.mrb[0].mxu0
    %v3178 = vadd.f32 %v2824, %v3177
    %3179 = vdwg.mxu0
    %v3180 = vmax.f32 %v3022, 0.0
    %v3181 = vmax.f32 %v3024, 0.0
    %v3182 = vmax.f32 %v3026, 0.0
    %v3183 = vmax.f32 %v3028, 0.0
    %v3184 = vmax.f32 %v3032, 0.0
    %v3185 = vmax.f32 %v3034, 0.0
    %v3186 = vmax.f32 %v3036, 0.0
    %v3187 = vmax.f32 %v3038, 0.0
    %v3188 = vmax.f32 %v3042, 0.0
    %v3189 = vmax.f32 %v3044, 0.0
    %v3190 = vmax.f32 %v3046, 0.0
    %v3191 = vmax.f32 %v3048, 0.0
    %v3192 = vmax.f32 %v3052, 0.0
    %v3193 = vmax.f32 %v3054, 0.0
    %v3194 = vmax.f32 %v3056, 0.0
    %v3195 = vmax.f32 %v3058, 0.0
    %v3196 = vmax.f32 %v3062, 0.0
    %v3197 = vmax.f32 %v3064, 0.0
    %v3198 = vmax.f32 %v3066, 0.0
    %v3199 = vmax.f32 %v3068, 0.0
    %v3200 = vmax.f32 %v3072, 0.0
    %v3201 = vmax.f32 %v3074, 0.0
    %v3202 = vmax.f32 %v3076, 0.0
    %v3203 = vmax.f32 %v3078, 0.0
    %v3204 = vmax.f32 %v3082, 0.0
    %v3205 = vmax.f32 %v3084, 0.0
    %v3206 = vmax.f32 %v3086, 0.0
    %v3207 = vmax.f32 %v3088, 0.0
    %v3208 = vmax.f32 %v3092, 0.0
    %v3209 = vmax.f32 %v3094, 0.0
    %v3210 = vmax.f32 %v3096, 0.0
    %v3211 = vmax.f32 %v3098, 0.0
    %v3212 = vmax.f32 %v3102, 0.0
    %v3213 = vmax.f32 %v3104, 0.0
    %v3214 = vmax.f32 %v3106, 0.0
    %v3215 = vmax.f32 %v3108, 0.0
    %v3216 = vmax.f32 %v3112, 0.0
    %v3217 = vmax.f32 %v3114, 0.0
    %v3218 = vmax.f32 %v3116, 0.0
    %v3219 = vmax.f32 %v3118, 0.0
    %v3220 = vmax.f32 %v3122, 0.0
    %v3221 = vmax.f32 %v3124, 0.0
    %v3222 = vmax.f32 %v3126, 0.0
    %v3223 = vmax.f32 %v3128, 0.0
    %v3224 = vmax.f32 %v3132, 0.0
    %v3225 = vmax.f32 %v3134, 0.0
    %v3226 = vmax.f32 %v3136, 0.0
    %v3227 = vmax.f32 %v3138, 0.0
    %v3228 = vmax.f32 %v3142, 0.0
    %v3229 = vmax.f32 %v3144, 0.0
    %v3230 = vmax.f32 %v3146, 0.0
    %v3231 = vmax.f32 %v3148, 0.0
    %v3232 = vmax.f32 %v3152, 0.0
    %v3233 = vmax.f32 %v3154, 0.0
    %v3234 = vmax.f32 %v3156, 0.0
    %v3235 = vmax.f32 %v3158, 0.0
    %v3236 = vmax.f32 %v3162, 0.0
    %v3237 = vmax.f32 %v3164, 0.0
    %v3238 = vmax.f32 %v3166, 0.0
    %v3239 = vmax.f32 %v3168, 0.0
    %v3240 = vmax.f32 %v3172, 0.0
    %v3241 = vmax.f32 %v3174, 0.0
    %v3242 = vmax.f32 %v3176, 0.0
    %v3243 = vmax.f32 %v3178, 0.0
    %v3244 = vpack.c.bf16 %v3182, %v3180
    %v3245 = vpack.c.bf16 %v3183, %v3181
    %v3246 = vpack.c.bf16 %v3186, %v3184
    %v3247 = vpack.c.bf16 %v3187, %v3185
    %v3248 = vpack.c.bf16 %v3190, %v3188
    %v3249 = vpack.c.bf16 %v3191, %v3189
    %v3250 = vpack.c.bf16 %v3194, %v3192
    %v3251 = vpack.c.bf16 %v3195, %v3193
    %v3252 = vpack.c.bf16 %v3198, %v3196
    %v3253 = vpack.c.bf16 %v3199, %v3197
    %v3254 = vpack.c.bf16 %v3202, %v3200
    %v3255 = vpack.c.bf16 %v3203, %v3201
    %v3256 = vpack.c.bf16 %v3206, %v3204
    %v3257 = vpack.c.bf16 %v3207, %v3205
    %v3258 = vpack.c.bf16 %v3210, %v3208
    %v3259 = vpack.c.bf16 %v3211, %v3209
    %v3260 = vpack.c.bf16 %v3214, %v3212
    %v3261 = vpack.c.bf16 %v3215, %v3213
    %v3262 = vpack.c.bf16 %v3218, %v3216
    %v3263 = vpack.c.bf16 %v3219, %v3217
    %v3264 = vpack.c.bf16 %v3222, %v3220
    %v3265 = vpack.c.bf16 %v3223, %v3221
    %v3266 = vpack.c.bf16 %v3226, %v3224
    %v3267 = vpack.c.bf16 %v3227, %v3225
    %v3268 = vpack.c.bf16 %v3230, %v3228
    %v3269 = vpack.c.bf16 %v3231, %v3229
    %v3270 = vpack.c.bf16 %v3234, %v3232
    %v3271 = vpack.c.bf16 %v3235, %v3233
    %v3272 = vpack.c.bf16 %v3238, %v3236
    %v3273 = vpack.c.bf16 %v3239, %v3237
    %v3274 = vpack.c.bf16 %v3242, %v3240
    %v3275 = vpack.c.bf16 %v3243, %v3241
    %s3276 = scalar_lea.vmem %s2, 1280
    %v3277 = vld [vmem:[%s3276] sm:$0xff]
    %v3278 = vld [vmem:[%s3276 + $0x8] sm:$0xff]
    %v3279 = vld [vmem:[%s3276 + $0x10] sm:$0xff]
    %v3280 = vld [vmem:[%s3276 + $0x18] sm:$0xff]
    %v3281 = vld [vmem:[%s3276 + $0x20] sm:$0xff]
    %v3282 = vld [vmem:[%s3276 + $0x28] sm:$0xff]
    %v3283 = vld [vmem:[%s3276 + $0x30] sm:$0xff]
    %v3284 = vld [vmem:[%s3276 + $0x38] sm:$0xff]
    %v3285 = vld [vmem:[%s3276 + $0x40] sm:$0xff]
    %v3286 = vld [vmem:[%s3276 + $0x48] sm:$0xff]
    %v3287 = vld [vmem:[%s3276 + $0x50] sm:$0xff]
    %v3288 = vld [vmem:[%s3276 + $0x58] sm:$0xff]
    %v3289 = vld [vmem:[%s3276 + $0x60] sm:$0xff]
    %v3290 = vld [vmem:[%s3276 + $0x68] sm:$0xff]
    %v3291 = vld [vmem:[%s3276 + $0x70] sm:$0xff]
    %v3292 = vld [vmem:[%s3276 + $0x78] sm:$0xff]
    %v3293 = vld [vmem:[%s3276 + $0x80] sm:$0xff]
    %v3294 = vld [vmem:[%s3276 + $0x88] sm:$0xff]
    %v3295 = vld [vmem:[%s3276 + $0x90] sm:$0xff]
    %v3296 = vld [vmem:[%s3276 + $0x98] sm:$0xff]
    %v3297 = vld [vmem:[%s3276 + $0xa0] sm:$0xff]
    %v3298 = vld [vmem:[%s3276 + $0xa8] sm:$0xff]
    %v3299 = vld [vmem:[%s3276 + $0xb0] sm:$0xff]
    %v3300 = vld [vmem:[%s3276 + $0xb8] sm:$0xff]
    %v3301 = vld [vmem:[%s3276 + $0xc0] sm:$0xff]
    %v3302 = vld [vmem:[%s3276 + $0xc8] sm:$0xff]
    %v3303 = vld [vmem:[%s3276 + $0xd0] sm:$0xff]
    %v3304 = vld [vmem:[%s3276 + $0xd8] sm:$0xff]
    %v3305 = vld [vmem:[%s3276 + $0xe0] sm:$0xff]
    %v3306 = vld [vmem:[%s3276 + $0xe8] sm:$0xff]
    %v3307 = vld [vmem:[%s3276 + $0xf0] sm:$0xff]
    %v3308 = vld [vmem:[%s3276 + $0xf8] sm:$0xff]
    %s3309 = scalar_lea.vmem %s3, 6
    %v3310 = vld [vmem:[%s3309] ss:$8 sm:$0x3]
    %v3312 = vlaneseq
    %v3313 = vshrl.u32 %v3312, 7
    %v3314 = vsub.s32 0, %v3313
    %v3315 = vrot.slane %v3310, %v3314
    %v3316 = vlaneseq
    %v3317 = vshrl.u32 %v3316, 7
    %v3318 = vsub.s32 1, %v3317
    %v3319 = vrot.slane %v3310, %v3318
    %v3354 = vunpack.c.l.b16 %v3277
    %v3355 = vunpack.c.h.b16 %v3277
    %v3356 = vunpack.c.l.b16 %v3278
    %v3357 = vunpack.c.h.b16 %v3278
    %v3358 = vunpack.c.l.b16 %v3279
    %v3359 = vunpack.c.h.b16 %v3279
    %v3360 = vunpack.c.l.b16 %v3280
    %v3361 = vunpack.c.h.b16 %v3280
    %v3362 = vunpack.c.l.b16 %v3281
    %v3363 = vunpack.c.h.b16 %v3281
    %v3364 = vunpack.c.l.b16 %v3282
    %v3365 = vunpack.c.h.b16 %v3282
    %v3366 = vunpack.c.l.b16 %v3283
    %v3367 = vunpack.c.h.b16 %v3283
    %v3368 = vunpack.c.l.b16 %v3284
    %v3369 = vunpack.c.h.b16 %v3284
    %v3370 = vunpack.c.l.b16 %v3285
    %v3371 = vunpack.c.h.b16 %v3285
    %v3372 = vunpack.c.l.b16 %v3286
    %v3373 = vunpack.c.h.b16 %v3286
    %v3374 = vunpack.c.l.b16 %v3287
    %v3375 = vunpack.c.h.b16 %v3287
    %v3376 = vunpack.c.l.b16 %v3288
    %v3377 = vunpack.c.h.b16 %v3288
    %v3378 = vunpack.c.l.b16 %v3289
    %v3379 = vunpack.c.h.b16 %v3289
    %v3380 = vunpack.c.l.b16 %v3290
    %v3381 = vunpack.c.h.b16 %v3290
    %v3382 = vunpack.c.l.b16 %v3291
    %v3383 = vunpack.c.h.b16 %v3291
    %v3384 = vunpack.c.l.b16 %v3292
    %v3385 = vunpack.c.h.b16 %v3292
    %v3386 = vunpack.c.l.b16 %v3293
    %v3387 = vunpack.c.h.b16 %v3293
    %v3388 = vunpack.c.l.b16 %v3294
    %v3389 = vunpack.c.h.b16 %v3294
    %v3390 = vunpack.c.l.b16 %v3295
    %v3391 = vunpack.c.h.b16 %v3295
    %v3392 = vunpack.c.l.b16 %v3296
    %v3393 = vunpack.c.h.b16 %v3296
    %v3394 = vunpack.c.l.b16 %v3297
    %v3395 = vunpack.c.h.b16 %v3297
    %v3396 = vunpack.c.l.b16 %v3298
    %v3397 = vunpack.c.h.b16 %v3298
    %v3398 = vunpack.c.l.b16 %v3299
    %v3399 = vunpack.c.h.b16 %v3299
    %v3400 = vunpack.c.l.b16 %v3300
    %v3401 = vunpack.c.h.b16 %v3300
    %v3402 = vunpack.c.l.b16 %v3301
    %v3403 = vunpack.c.h.b16 %v3301
    %v3404 = vunpack.c.l.b16 %v3302
    %v3405 = vunpack.c.h.b16 %v3302
    %v3406 = vunpack.c.l.b16 %v3303
    %v3407 = vunpack.c.h.b16 %v3303
    %v3408 = vunpack.c.l.b16 %v3304
    %v3409 = vunpack.c.h.b16 %v3304
    %v3410 = vunpack.c.l.b16 %v3305
    %v3411 = vunpack.c.h.b16 %v3305
    %v3412 = vunpack.c.l.b16 %v3306
    %v3413 = vunpack.c.h.b16 %v3306
    %v3414 = vunpack.c.l.b16 %v3307
    %v3415 = vunpack.c.h.b16 %v3307
    %v3416 = vunpack.c.l.b16 %v3308
    %v3417 = vunpack.c.h.b16 %v3308
    %v3418 = vpack.c.b16 %v3356, %v3354
    %v3419 = vpack.c.b16 %v3357, %v3355
    %v3420 = vpack.c.b16 %v3360, %v3358
    %v3421 = vpack.c.b16 %v3361, %v3359
    %v3422 = vpack.c.b16 %v3364, %v3362
    %v3423 = vpack.c.b16 %v3365, %v3363
    %v3424 = vpack.c.b16 %v3368, %v3366
    %v3425 = vpack.c.b16 %v3369, %v3367
    %v3426 = vpack.c.b16 %v3372, %v3370
    %v3427 = vpack.c.b16 %v3373, %v3371
    %v3428 = vpack.c.b16 %v3376, %v3374
    %v3429 = vpack.c.b16 %v3377, %v3375
    %v3430 = vpack.c.b16 %v3380, %v3378
    %v3431 = vpack.c.b16 %v3381, %v3379
    %v3432 = vpack.c.b16 %v3384, %v3382
    %v3433 = vpack.c.b16 %v3385, %v3383
    %v3434 = vpack.c.b16 %v3388, %v3386
    %v3435 = vpack.c.b16 %v3389, %v3387
    %v3436 = vpack.c.b16 %v3392, %v3390
    %v3437 = vpack.c.b16 %v3393, %v3391
    %v3438 = vpack.c.b16 %v3396, %v3394
    %v3439 = vpack.c.b16 %v3397, %v3395
    %v3440 = vpack.c.b16 %v3400, %v3398
    %v3441 = vpack.c.b16 %v3401, %v3399
    %v3442 = vpack.c.b16 %v3404, %v3402
    %v3443 = vpack.c.b16 %v3405, %v3403
    %v3444 = vpack.c.b16 %v3408, %v3406
    %v3445 = vpack.c.b16 %v3409, %v3407
    %v3446 = vpack.c.b16 %v3412, %v3410
    %v3447 = vpack.c.b16 %v3413, %v3411
    %v3448 = vpack.c.b16 %v3416, %v3414
    %v3449 = vpack.c.b16 %v3417, %v3415
    %3482 = vmatprep.subr.bf16.mxu0 %v3419
    %3483 = vmatpush1.bf16.msra.mxu0 %v3418
    %3484 = vmatprep.subr.bf16.mxu0 %v3421
    %3485 = vmatpush1.bf16.msra.mxu0 %v3420
    %3486 = vmatprep.subr.bf16.mxu0 %v3423
    %3487 = vmatpush1.bf16.msra.mxu0 %v3422
    %3488 = vmatprep.subr.bf16.mxu0 %v3425
    %3489 = vmatpush1.bf16.msra.mxu0 %v3424
    %3490 = vmatprep.subr.bf16.mxu0 %v3427
    %3491 = vmatpush1.bf16.msra.mxu0 %v3426
    %3492 = vmatprep.subr.bf16.mxu0 %v3429
    %3493 = vmatpush1.bf16.msra.mxu0 %v3428
    %3494 = vmatprep.subr.bf16.mxu0 %v3431
    %3495 = vmatpush1.bf16.msra.mxu0 %v3430
    %3496 = vmatprep.subr.bf16.mxu0 %v3433
    %3497 = vmatpush1.bf16.msra.mxu0 %v3432
    %3498 = vmatprep.subr.bf16.mxu0 %v3435
    %3499 = vmatpush1.bf16.msra.mxu0 %v3434
    %3500 = vmatprep.subr.bf16.mxu0 %v3437
    %3501 = vmatpush1.bf16.msra.mxu0 %v3436
    %3502 = vmatprep.subr.bf16.mxu0 %v3439
    %3503 = vmatpush1.bf16.msra.mxu0 %v3438
    %3504 = vmatprep.subr.bf16.mxu0 %v3441
    %3505 = vmatpush1.bf16.msra.mxu0 %v3440
    %3506 = vmatprep.subr.bf16.mxu0 %v3443
    %3507 = vmatpush1.bf16.msra.mxu0 %v3442
    %3508 = vmatprep.subr.bf16.mxu0 %v3445
    %3509 = vmatpush1.bf16.msra.mxu0 %v3444
    %3510 = vmatprep.subr.bf16.mxu0 %v3447
    %3511 = vmatpush1.bf16.msra.mxu0 %v3446
    %3512 = vmatprep.subr.bf16.mxu0 %v3449
    %3513 = vmatpush1.bf16.msra.mxu0 %v3448
    %3514 = vmatprep.mubr.bf16.mxu0 %v3245
    %3515 = vmatmul.mubr.bf16.gmra.mrb[0].mxu0 %v3244
    %v3516 = vpop.f32.mrb[0].mxu0
    %v3517 = vadd.f32 %v3315, %v3516
    %v3518 = vpop.f32.mrb[0].mxu0
    %v3519 = vadd.f32 %v3319, %v3518
    %v3520 = vpop.f32.mrb[0].mxu0
    %v3521 = vadd.f32 %v3315, %v3520
    %v3522 = vpop.f32.mrb[0].mxu0
    %v3523 = vadd.f32 %v3319, %v3522
    %3524 = vmatprep.mubr.bf16.mxu0 %v3247
    %3525 = vmatmul.mubr.bf16.gmra.mrb[0].mxu0 %v3246
    %v3526 = vpop.f32.mrb[0].mxu0
    %v3527 = vadd.f32 %v3315, %v3526
    %v3528 = vpop.f32.mrb[0].mxu0
    %v3529 = vadd.f32 %v3319, %v3528
    %v3530 = vpop.f32.mrb[0].mxu0
    %v3531 = vadd.f32 %v3315, %v3530
    %v3532 = vpop.f32.mrb[0].mxu0
    %v3533 = vadd.f32 %v3319, %v3532
    %3534 = vmatprep.mubr.bf16.mxu0 %v3249
    %3535 = vmatmul.mubr.bf16.gmra.mrb[0].mxu0 %v3248
    %v3536 = vpop.f32.mrb[0].mxu0
    %v3537 = vadd.f32 %v3315, %v3536
    %v3538 = vpop.f32.mrb[0].mxu0
    %v3539 = vadd.f32 %v3319, %v3538
    %v3540 = vpop.f32.mrb[0].mxu0
    %v3541 = vadd.f32 %v3315, %v3540
    %v3542 = vpop.f32.mrb[0].mxu0
    %v3543 = vadd.f32 %v3319, %v3542
    %3544 = vmatprep.mubr.bf16.mxu0 %v3251
    %3545 = vmatmul.mubr.bf16.gmra.mrb[0].mxu0 %v3250
    %v3546 = vpop.f32.mrb[0].mxu0
    %v3547 = vadd.f32 %v3315, %v3546
    %v3548 = vpop.f32.mrb[0].mxu0
    %v3549 = vadd.f32 %v3319, %v3548
    %v3550 = vpop.f32.mrb[0].mxu0
    %v3551 = vadd.f32 %v3315, %v3550
    %v3552 = vpop.f32.mrb[0].mxu0
    %v3553 = vadd.f32 %v3319, %v3552
    %3554 = vmatprep.mubr.bf16.mxu0 %v3253
    %3555 = vmatmul.mubr.bf16.gmra.mrb[0].mxu0 %v3252
    %v3556 = vpop.f32.mrb[0].mxu0
    %v3557 = vadd.f32 %v3315, %v3556
    %v3558 = vpop.f32.mrb[0].mxu0
    %v3559 = vadd.f32 %v3319, %v3558
    %v3560 = vpop.f32.mrb[0].mxu0
    %v3561 = vadd.f32 %v3315, %v3560
    %v3562 = vpop.f32.mrb[0].mxu0
    %v3563 = vadd.f32 %v3319, %v3562
    %3564 = vmatprep.mubr.bf16.mxu0 %v3255
    %3565 = vmatmul.mubr.bf16.gmra.mrb[0].mxu0 %v3254
    %v3566 = vpop.f32.mrb[0].mxu0
    %v3567 = vadd.f32 %v3315, %v3566
    %v3568 = vpop.f32.mrb[0].mxu0
    %v3569 = vadd.f32 %v3319, %v3568
    %v3570 = vpop.f32.mrb[0].mxu0
    %v3571 = vadd.f32 %v3315, %v3570
    %v3572 = vpop.f32.mrb[0].mxu0
    %v3573 = vadd.f32 %v3319, %v3572
    %3574 = vmatprep.mubr.bf16.mxu0 %v3257
    %3575 = vmatmul.mubr.bf16.gmra.mrb[0].mxu0 %v3256
    %v3576 = vpop.f32.mrb[0].mxu0
    %v3577 = vadd.f32 %v3315, %v3576
    %v3578 = vpop.f32.mrb[0].mxu0
    %v3579 = vadd.f32 %v3319, %v3578
    %v3580 = vpop.f32.mrb[0].mxu0
    %v3581 = vadd.f32 %v3315, %v3580
    %v3582 = vpop.f32.mrb[0].mxu0
    %v3583 = vadd.f32 %v3319, %v3582
    %3584 = vmatprep.mubr.bf16.mxu0 %v3259
    %3585 = vmatmul.mubr.bf16.gmra.mrb[0].mxu0 %v3258
    %v3586 = vpop.f32.mrb[0].mxu0
    %v3587 = vadd.f32 %v3315, %v3586
    %v3588 = vpop.f32.mrb[0].mxu0
    %v3589 = vadd.f32 %v3319, %v3588
    %v3590 = vpop.f32.mrb[0].mxu0
    %v3591 = vadd.f32 %v3315, %v3590
    %v3592 = vpop.f32.mrb[0].mxu0
    %v3593 = vadd.f32 %v3319, %v3592
    %3594 = vmatprep.mubr.bf16.mxu0 %v3261
    %3595 = vmatmul.mubr.bf16.gmra.mrb[0].mxu0 %v3260
    %v3596 = vpop.f32.mrb[0].mxu0
    %v3597 = vadd.f32 %v3315, %v3596
    %v3598 = vpop.f32.mrb[0].mxu0
    %v3599 = vadd.f32 %v3319, %v3598
    %v3600 = vpop.f32.mrb[0].mxu0
    %v3601 = vadd.f32 %v3315, %v3600
    %v3602 = vpop.f32.mrb[0].mxu0
    %v3603 = vadd.f32 %v3319, %v3602
    %3604 = vmatprep.mubr.bf16.mxu0 %v3263
    %3605 = vmatmul.mubr.bf16.gmra.mrb[0].mxu0 %v3262
    %v3606 = vpop.f32.mrb[0].mxu0
    %v3607 = vadd.f32 %v3315, %v3606
    %v3608 = vpop.f32.mrb[0].mxu0
    %v3609 = vadd.f32 %v3319, %v3608
    %v3610 = vpop.f32.mrb[0].mxu0
    %v3611 = vadd.f32 %v3315, %v3610
    %v3612 = vpop.f32.mrb[0].mxu0
    %v3613 = vadd.f32 %v3319, %v3612
    %3614 = vmatprep.mubr.bf16.mxu0 %v3265
    %3615 = vmatmul.mubr.bf16.gmra.mrb[0].mxu0 %v3264
    %v3616 = vpop.f32.mrb[0].mxu0
    %v3617 = vadd.f32 %v3315, %v3616
    %v3618 = vpop.f32.mrb[0].mxu0
    %v3619 = vadd.f32 %v3319, %v3618
    %v3620 = vpop.f32.mrb[0].mxu0
    %v3621 = vadd.f32 %v3315, %v3620
    %v3622 = vpop.f32.mrb[0].mxu0
    %v3623 = vadd.f32 %v3319, %v3622
    %3624 = vmatprep.mubr.bf16.mxu0 %v3267
    %3625 = vmatmul.mubr.bf16.gmra.mrb[0].mxu0 %v3266
    %v3626 = vpop.f32.mrb[0].mxu0
    %v3627 = vadd.f32 %v3315, %v3626
    %v3628 = vpop.f32.mrb[0].mxu0
    %v3629 = vadd.f32 %v3319, %v3628
    %v3630 = vpop.f32.mrb[0].mxu0
    %v3631 = vadd.f32 %v3315, %v3630
    %v3632 = vpop.f32.mrb[0].mxu0
    %v3633 = vadd.f32 %v3319, %v3632
    %3634 = vmatprep.mubr.bf16.mxu0 %v3269
    %3635 = vmatmul.mubr.bf16.gmra.mrb[0].mxu0 %v3268
    %v3636 = vpop.f32.mrb[0].mxu0
    %v3637 = vadd.f32 %v3315, %v3636
    %v3638 = vpop.f32.mrb[0].mxu0
    %v3639 = vadd.f32 %v3319, %v3638
    %v3640 = vpop.f32.mrb[0].mxu0
    %v3641 = vadd.f32 %v3315, %v3640
    %v3642 = vpop.f32.mrb[0].mxu0
    %v3643 = vadd.f32 %v3319, %v3642
    %3644 = vmatprep.mubr.bf16.mxu0 %v3271
    %3645 = vmatmul.mubr.bf16.gmra.mrb[0].mxu0 %v3270
    %v3646 = vpop.f32.mrb[0].mxu0
    %v3647 = vadd.f32 %v3315, %v3646
    %v3648 = vpop.f32.mrb[0].mxu0
    %v3649 = vadd.f32 %v3319, %v3648
    %v3650 = vpop.f32.mrb[0].mxu0
    %v3651 = vadd.f32 %v3315, %v3650
    %v3652 = vpop.f32.mrb[0].mxu0
    %v3653 = vadd.f32 %v3319, %v3652
    %3654 = vmatprep.mubr.bf16.mxu0 %v3273
    %3655 = vmatmul.mubr.bf16.gmra.mrb[0].mxu0 %v3272
    %v3656 = vpop.f32.mrb[0].mxu0
    %v3657 = vadd.f32 %v3315, %v3656
    %v3658 = vpop.f32.mrb[0].mxu0
    %v3659 = vadd.f32 %v3319, %v3658
    %v3660 = vpop.f32.mrb[0].mxu0
    %v3661 = vadd.f32 %v3315, %v3660
    %v3662 = vpop.f32.mrb[0].mxu0
    %v3663 = vadd.f32 %v3319, %v3662
    %3664 = vmatprep.mubr.bf16.mxu0 %v3275
    %3665 = vmatmul.mubr.bf16.gmra.mrb[0].mxu0 %v3274
    %v3666 = vpop.f32.mrb[0].mxu0
    %v3667 = vadd.f32 %v3315, %v3666
    %v3668 = vpop.f32.mrb[0].mxu0
    %v3669 = vadd.f32 %v3319, %v3668
    %v3670 = vpop.f32.mrb[0].mxu0
    %v3671 = vadd.f32 %v3315, %v3670
    %v3672 = vpop.f32.mrb[0].mxu0
    %v3673 = vadd.f32 %v3319, %v3672
    %3674 = vdwg.mxu0
    %v3675 = vmax.f32 %v3517, 0.0
    %v3676 = vmax.f32 %v3519, 0.0
    %v3677 = vmax.f32 %v3521, 0.0
    %v3678 = vmax.f32 %v3523, 0.0
    %v3679 = vmax.f32 %v3527, 0.0
    %v3680 = vmax.f32 %v3529, 0.0
    %v3681 = vmax.f32 %v3531, 0.0
    %v3682 = vmax.f32 %v3533, 0.0
    %v3683 = vmax.f32 %v3537, 0.0
    %v3684 = vmax.f32 %v3539, 0.0
    %v3685 = vmax.f32 %v3541, 0.0
    %v3686 = vmax.f32 %v3543, 0.0
    %v3687 = vmax.f32 %v3547, 0.0
    %v3688 = vmax.f32 %v3549, 0.0
    %v3689 = vmax.f32 %v3551, 0.0
    %v3690 = vmax.f32 %v3553, 0.0
    %v3691 = vmax.f32 %v3557, 0.0
    %v3692 = vmax.f32 %v3559, 0.0
    %v3693 = vmax.f32 %v3561, 0.0
    %v3694 = vmax.f32 %v3563, 0.0
    %v3695 = vmax.f32 %v3567, 0.0
    %v3696 = vmax.f32 %v3569, 0.0
    %v3697 = vmax.f32 %v3571, 0.0
    %v3698 = vmax.f32 %v3573, 0.0
    %v3699 = vmax.f32 %v3577, 0.0
    %v3700 = vmax.f32 %v3579, 0.0
    %v3701 = vmax.f32 %v3581, 0.0
    %v3702 = vmax.f32 %v3583, 0.0
    %v3703 = vmax.f32 %v3587, 0.0
    %v3704 = vmax.f32 %v3589, 0.0
    %v3705 = vmax.f32 %v3591, 0.0
    %v3706 = vmax.f32 %v3593, 0.0
    %v3707 = vmax.f32 %v3597, 0.0
    %v3708 = vmax.f32 %v3599, 0.0
    %v3709 = vmax.f32 %v3601, 0.0
    %v3710 = vmax.f32 %v3603, 0.0
    %v3711 = vmax.f32 %v3607, 0.0
    %v3712 = vmax.f32 %v3609, 0.0
    %v3713 = vmax.f32 %v3611, 0.0
    %v3714 = vmax.f32 %v3613, 0.0
    %v3715 = vmax.f32 %v3617, 0.0
    %v3716 = vmax.f32 %v3619, 0.0
    %v3717 = vmax.f32 %v3621, 0.0
    %v3718 = vmax.f32 %v3623, 0.0
    %v3719 = vmax.f32 %v3627, 0.0
    %v3720 = vmax.f32 %v3629, 0.0
    %v3721 = vmax.f32 %v3631, 0.0
    %v3722 = vmax.f32 %v3633, 0.0
    %v3723 = vmax.f32 %v3637, 0.0
    %v3724 = vmax.f32 %v3639, 0.0
    %v3725 = vmax.f32 %v3641, 0.0
    %v3726 = vmax.f32 %v3643, 0.0
    %v3727 = vmax.f32 %v3647, 0.0
    %v3728 = vmax.f32 %v3649, 0.0
    %v3729 = vmax.f32 %v3651, 0.0
    %v3730 = vmax.f32 %v3653, 0.0
    %v3731 = vmax.f32 %v3657, 0.0
    %v3732 = vmax.f32 %v3659, 0.0
    %v3733 = vmax.f32 %v3661, 0.0
    %v3734 = vmax.f32 %v3663, 0.0
    %v3735 = vmax.f32 %v3667, 0.0
    %v3736 = vmax.f32 %v3669, 0.0
    %v3737 = vmax.f32 %v3671, 0.0
    %v3738 = vmax.f32 %v3673, 0.0
    %v3739 = vpack.c.bf16 %v3677, %v3675
    %v3740 = vpack.c.bf16 %v3678, %v3676
    %v3741 = vpack.c.bf16 %v3681, %v3679
    %v3742 = vpack.c.bf16 %v3682, %v3680
    %v3743 = vpack.c.bf16 %v3685, %v3683
    %v3744 = vpack.c.bf16 %v3686, %v3684
    %v3745 = vpack.c.bf16 %v3689, %v3687
    %v3746 = vpack.c.bf16 %v3690, %v3688
    %v3747 = vpack.c.bf16 %v3693, %v3691
    %v3748 = vpack.c.bf16 %v3694, %v3692
    %v3749 = vpack.c.bf16 %v3697, %v3695
    %v3750 = vpack.c.bf16 %v3698, %v3696
    %v3751 = vpack.c.bf16 %v3701, %v3699
    %v3752 = vpack.c.bf16 %v3702, %v3700
    %v3753 = vpack.c.bf16 %v3705, %v3703
    %v3754 = vpack.c.bf16 %v3706, %v3704
    %v3755 = vpack.c.bf16 %v3709, %v3707
    %v3756 = vpack.c.bf16 %v3710, %v3708
    %v3757 = vpack.c.bf16 %v3713, %v3711
    %v3758 = vpack.c.bf16 %v3714, %v3712
    %v3759 = vpack.c.bf16 %v3717, %v3715
    %v3760 = vpack.c.bf16 %v3718, %v3716
    %v3761 = vpack.c.bf16 %v3721, %v3719
    %v3762 = vpack.c.bf16 %v3722, %v3720
    %v3763 = vpack.c.bf16 %v3725, %v3723
    %v3764 = vpack.c.bf16 %v3726, %v3724
    %v3765 = vpack.c.bf16 %v3729, %v3727
    %v3766 = vpack.c.bf16 %v3730, %v3728
    %v3767 = vpack.c.bf16 %v3733, %v3731
    %v3768 = vpack.c.bf16 %v3734, %v3732
    %v3769 = vpack.c.bf16 %v3737, %v3735
    %v3770 = vpack.c.bf16 %v3738, %v3736
    %s3771 = scalar_lea.vmem %s2, 1536
    %v3772 = vld [vmem:[%s3771] sm:$0xff]
    %v3773 = vld [vmem:[%s3771 + $0x8] sm:$0xff]
    %v3774 = vld [vmem:[%s3771 + $0x10] sm:$0xff]
    %v3775 = vld [vmem:[%s3771 + $0x18] sm:$0xff]
    %v3776 = vld [vmem:[%s3771 + $0x20] sm:$0xff]
    %v3777 = vld [vmem:[%s3771 + $0x28] sm:$0xff]
    %v3778 = vld [vmem:[%s3771 + $0x30] sm:$0xff]
    %v3779 = vld [vmem:[%s3771 + $0x38] sm:$0xff]
    %v3780 = vld [vmem:[%s3771 + $0x40] sm:$0xff]
    %v3781 = vld [vmem:[%s3771 + $0x48] sm:$0xff]
    %v3782 = vld [vmem:[%s3771 + $0x50] sm:$0xff]
    %v3783 = vld [vmem:[%s3771 + $0x58] sm:$0xff]
    %v3784 = vld [vmem:[%s3771 + $0x60] sm:$0xff]
    %v3785 = vld [vmem:[%s3771 + $0x68] sm:$0xff]
    %v3786 = vld [vmem:[%s3771 + $0x70] sm:$0xff]
    %v3787 = vld [vmem:[%s3771 + $0x78] sm:$0xff]
    %v3788 = vld [vmem:[%s3771 + $0x80] sm:$0xff]
    %v3789 = vld [vmem:[%s3771 + $0x88] sm:$0xff]
    %v3790 = vld [vmem:[%s3771 + $0x90] sm:$0xff]
    %v3791 = vld [vmem:[%s3771 + $0x98] sm:$0xff]
    %v3792 = vld [vmem:[%s3771 + $0xa0] sm:$0xff]
    %v3793 = vld [vmem:[%s3771 + $0xa8] sm:$0xff]
    %v3794 = vld [vmem:[%s3771 + $0xb0] sm:$0xff]
    %v3795 = vld [vmem:[%s3771 + $0xb8] sm:$0xff]
    %v3796 = vld [vmem:[%s3771 + $0xc0] sm:$0xff]
    %v3797 = vld [vmem:[%s3771 + $0xc8] sm:$0xff]
    %v3798 = vld [vmem:[%s3771 + $0xd0] sm:$0xff]
    %v3799 = vld [vmem:[%s3771 + $0xd8] sm:$0xff]
    %v3800 = vld [vmem:[%s3771 + $0xe0] sm:$0xff]
    %v3801 = vld [vmem:[%s3771 + $0xe8] sm:$0xff]
    %v3802 = vld [vmem:[%s3771 + $0xf0] sm:$0xff]
    %v3803 = vld [vmem:[%s3771 + $0xf8] sm:$0xff]
    %s3804 = scalar_lea.vmem %s3, 7
    %v3805 = vld [vmem:[%s3804] ss:$8 sm:$0x3]
    %v3807 = vlaneseq
    %v3808 = vshrl.u32 %v3807, 7
    %v3809 = vsub.s32 0, %v3808
    %v3810 = vrot.slane %v3805, %v3809
    %v3811 = vlaneseq
    %v3812 = vshrl.u32 %v3811, 7
    %v3813 = vsub.s32 1, %v3812
    %v3814 = vrot.slane %v3805, %v3813
    %v3849 = vunpack.c.l.b16 %v3772
    %v3850 = vunpack.c.h.b16 %v3772
    %v3851 = vunpack.c.l.b16 %v3773
    %v3852 = vunpack.c.h.b16 %v3773
    %v3853 = vunpack.c.l.b16 %v3774
    %v3854 = vunpack.c.h.b16 %v3774
    %v3855 = vunpack.c.l.b16 %v3775
    %v3856 = vunpack.c.h.b16 %v3775
    %v3857 = vunpack.c.l.b16 %v3776
    %v3858 = vunpack.c.h.b16 %v3776
    %v3859 = vunpack.c.l.b16 %v3777
    %v3860 = vunpack.c.h.b16 %v3777
    %v3861 = vunpack.c.l.b16 %v3778
    %v3862 = vunpack.c.h.b16 %v3778
    %v3863 = vunpack.c.l.b16 %v3779
    %v3864 = vunpack.c.h.b16 %v3779
    %v3865 = vunpack.c.l.b16 %v3780
    %v3866 = vunpack.c.h.b16 %v3780
    %v3867 = vunpack.c.l.b16 %v3781
    %v3868 = vunpack.c.h.b16 %v3781
    %v3869 = vunpack.c.l.b16 %v3782
    %v3870 = vunpack.c.h.b16 %v3782
    %v3871 = vunpack.c.l.b16 %v3783
    %v3872 = vunpack.c.h.b16 %v3783
    %v3873 = vunpack.c.l.b16 %v3784
    %v3874 = vunpack.c.h.b16 %v3784
    %v3875 = vunpack.c.l.b16 %v3785
    %v3876 = vunpack.c.h.b16 %v3785
    %v3877 = vunpack.c.l.b16 %v3786
    %v3878 = vunpack.c.h.b16 %v3786
    %v3879 = vunpack.c.l.b16 %v3787
    %v3880 = vunpack.c.h.b16 %v3787
    %v3881 = vunpack.c.l.b16 %v3788
    %v3882 = vunpack.c.h.b16 %v3788
    %v3883 = vunpack.c.l.b16 %v3789
    %v3884 = vunpack.c.h.b16 %v3789
    %v3885 = vunpack.c.l.b16 %v3790
    %v3886 = vunpack.c.h.b16 %v3790
    %v3887 = vunpack.c.l.b16 %v3791
    %v3888 = vunpack.c.h.b16 %v3791
    %v3889 = vunpack.c.l.b16 %v3792
    %v3890 = vunpack.c.h.b16 %v3792
    %v3891 = vunpack.c.l.b16 %v3793
    %v3892 = vunpack.c.h.b16 %v3793
    %v3893 = vunpack.c.l.b16 %v3794
    %v3894 = vunpack.c.h.b16 %v3794
    %v3895 = vunpack.c.l.b16 %v3795
    %v3896 = vunpack.c.h.b16 %v3795
    %v3897 = vunpack.c.l.b16 %v3796
    %v3898 = vunpack.c.h.b16 %v3796
    %v3899 = vunpack.c.l.b16 %v3797
    %v3900 = vunpack.c.h.b16 %v3797
    %v3901 = vunpack.c.l.b16 %v3798
    %v3902 = vunpack.c.h.b16 %v3798
    %v3903 = vunpack.c.l.b16 %v3799
    %v3904 = vunpack.c.h.b16 %v3799
    %v3905 = vunpack.c.l.b16 %v3800
    %v3906 = vunpack.c.h.b16 %v3800
    %v3907 = vunpack.c.l.b16 %v3801
    %v3908 = vunpack.c.h.b16 %v3801
    %v3909 = vunpack.c.l.b16 %v3802
    %v3910 = vunpack.c.h.b16 %v3802
    %v3911 = vunpack.c.l.b16 %v3803
    %v3912 = vunpack.c.h.b16 %v3803
    %v3913 = vpack.c.b16 %v3851, %v3849
    %v3914 = vpack.c.b16 %v3852, %v3850
    %v3915 = vpack.c.b16 %v3855, %v3853
    %v3916 = vpack.c.b16 %v3856, %v3854
    %v3917 = vpack.c.b16 %v3859, %v3857
    %v3918 = vpack.c.b16 %v3860, %v3858
    %v3919 = vpack.c.b16 %v3863, %v3861
    %v3920 = vpack.c.b16 %v3864, %v3862
    %v3921 = vpack.c.b16 %v3867, %v3865
    %v3922 = vpack.c.b16 %v3868, %v3866
    %v3923 = vpack.c.b16 %v3871, %v3869
    %v3924 = vpack.c.b16 %v3872, %v3870
    %v3925 = vpack.c.b16 %v3875, %v3873
    %v3926 = vpack.c.b16 %v3876, %v3874
    %v3927 = vpack.c.b16 %v3879, %v3877
    %v3928 = vpack.c.b16 %v3880, %v3878
    %v3929 = vpack.c.b16 %v3883, %v3881
    %v3930 = vpack.c.b16 %v3884, %v3882
    %v3931 = vpack.c.b16 %v3887, %v3885
    %v3932 = vpack.c.b16 %v3888, %v3886
    %v3933 = vpack.c.b16 %v3891, %v3889
    %v3934 = vpack.c.b16 %v3892, %v3890
    %v3935 = vpack.c.b16 %v3895, %v3893
    %v3936 = vpack.c.b16 %v3896, %v3894
    %v3937 = vpack.c.b16 %v3899, %v3897
    %v3938 = vpack.c.b16 %v3900, %v3898
    %v3939 = vpack.c.b16 %v3903, %v3901
    %v3940 = vpack.c.b16 %v3904, %v3902
    %v3941 = vpack.c.b16 %v3907, %v3905
    %v3942 = vpack.c.b16 %v3908, %v3906
    %v3943 = vpack.c.b16 %v3911, %v3909
    %v3944 = vpack.c.b16 %v3912, %v3910
    %3977 = vmatprep.subr.bf16.mxu0 %v3914
    %3978 = vmatpush1.bf16.msra.mxu0 %v3913
    %3979 = vmatprep.subr.bf16.mxu0 %v3916
    %3980 = vmatpush1.bf16.msra.mxu0 %v3915
    %3981 = vmatprep.subr.bf16.mxu0 %v3918
    %3982 = vmatpush1.bf16.msra.mxu0 %v3917
    %3983 = vmatprep.subr.bf16.mxu0 %v3920
    %3984 = vmatpush1.bf16.msra.mxu0 %v3919
    %3985 = vmatprep.subr.bf16.mxu0 %v3922
    %3986 = vmatpush1.bf16.msra.mxu0 %v3921
    %3987 = vmatprep.subr.bf16.mxu0 %v3924
    %3988 = vmatpush1.bf16.msra.mxu0 %v3923
    %3989 = vmatprep.subr.bf16.mxu0 %v3926
    %3990 = vmatpush1.bf16.msra.mxu0 %v3925
    %3991 = vmatprep.subr.bf16.mxu0 %v3928
    %3992 = vmatpush1.bf16.msra.mxu0 %v3927
    %3993 = vmatprep.subr.bf16.mxu0 %v3930
    %3994 = vmatpush1.bf16.msra.mxu0 %v3929
    %3995 = vmatprep.subr.bf16.mxu0 %v3932
    %3996 = vmatpush1.bf16.msra.mxu0 %v3931
    %3997 = vmatprep.subr.bf16.mxu0 %v3934
    %3998 = vmatpush1.bf16.msra.mxu0 %v3933
    %3999 = vmatprep.subr.bf16.mxu0 %v3936
    %4000 = vmatpush1.bf16.msra.mxu0 %v3935
    %4001 = vmatprep.subr.bf16.mxu0 %v3938
    %4002 = vmatpush1.bf16.msra.mxu0 %v3937
    %4003 = vmatprep.subr.bf16.mxu0 %v3940
    %4004 = vmatpush1.bf16.msra.mxu0 %v3939
    %4005 = vmatprep.subr.bf16.mxu0 %v3942
    %4006 = vmatpush1.bf16.msra.mxu0 %v3941
    %4007 = vmatprep.subr.bf16.mxu0 %v3944
    %4008 = vmatpush1.bf16.msra.mxu0 %v3943
    %4009 = vmatprep.mubr.bf16.mxu0 %v3740
    %4010 = vmatmul.mubr.bf16.gmra.mrb[0].mxu0 %v3739
    %v4011 = vpop.f32.mrb[0].mxu0
    %v4012 = vadd.f32 %v3810, %v4011
    %v4013 = vpop.f32.mrb[0].mxu0
    %v4014 = vadd.f32 %v3814, %v4013
    %v4015 = vpop.f32.mrb[0].mxu0
    %v4016 = vadd.f32 %v3810, %v4015
    %v4017 = vpop.f32.mrb[0].mxu0
    %v4018 = vadd.f32 %v3814, %v4017
    %4019 = vmatprep.mubr.bf16.mxu0 %v3742
    %4020 = vmatmul.mubr.bf16.gmra.mrb[0].mxu0 %v3741
    %v4021 = vpop.f32.mrb[0].mxu0
    %v4022 = vadd.f32 %v3810, %v4021
    %v4023 = vpop.f32.mrb[0].mxu0
    %v4024 = vadd.f32 %v3814, %v4023
    %v4025 = vpop.f32.mrb[0].mxu0
    %v4026 = vadd.f32 %v3810, %v4025
    %v4027 = vpop.f32.mrb[0].mxu0
    %v4028 = vadd.f32 %v3814, %v4027
    %4029 = vmatprep.mubr.bf16.mxu0 %v3744
    %4030 = vmatmul.mubr.bf16.gmra.mrb[0].mxu0 %v3743
    %v4031 = vpop.f32.mrb[0].mxu0
    %v4032 = vadd.f32 %v3810, %v4031
    %v4033 = vpop.f32.mrb[0].mxu0
    %v4034 = vadd.f32 %v3814, %v4033
    %v4035 = vpop.f32.mrb[0].mxu0
    %v4036 = vadd.f32 %v3810, %v4035
    %v4037 = vpop.f32.mrb[0].mxu0
    %v4038 = vadd.f32 %v3814, %v4037
    %4039 = vmatprep.mubr.bf16.mxu0 %v3746
    %4040 = vmatmul.mubr.bf16.gmra.mrb[0].mxu0 %v3745
    %v4041 = vpop.f32.mrb[0].mxu0
    %v4042 = vadd.f32 %v3810, %v4041
    %v4043 = vpop.f32.mrb[0].mxu0
    %v4044 = vadd.f32 %v3814, %v4043
    %v4045 = vpop.f32.mrb[0].mxu0
    %v4046 = vadd.f32 %v3810, %v4045
    %v4047 = vpop.f32.mrb[0].mxu0
    %v4048 = vadd.f32 %v3814, %v4047
    %4049 = vmatprep.mubr.bf16.mxu0 %v3748
    %4050 = vmatmul.mubr.bf16.gmra.mrb[0].mxu0 %v3747
    %v4051 = vpop.f32.mrb[0].mxu0
    %v4052 = vadd.f32 %v3810, %v4051
    %v4053 = vpop.f32.mrb[0].mxu0
    %v4054 = vadd.f32 %v3814, %v4053
    %v4055 = vpop.f32.mrb[0].mxu0
    %v4056 = vadd.f32 %v3810, %v4055
    %v4057 = vpop.f32.mrb[0].mxu0
    %v4058 = vadd.f32 %v3814, %v4057
    %4059 = vmatprep.mubr.bf16.mxu0 %v3750
    %4060 = vmatmul.mubr.bf16.gmra.mrb[0].mxu0 %v3749
    %v4061 = vpop.f32.mrb[0].mxu0
    %v4062 = vadd.f32 %v3810, %v4061
    %v4063 = vpop.f32.mrb[0].mxu0
    %v4064 = vadd.f32 %v3814, %v4063
    %v4065 = vpop.f32.mrb[0].mxu0
    %v4066 = vadd.f32 %v3810, %v4065
    %v4067 = vpop.f32.mrb[0].mxu0
    %v4068 = vadd.f32 %v3814, %v4067
    %4069 = vmatprep.mubr.bf16.mxu0 %v3752
    %4070 = vmatmul.mubr.bf16.gmra.mrb[0].mxu0 %v3751
    %v4071 = vpop.f32.mrb[0].mxu0
    %v4072 = vadd.f32 %v3810, %v4071
    %v4073 = vpop.f32.mrb[0].mxu0
    %v4074 = vadd.f32 %v3814, %v4073
    %v4075 = vpop.f32.mrb[0].mxu0
    %v4076 = vadd.f32 %v3810, %v4075
    %v4077 = vpop.f32.mrb[0].mxu0
    %v4078 = vadd.f32 %v3814, %v4077
    %4079 = vmatprep.mubr.bf16.mxu0 %v3754
    %4080 = vmatmul.mubr.bf16.gmra.mrb[0].mxu0 %v3753
    %v4081 = vpop.f32.mrb[0].mxu0
    %v4082 = vadd.f32 %v3810, %v4081
    %v4083 = vpop.f32.mrb[0].mxu0
    %v4084 = vadd.f32 %v3814, %v4083
    %v4085 = vpop.f32.mrb[0].mxu0
    %v4086 = vadd.f32 %v3810, %v4085
    %v4087 = vpop.f32.mrb[0].mxu0
    %v4088 = vadd.f32 %v3814, %v4087
    %4089 = vmatprep.mubr.bf16.mxu0 %v3756
    %4090 = vmatmul.mubr.bf16.gmra.mrb[0].mxu0 %v3755
    %v4091 = vpop.f32.mrb[0].mxu0
    %v4092 = vadd.f32 %v3810, %v4091
    %v4093 = vpop.f32.mrb[0].mxu0
    %v4094 = vadd.f32 %v3814, %v4093
    %v4095 = vpop.f32.mrb[0].mxu0
    %v4096 = vadd.f32 %v3810, %v4095
    %v4097 = vpop.f32.mrb[0].mxu0
    %v4098 = vadd.f32 %v3814, %v4097
    %4099 = vmatprep.mubr.bf16.mxu0 %v3758
    %4100 = vmatmul.mubr.bf16.gmra.mrb[0].mxu0 %v3757
    %v4101 = vpop.f32.mrb[0].mxu0
    %v4102 = vadd.f32 %v3810, %v4101
    %v4103 = vpop.f32.mrb[0].mxu0
    %v4104 = vadd.f32 %v3814, %v4103
    %v4105 = vpop.f32.mrb[0].mxu0
    %v4106 = vadd.f32 %v3810, %v4105
    %v4107 = vpop.f32.mrb[0].mxu0
    %v4108 = vadd.f32 %v3814, %v4107
    %4109 = vmatprep.mubr.bf16.mxu0 %v3760
    %4110 = vmatmul.mubr.bf16.gmra.mrb[0].mxu0 %v3759
    %v4111 = vpop.f32.mrb[0].mxu0
    %v4112 = vadd.f32 %v3810, %v4111
    %v4113 = vpop.f32.mrb[0].mxu0
    %v4114 = vadd.f32 %v3814, %v4113
    %v4115 = vpop.f32.mrb[0].mxu0
    %v4116 = vadd.f32 %v3810, %v4115
    %v4117 = vpop.f32.mrb[0].mxu0
    %v4118 = vadd.f32 %v3814, %v4117
    %4119 = vmatprep.mubr.bf16.mxu0 %v3762
    %4120 = vmatmul.mubr.bf16.gmra.mrb[0].mxu0 %v3761
    %v4121 = vpop.f32.mrb[0].mxu0
    %v4122 = vadd.f32 %v3810, %v4121
    %v4123 = vpop.f32.mrb[0].mxu0
    %v4124 = vadd.f32 %v3814, %v4123
    %v4125 = vpop.f32.mrb[0].mxu0
    %v4126 = vadd.f32 %v3810, %v4125
    %v4127 = vpop.f32.mrb[0].mxu0
    %v4128 = vadd.f32 %v3814, %v4127
    %4129 = vmatprep.mubr.bf16.mxu0 %v3764
    %4130 = vmatmul.mubr.bf16.gmra.mrb[0].mxu0 %v3763
    %v4131 = vpop.f32.mrb[0].mxu0
    %v4132 = vadd.f32 %v3810, %v4131
    %v4133 = vpop.f32.mrb[0].mxu0
    %v4134 = vadd.f32 %v3814, %v4133
    %v4135 = vpop.f32.mrb[0].mxu0
    %v4136 = vadd.f32 %v3810, %v4135
    %v4137 = vpop.f32.mrb[0].mxu0
    %v4138 = vadd.f32 %v3814, %v4137
    %4139 = vmatprep.mubr.bf16.mxu0 %v3766
    %4140 = vmatmul.mubr.bf16.gmra.mrb[0].mxu0 %v3765
    %v4141 = vpop.f32.mrb[0].mxu0
    %v4142 = vadd.f32 %v3810, %v4141
    %v4143 = vpop.f32.mrb[0].mxu0
    %v4144 = vadd.f32 %v3814, %v4143
    %v4145 = vpop.f32.mrb[0].mxu0
    %v4146 = vadd.f32 %v3810, %v4145
    %v4147 = vpop.f32.mrb[0].mxu0
    %v4148 = vadd.f32 %v3814, %v4147
    %4149 = vmatprep.mubr.bf16.mxu0 %v3768
    %4150 = vmatmul.mubr.bf16.gmra.mrb[0].mxu0 %v3767
    %v4151 = vpop.f32.mrb[0].mxu0
    %v4152 = vadd.f32 %v3810, %v4151
    %v4153 = vpop.f32.mrb[0].mxu0
    %v4154 = vadd.f32 %v3814, %v4153
    %v4155 = vpop.f32.mrb[0].mxu0
    %v4156 = vadd.f32 %v3810, %v4155
    %v4157 = vpop.f32.mrb[0].mxu0
    %v4158 = vadd.f32 %v3814, %v4157
    %4159 = vmatprep.mubr.bf16.mxu0 %v3770
    %4160 = vmatmul.mubr.bf16.gmra.mrb[0].mxu0 %v3769
    %v4161 = vpop.f32.mrb[0].mxu0
    %v4162 = vadd.f32 %v3810, %v4161
    %v4163 = vpop.f32.mrb[0].mxu0
    %v4164 = vadd.f32 %v3814, %v4163
    %v4165 = vpop.f32.mrb[0].mxu0
    %v4166 = vadd.f32 %v3810, %v4165
    %v4167 = vpop.f32.mrb[0].mxu0
    %v4168 = vadd.f32 %v3814, %v4167
    %4169 = vdwg.mxu0
    %v4170 = vmax.f32 %v4012, 0.0
    %v4171 = vmax.f32 %v4014, 0.0
    %v4172 = vmax.f32 %v4016, 0.0
    %v4173 = vmax.f32 %v4018, 0.0
    %v4174 = vmax.f32 %v4022, 0.0
    %v4175 = vmax.f32 %v4024, 0.0
    %v4176 = vmax.f32 %v4026, 0.0
    %v4177 = vmax.f32 %v4028, 0.0
    %v4178 = vmax.f32 %v4032, 0.0
    %v4179 = vmax.f32 %v4034, 0.0
    %v4180 = vmax.f32 %v4036, 0.0
    %v4181 = vmax.f32 %v4038, 0.0
    %v4182 = vmax.f32 %v4042, 0.0
    %v4183 = vmax.f32 %v4044, 0.0
    %v4184 = vmax.f32 %v4046, 0.0
    %v4185 = vmax.f32 %v4048, 0.0
    %v4186 = vmax.f32 %v4052, 0.0
    %v4187 = vmax.f32 %v4054, 0.0
    %v4188 = vmax.f32 %v4056, 0.0
    %v4189 = vmax.f32 %v4058, 0.0
    %v4190 = vmax.f32 %v4062, 0.0
    %v4191 = vmax.f32 %v4064, 0.0
    %v4192 = vmax.f32 %v4066, 0.0
    %v4193 = vmax.f32 %v4068, 0.0
    %v4194 = vmax.f32 %v4072, 0.0
    %v4195 = vmax.f32 %v4074, 0.0
    %v4196 = vmax.f32 %v4076, 0.0
    %v4197 = vmax.f32 %v4078, 0.0
    %v4198 = vmax.f32 %v4082, 0.0
    %v4199 = vmax.f32 %v4084, 0.0
    %v4200 = vmax.f32 %v4086, 0.0
    %v4201 = vmax.f32 %v4088, 0.0
    %v4202 = vmax.f32 %v4092, 0.0
    %v4203 = vmax.f32 %v4094, 0.0
    %v4204 = vmax.f32 %v4096, 0.0
    %v4205 = vmax.f32 %v4098, 0.0
    %v4206 = vmax.f32 %v4102, 0.0
    %v4207 = vmax.f32 %v4104, 0.0
    %v4208 = vmax.f32 %v4106, 0.0
    %v4209 = vmax.f32 %v4108, 0.0
    %v4210 = vmax.f32 %v4112, 0.0
    %v4211 = vmax.f32 %v4114, 0.0
    %v4212 = vmax.f32 %v4116, 0.0
    %v4213 = vmax.f32 %v4118, 0.0
    %v4214 = vmax.f32 %v4122, 0.0
    %v4215 = vmax.f32 %v4124, 0.0
    %v4216 = vmax.f32 %v4126, 0.0
    %v4217 = vmax.f32 %v4128, 0.0
    %v4218 = vmax.f32 %v4132, 0.0
    %v4219 = vmax.f32 %v4134, 0.0
    %v4220 = vmax.f32 %v4136, 0.0
    %v4221 = vmax.f32 %v4138, 0.0
    %v4222 = vmax.f32 %v4142, 0.0
    %v4223 = vmax.f32 %v4144, 0.0
    %v4224 = vmax.f32 %v4146, 0.0
    %v4225 = vmax.f32 %v4148, 0.0
    %v4226 = vmax.f32 %v4152, 0.0
    %v4227 = vmax.f32 %v4154, 0.0
    %v4228 = vmax.f32 %v4156, 0.0
    %v4229 = vmax.f32 %v4158, 0.0
    %v4230 = vmax.f32 %v4162, 0.0
    %v4231 = vmax.f32 %v4164, 0.0
    %v4232 = vmax.f32 %v4166, 0.0
    %v4233 = vmax.f32 %v4168, 0.0
    %v4234 = vpack.c.bf16 %v4172, %v4170
    %v4235 = vpack.c.bf16 %v4173, %v4171
    %v4236 = vpack.c.bf16 %v4176, %v4174
    %v4237 = vpack.c.bf16 %v4177, %v4175
    %v4238 = vpack.c.bf16 %v4180, %v4178
    %v4239 = vpack.c.bf16 %v4181, %v4179
    %v4240 = vpack.c.bf16 %v4184, %v4182
    %v4241 = vpack.c.bf16 %v4185, %v4183
    %v4242 = vpack.c.bf16 %v4188, %v4186
    %v4243 = vpack.c.bf16 %v4189, %v4187
    %v4244 = vpack.c.bf16 %v4192, %v4190
    %v4245 = vpack.c.bf16 %v4193, %v4191
    %v4246 = vpack.c.bf16 %v4196, %v4194
    %v4247 = vpack.c.bf16 %v4197, %v4195
    %v4248 = vpack.c.bf16 %v4200, %v4198
    %v4249 = vpack.c.bf16 %v4201, %v4199
    %v4250 = vpack.c.bf16 %v4204, %v4202
    %v4251 = vpack.c.bf16 %v4205, %v4203
    %v4252 = vpack.c.bf16 %v4208, %v4206
    %v4253 = vpack.c.bf16 %v4209, %v4207
    %v4254 = vpack.c.bf16 %v4212, %v4210
    %v4255 = vpack.c.bf16 %v4213, %v4211
    %v4256 = vpack.c.bf16 %v4216, %v4214
    %v4257 = vpack.c.bf16 %v4217, %v4215
    %v4258 = vpack.c.bf16 %v4220, %v4218
    %v4259 = vpack.c.bf16 %v4221, %v4219
    %v4260 = vpack.c.bf16 %v4224, %v4222
    %v4261 = vpack.c.bf16 %v4225, %v4223
    %v4262 = vpack.c.bf16 %v4228, %v4226
    %v4263 = vpack.c.bf16 %v4229, %v4227
    %v4264 = vpack.c.bf16 %v4232, %v4230
    %v4265 = vpack.c.bf16 %v4233, %v4231
    %v4266 = vld [vmem:[#allocation2] sm:$0xf]
    %v4267 = vld [vmem:[#allocation2 + $0x4] sm:$0xf]
    %v4268 = vld [vmem:[#allocation2 + $0x8] sm:$0xf]
    %v4269 = vld [vmem:[#allocation2 + $0xc] sm:$0xf]
    %v4270 = vld [vmem:[#allocation2 + $0x10] sm:$0xf]
    %v4271 = vld [vmem:[#allocation2 + $0x14] sm:$0xf]
    %v4272 = vld [vmem:[#allocation2 + $0x18] sm:$0xf]
    %v4273 = vld [vmem:[#allocation2 + $0x1c] sm:$0xf]
    %v4274 = vld [vmem:[#allocation2 + $0x20] sm:$0xf]
    %v4275 = vld [vmem:[#allocation2 + $0x24] sm:$0xf]
    %v4276 = vld [vmem:[#allocation2 + $0x28] sm:$0xf]
    %v4277 = vld [vmem:[#allocation2 + $0x2c] sm:$0xf]
    %v4278 = vld [vmem:[#allocation2 + $0x30] sm:$0xf]
    %v4279 = vld [vmem:[#allocation2 + $0x34] sm:$0xf]
    %v4280 = vld [vmem:[#allocation2 + $0x38] sm:$0xf]
    %v4281 = vld [vmem:[#allocation2 + $0x3c] sm:$0xf]
    %v4282 = vld [vmem:[#allocation2 + $0x40] sm:$0xf]
    %v4283 = vld [vmem:[#allocation2 + $0x44] sm:$0xf]
    %v4284 = vld [vmem:[#allocation2 + $0x48] sm:$0xf]
    %v4285 = vld [vmem:[#allocation2 + $0x4c] sm:$0xf]
    %v4286 = vld [vmem:[#allocation2 + $0x50] sm:$0xf]
    %v4287 = vld [vmem:[#allocation2 + $0x54] sm:$0xf]
    %v4288 = vld [vmem:[#allocation2 + $0x58] sm:$0xf]
    %v4289 = vld [vmem:[#allocation2 + $0x5c] sm:$0xf]
    %v4290 = vld [vmem:[#allocation2 + $0x60] sm:$0xf]
    %v4291 = vld [vmem:[#allocation2 + $0x64] sm:$0xf]
    %v4292 = vld [vmem:[#allocation2 + $0x68] sm:$0xf]
    %v4293 = vld [vmem:[#allocation2 + $0x6c] sm:$0xf]
    %v4294 = vld [vmem:[#allocation2 + $0x70] sm:$0xf]
    %v4295 = vld [vmem:[#allocation2 + $0x74] sm:$0xf]
    %v4296 = vld [vmem:[#allocation2 + $0x78] sm:$0xf]
    %v4297 = vld [vmem:[#allocation2 + $0x7c] sm:$0xf]
    %v4298 = vld [vmem:[%s5] sm:$0x1]
    %v4300 = vlaneseq
    %v4301 = vshrl.u32 %v4300, 7
    %v4302 = vsub.s32 0, %v4301
    %v4303 = vrot.slane %v4298, %v4302
    %v4337 = vunpack.c.l.b16 %v4266
    %v4338 = vunpack.c.l.b16 %v4267
    %v4339 = vunpack.c.l.b16 %v4268
    %v4340 = vunpack.c.l.b16 %v4269
    %v4341 = vunpack.c.l.b16 %v4270
    %v4342 = vunpack.c.l.b16 %v4271
    %v4343 = vunpack.c.l.b16 %v4272
    %v4344 = vunpack.c.l.b16 %v4273
    %v4345 = vunpack.c.l.b16 %v4274
    %v4346 = vunpack.c.l.b16 %v4275
    %v4347 = vunpack.c.l.b16 %v4276
    %v4348 = vunpack.c.l.b16 %v4277
    %v4349 = vunpack.c.l.b16 %v4278
    %v4350 = vunpack.c.l.b16 %v4279
    %v4351 = vunpack.c.l.b16 %v4280
    %v4352 = vunpack.c.l.b16 %v4281
    %v4353 = vunpack.c.l.b16 %v4282
    %v4354 = vunpack.c.l.b16 %v4283
    %v4355 = vunpack.c.l.b16 %v4284
    %v4356 = vunpack.c.l.b16 %v4285
    %v4357 = vunpack.c.l.b16 %v4286
    %v4358 = vunpack.c.l.b16 %v4287
    %v4359 = vunpack.c.l.b16 %v4288
    %v4360 = vunpack.c.l.b16 %v4289
    %v4361 = vunpack.c.l.b16 %v4290
    %v4362 = vunpack.c.l.b16 %v4291
    %v4363 = vunpack.c.l.b16 %v4292
    %v4364 = vunpack.c.l.b16 %v4293
    %v4365 = vunpack.c.l.b16 %v4294
    %v4366 = vunpack.c.l.b16 %v4295
    %v4367 = vunpack.c.l.b16 %v4296
    %v4368 = vunpack.c.l.b16 %v4297
    %v4369 = vpack.c.b16 %v4338, %v4337
    %v4370 = vpack.c.b16 %v4340, %v4339
    %v4371 = vpack.c.b16 %v4342, %v4341
    %v4372 = vpack.c.b16 %v4344, %v4343
    %v4373 = vpack.c.b16 %v4346, %v4345
    %v4374 = vpack.c.b16 %v4348, %v4347
    %v4375 = vpack.c.b16 %v4350, %v4349
    %v4376 = vpack.c.b16 %v4352, %v4351
    %v4377 = vpack.c.b16 %v4354, %v4353
    %v4378 = vpack.c.b16 %v4356, %v4355
    %v4379 = vpack.c.b16 %v4358, %v4357
    %v4380 = vpack.c.b16 %v4360, %v4359
    %v4381 = vpack.c.b16 %v4362, %v4361
    %v4382 = vpack.c.b16 %v4364, %v4363
    %v4383 = vpack.c.b16 %v4366, %v4365
    %v4384 = vpack.c.b16 %v4368, %v4367
    %4401 = vmatprep.subr.bf16.mxu0 0
    %4402 = vmatpush1.bf16.msra.mxu0 %v4369
    %4403 = vmatprep.subr.bf16.mxu0 0
    %4404 = vmatpush1.bf16.msra.mxu0 %v4370
    %4405 = vmatprep.subr.bf16.mxu0 0
    %4406 = vmatpush1.bf16.msra.mxu0 %v4371
    %4407 = vmatprep.subr.bf16.mxu0 0
    %4408 = vmatpush1.bf16.msra.mxu0 %v4372
    %4409 = vmatprep.subr.bf16.mxu0 0
    %4410 = vmatpush1.bf16.msra.mxu0 %v4373
    %4411 = vmatprep.subr.bf16.mxu0 0
    %4412 = vmatpush1.bf16.msra.mxu0 %v4374
    %4413 = vmatprep.subr.bf16.mxu0 0
    %4414 = vmatpush1.bf16.msra.mxu0 %v4375
    %4415 = vmatprep.subr.bf16.mxu0 0
    %4416 = vmatpush1.bf16.msra.mxu0 %v4376
    %4417 = vmatprep.subr.bf16.mxu0 0
    %4418 = vmatpush1.bf16.msra.mxu0 %v4377
    %4419 = vmatprep.subr.bf16.mxu0 0
    %4420 = vmatpush1.bf16.msra.mxu0 %v4378
    %4421 = vmatprep.subr.bf16.mxu0 0
    %4422 = vmatpush1.bf16.msra.mxu0 %v4379
    %4423 = vmatprep.subr.bf16.mxu0 0
    %4424 = vmatpush1.bf16.msra.mxu0 %v4380
    %4425 = vmatprep.subr.bf16.mxu0 0
    %4426 = vmatpush1.bf16.msra.mxu0 %v4381
    %4427 = vmatprep.subr.bf16.mxu0 0
    %4428 = vmatpush1.bf16.msra.mxu0 %v4382
    %4429 = vmatprep.subr.bf16.mxu0 0
    %4430 = vmatpush1.bf16.msra.mxu0 %v4383
    %4431 = vmatprep.subr.bf16.mxu0 0
    %4432 = vmatpush1.bf16.msra.mxu0 %v4384
    %4433 = vmatprep.mubr.bf16.mxu0 %v4235
    %4434 = vmatmul.mubr.bf16.gmra.mrb[0].mxu0 %v4234
    %v4435 = vpop.f32.mrb[0].mxu0
    %v4436 = vadd.f32 %v4303, %v4435
    %v4437 = vpop.f32.mrb[0].mxu0
    %v4438 = vpop.f32.mrb[0].mxu0
    %v4439 = vadd.f32 %v4303, %v4438
    %v4440 = vpop.f32.mrb[0].mxu0
    %4441 = vmatprep.mubr.bf16.mxu0 %v4237
    %4442 = vmatmul.mubr.bf16.gmra.mrb[0].mxu0 %v4236
    %v4443 = vpop.f32.mrb[0].mxu0
    %v4444 = vadd.f32 %v4303, %v4443
    %v4445 = vpop.f32.mrb[0].mxu0
    %v4446 = vpop.f32.mrb[0].mxu0
    %v4447 = vadd.f32 %v4303, %v4446
    %v4448 = vpop.f32.mrb[0].mxu0
    %4449 = vmatprep.mubr.bf16.mxu0 %v4239
    %4450 = vmatmul.mubr.bf16.gmra.mrb[0].mxu0 %v4238
    %v4451 = vpop.f32.mrb[0].mxu0
    %v4452 = vadd.f32 %v4303, %v4451
    %v4453 = vpop.f32.mrb[0].mxu0
    %v4454 = vpop.f32.mrb[0].mxu0
    %v4455 = vadd.f32 %v4303, %v4454
    %v4456 = vpop.f32.mrb[0].mxu0
    %4457 = vmatprep.mubr.bf16.mxu0 %v4241
    %4458 = vmatmul.mubr.bf16.gmra.mrb[0].mxu0 %v4240
    %v4459 = vpop.f32.mrb[0].mxu0
    %v4460 = vadd.f32 %v4303, %v4459
    %v4461 = vpop.f32.mrb[0].mxu0
    %v4462 = vpop.f32.mrb[0].mxu0
    %v4463 = vadd.f32 %v4303, %v4462
    %v4464 = vpop.f32.mrb[0].mxu0
    %4465 = vmatprep.mubr.bf16.mxu0 %v4243
    %4466 = vmatmul.mubr.bf16.gmra.mrb[0].mxu0 %v4242
    %v4467 = vpop.f32.mrb[0].mxu0
    %v4468 = vadd.f32 %v4303, %v4467
    %v4469 = vpop.f32.mrb[0].mxu0
    %v4470 = vpop.f32.mrb[0].mxu0
    %v4471 = vadd.f32 %v4303, %v4470
    %v4472 = vpop.f32.mrb[0].mxu0
    %4473 = vmatprep.mubr.bf16.mxu0 %v4245
    %4474 = vmatmul.mubr.bf16.gmra.mrb[0].mxu0 %v4244
    %v4475 = vpop.f32.mrb[0].mxu0
    %v4476 = vadd.f32 %v4303, %v4475
    %v4477 = vpop.f32.mrb[0].mxu0
    %v4478 = vpop.f32.mrb[0].mxu0
    %v4479 = vadd.f32 %v4303, %v4478
    %v4480 = vpop.f32.mrb[0].mxu0
    %4481 = vmatprep.mubr.bf16.mxu0 %v4247
    %4482 = vmatmul.mubr.bf16.gmra.mrb[0].mxu0 %v4246
    %v4483 = vpop.f32.mrb[0].mxu0
    %v4484 = vadd.f32 %v4303, %v4483
    %v4485 = vpop.f32.mrb[0].mxu0
    %v4486 = vpop.f32.mrb[0].mxu0
    %v4487 = vadd.f32 %v4303, %v4486
    %v4488 = vpop.f32.mrb[0].mxu0
    %4489 = vmatprep.mubr.bf16.mxu0 %v4249
    %4490 = vmatmul.mubr.bf16.gmra.mrb[0].mxu0 %v4248
    %v4491 = vpop.f32.mrb[0].mxu0
    %v4492 = vadd.f32 %v4303, %v4491
    %v4493 = vpop.f32.mrb[0].mxu0
    %v4494 = vpop.f32.mrb[0].mxu0
    %v4495 = vadd.f32 %v4303, %v4494
    %v4496 = vpop.f32.mrb[0].mxu0
    %4497 = vmatprep.mubr.bf16.mxu0 %v4251
    %4498 = vmatmul.mubr.bf16.gmra.mrb[0].mxu0 %v4250
    %v4499 = vpop.f32.mrb[0].mxu0
    %v4500 = vadd.f32 %v4303, %v4499
    %v4501 = vpop.f32.mrb[0].mxu0
    %v4502 = vpop.f32.mrb[0].mxu0
    %v4503 = vadd.f32 %v4303, %v4502
    %v4504 = vpop.f32.mrb[0].mxu0
    %4505 = vmatprep.mubr.bf16.mxu0 %v4253
    %4506 = vmatmul.mubr.bf16.gmra.mrb[0].mxu0 %v4252
    %v4507 = vpop.f32.mrb[0].mxu0
    %v4508 = vadd.f32 %v4303, %v4507
    %v4509 = vpop.f32.mrb[0].mxu0
    %v4510 = vpop.f32.mrb[0].mxu0
    %v4511 = vadd.f32 %v4303, %v4510
    %v4512 = vpop.f32.mrb[0].mxu0
    %4513 = vmatprep.mubr.bf16.mxu0 %v4255
    %4514 = vmatmul.mubr.bf16.gmra.mrb[0].mxu0 %v4254
    %v4515 = vpop.f32.mrb[0].mxu0
    %v4516 = vadd.f32 %v4303, %v4515
    %v4517 = vpop.f32.mrb[0].mxu0
    %v4518 = vpop.f32.mrb[0].mxu0
    %v4519 = vadd.f32 %v4303, %v4518
    %v4520 = vpop.f32.mrb[0].mxu0
    %4521 = vmatprep.mubr.bf16.mxu0 %v4257
    %4522 = vmatmul.mubr.bf16.gmra.mrb[0].mxu0 %v4256
    %v4523 = vpop.f32.mrb[0].mxu0
    %v4524 = vadd.f32 %v4303, %v4523
    %v4525 = vpop.f32.mrb[0].mxu0
    %v4526 = vpop.f32.mrb[0].mxu0
    %v4527 = vadd.f32 %v4303, %v4526
    %v4528 = vpop.f32.mrb[0].mxu0
    %4529 = vmatprep.mubr.bf16.mxu0 %v4259
    %4530 = vmatmul.mubr.bf16.gmra.mrb[0].mxu0 %v4258
    %v4531 = vpop.f32.mrb[0].mxu0
    %v4532 = vadd.f32 %v4303, %v4531
    %v4533 = vpop.f32.mrb[0].mxu0
    %v4534 = vpop.f32.mrb[0].mxu0
    %v4535 = vadd.f32 %v4303, %v4534
    %v4536 = vpop.f32.mrb[0].mxu0
    %4537 = vmatprep.mubr.bf16.mxu0 %v4261
    %4538 = vmatmul.mubr.bf16.gmra.mrb[0].mxu0 %v4260
    %v4539 = vpop.f32.mrb[0].mxu0
    %v4540 = vadd.f32 %v4303, %v4539
    %v4541 = vpop.f32.mrb[0].mxu0
    %v4542 = vpop.f32.mrb[0].mxu0
    %v4543 = vadd.f32 %v4303, %v4542
    %v4544 = vpop.f32.mrb[0].mxu0
    %4545 = vmatprep.mubr.bf16.mxu0 %v4263
    %4546 = vmatmul.mubr.bf16.gmra.mrb[0].mxu0 %v4262
    %v4547 = vpop.f32.mrb[0].mxu0
    %v4548 = vadd.f32 %v4303, %v4547
    %v4549 = vpop.f32.mrb[0].mxu0
    %v4550 = vpop.f32.mrb[0].mxu0
    %v4551 = vadd.f32 %v4303, %v4550
    %v4552 = vpop.f32.mrb[0].mxu0
    %4553 = vmatprep.mubr.bf16.mxu0 %v4265
    %4554 = vmatmul.mubr.bf16.gmra.mrb[0].mxu0 %v4264
    %v4555 = vpop.f32.mrb[0].mxu0
    %v4556 = vadd.f32 %v4303, %v4555
    %v4557 = vpop.f32.mrb[0].mxu0
    %v4558 = vpop.f32.mrb[0].mxu0
    %v4559 = vadd.f32 %v4303, %v4558
    %v4560 = vpop.f32.mrb[0].mxu0
    %4561 = vdwg.mxu0
    %v4562 = vlaneseq
    %v4563 = vand.u32 %v4562, 127
    %vm4564 = vcmp.eq.s32.totalorder %v4563, 0
    %vm4565 = vcmp.eq.s32.totalorder %v4563, 4
    %vm4566 = vmor %vm4564, %vm4565
    %vm4567 = vcmp.eq.s32.totalorder %v4563, 8
    %vm4568 = vmor %vm4566, %vm4567
    %vm4569 = vcmp.ge.s32.totalorder %v4563, 1
    %vm4570 = vcmp.le.s32.totalorder %v4563, 3
    %vm4571 = vmand %vm4569, %vm4570
    %vm4572 = vcmp.ge.s32.totalorder %v4563, 5
    %vm4573 = vcmp.le.s32.totalorder %v4563, 7
    %vm4574 = vmand %vm4572, %vm4573
    %vm4575 = vmor %vm4571, %vm4574
    %v4576 = vand.u32 2147483647, %v4436
    %v4577 = vand.u32 2147483647, %v4439
    %v4578 = vand.u32 2147483647, %v4444
    %v4579 = vand.u32 2147483647, %v4447
    %v4580 = vand.u32 2147483647, %v4452
    %v4581 = vand.u32 2147483647, %v4455
    %v4582 = vand.u32 2147483647, %v4460
    %v4583 = vand.u32 2147483647, %v4463
    %v4584 = vand.u32 2147483647, %v4468
    %v4585 = vand.u32 2147483647, %v4471
    %v4586 = vand.u32 2147483647, %v4476
    %v4587 = vand.u32 2147483647, %v4479
    %v4588 = vand.u32 2147483647, %v4484
    %v4589 = vand.u32 2147483647, %v4487
    %v4590 = vand.u32 2147483647, %v4492
    %v4591 = vand.u32 2147483647, %v4495
    %v4592 = vand.u32 2147483647, %v4500
    %v4593 = vand.u32 2147483647, %v4503
    %v4594 = vand.u32 2147483647, %v4508
    %v4595 = vand.u32 2147483647, %v4511
    %v4596 = vand.u32 2147483647, %v4516
    %v4597 = vand.u32 2147483647, %v4519
    %v4598 = vand.u32 2147483647, %v4524
    %v4599 = vand.u32 2147483647, %v4527
    %v4600 = vand.u32 2147483647, %v4532
    %v4601 = vand.u32 2147483647, %v4535
    %v4602 = vand.u32 2147483647, %v4540
    %v4603 = vand.u32 2147483647, %v4543
    %v4604 = vand.u32 2147483647, %v4548
    %v4605 = vand.u32 2147483647, %v4551
    %v4606 = vand.u32 2147483647, %v4556
    %v4607 = vand.u32 2147483647, %v4559
    %v4608 = vsub.f32 0.0, %v4576
    %v4609 = vsub.f32 0.0, %v4577
    %v4610 = vsub.f32 0.0, %v4578
    %v4611 = vsub.f32 0.0, %v4579
    %v4612 = vsub.f32 0.0, %v4580
    %v4613 = vsub.f32 0.0, %v4581
    %v4614 = vsub.f32 0.0, %v4582
    %v4615 = vsub.f32 0.0, %v4583
    %v4616 = vsub.f32 0.0, %v4584
    %v4617 = vsub.f32 0.0, %v4585
    %v4618 = vsub.f32 0.0, %v4586
    %v4619 = vsub.f32 0.0, %v4587
    %v4620 = vsub.f32 0.0, %v4588
    %v4621 = vsub.f32 0.0, %v4589
    %v4622 = vsub.f32 0.0, %v4590
    %v4623 = vsub.f32 0.0, %v4591
    %v4624 = vsub.f32 0.0, %v4592
    %v4625 = vsub.f32 0.0, %v4593
    %v4626 = vsub.f32 0.0, %v4594
    %v4627 = vsub.f32 0.0, %v4595
    %v4628 = vsub.f32 0.0, %v4596
    %v4629 = vsub.f32 0.0, %v4597
    %v4630 = vsub.f32 0.0, %v4598
    %v4631 = vsub.f32 0.0, %v4599
    %v4632 = vsub.f32 0.0, %v4600
    %v4633 = vsub.f32 0.0, %v4601
    %v4634 = vsub.f32 0.0, %v4602
    %v4635 = vsub.f32 0.0, %v4603
    %v4636 = vsub.f32 0.0, %v4604
    %v4637 = vsub.f32 0.0, %v4605
    %v4638 = vsub.f32 0.0, %v4606
    %v4639 = vsub.f32 0.0, %v4607
    %v4640 = vmul.f32 %v4608, 1.442695
    %v4641 = vpow.pop %v4640
    %v4642 = vmul.f32 %v4609, 1.442695
    %v4643 = vpow.pop %v4642
    %v4644 = vmul.f32 %v4610, 1.442695
    %v4645 = vpow.pop %v4644
    %v4646 = vmul.f32 %v4611, 1.442695
    %v4647 = vpow.pop %v4646
    %v4648 = vmul.f32 %v4612, 1.442695
    %v4649 = vpow.pop %v4648
    %v4650 = vmul.f32 %v4613, 1.442695
    %v4651 = vpow.pop %v4650
    %v4652 = vmul.f32 %v4614, 1.442695
    %v4653 = vpow.pop %v4652
    %v4654 = vmul.f32 %v4615, 1.442695
    %v4655 = vpow.pop %v4654
    %v4656 = vmul.f32 %v4616, 1.442695
    %v4657 = vpow.pop %v4656
    %v4658 = vmul.f32 %v4617, 1.442695
    %v4659 = vpow.pop %v4658
    %v4660 = vmul.f32 %v4618, 1.442695
    %v4661 = vpow.pop %v4660
    %v4662 = vmul.f32 %v4619, 1.442695
    %v4663 = vpow.pop %v4662
    %v4664 = vmul.f32 %v4620, 1.442695
    %v4665 = vpow.pop %v4664
    %v4666 = vmul.f32 %v4621, 1.442695
    %v4667 = vpow.pop %v4666
    %v4668 = vmul.f32 %v4622, 1.442695
    %v4669 = vpow.pop %v4668
    %v4670 = vmul.f32 %v4623, 1.442695
    %v4671 = vpow.pop %v4670
    %v4672 = vmul.f32 %v4624, 1.442695
    %v4673 = vpow.pop %v4672
    %v4674 = vmul.f32 %v4625, 1.442695
    %v4675 = vpow.pop %v4674
    %v4676 = vmul.f32 %v4626, 1.442695
    %v4677 = vpow.pop %v4676
    %v4678 = vmul.f32 %v4627, 1.442695
    %v4679 = vpow.pop %v4678
    %v4680 = vmul.f32 %v4628, 1.442695
    %v4681 = vpow.pop %v4680
    %v4682 = vmul.f32 %v4629, 1.442695
    %v4683 = vpow.pop %v4682
    %v4684 = vmul.f32 %v4630, 1.442695
    %v4685 = vpow.pop %v4684
    %v4686 = vmul.f32 %v4631, 1.442695
    %v4687 = vpow.pop %v4686
    %v4688 = vmul.f32 %v4632, 1.442695
    %v4689 = vpow.pop %v4688
    %v4690 = vmul.f32 %v4633, 1.442695
    %v4691 = vpow.pop %v4690
    %v4692 = vmul.f32 %v4634, 1.442695
    %v4693 = vpow.pop %v4692
    %v4694 = vmul.f32 %v4635, 1.442695
    %v4695 = vpow.pop %v4694
    %v4696 = vmul.f32 %v4636, 1.442695
    %v4697 = vpow.pop %v4696
    %v4698 = vmul.f32 %v4637, 1.442695
    %v4699 = vpow.pop %v4698
    %v4700 = vmul.f32 %v4638, 1.442695
    %v4701 = vpow.pop %v4700
    %v4702 = vmul.f32 %v4639, 1.442695
    %v4703 = vpow.pop %v4702
    %v4704 = vadd.f32 %v4641, 1.0
    %v4705 = vadd.f32 %v4643, 1.0
    %v4706 = vadd.f32 %v4645, 1.0
    %v4707 = vadd.f32 %v4647, 1.0
    %v4708 = vadd.f32 %v4649, 1.0
    %v4709 = vadd.f32 %v4651, 1.0
    %v4710 = vadd.f32 %v4653, 1.0
    %v4711 = vadd.f32 %v4655, 1.0
    %v4712 = vadd.f32 %v4657, 1.0
    %v4713 = vadd.f32 %v4659, 1.0
    %v4714 = vadd.f32 %v4661, 1.0
    %v4715 = vadd.f32 %v4663, 1.0
    %v4716 = vadd.f32 %v4665, 1.0
    %v4717 = vadd.f32 %v4667, 1.0
    %v4718 = vadd.f32 %v4669, 1.0
    %v4719 = vadd.f32 %v4671, 1.0
    %v4720 = vadd.f32 %v4673, 1.0
    %v4721 = vadd.f32 %v4675, 1.0
    %v4722 = vadd.f32 %v4677, 1.0
    %v4723 = vadd.f32 %v4679, 1.0
    %v4724 = vadd.f32 %v4681, 1.0
    %v4725 = vadd.f32 %v4683, 1.0
    %v4726 = vadd.f32 %v4685, 1.0
    %v4727 = vadd.f32 %v4687, 1.0
    %v4728 = vadd.f32 %v4689, 1.0
    %v4729 = vadd.f32 %v4691, 1.0
    %v4730 = vadd.f32 %v4693, 1.0
    %v4731 = vadd.f32 %v4695, 1.0
    %v4732 = vadd.f32 %v4697, 1.0
    %v4733 = vadd.f32 %v4699, 1.0
    %v4734 = vadd.f32 %v4701, 1.0
    %v4735 = vadd.f32 %v4703, 1.0
    %v4736 = vrcp.pop %v4704
    %v4737 = vrcp.pop %v4705
    %v4738 = vrcp.pop %v4706
    %v4739 = vrcp.pop %v4707
    %v4740 = vrcp.pop %v4708
    %v4741 = vrcp.pop %v4709
    %v4742 = vrcp.pop %v4710
    %v4743 = vrcp.pop %v4711
    %v4744 = vrcp.pop %v4712
    %v4745 = vrcp.pop %v4713
    %v4746 = vrcp.pop %v4714
    %v4747 = vrcp.pop %v4715
    %v4748 = vrcp.pop %v4716
    %v4749 = vrcp.pop %v4717
    %v4750 = vrcp.pop %v4718
    %v4751 = vrcp.pop %v4719
    %v4752 = vrcp.pop %v4720
    %v4753 = vrcp.pop %v4721
    %v4754 = vrcp.pop %v4722
    %v4755 = vrcp.pop %v4723
    %v4756 = vrcp.pop %v4724
    %v4757 = vrcp.pop %v4725
    %v4758 = vrcp.pop %v4726
    %v4759 = vrcp.pop %v4727
    %v4760 = vrcp.pop %v4728
    %v4761 = vrcp.pop %v4729
    %v4762 = vrcp.pop %v4730
    %v4763 = vrcp.pop %v4731
    %v4764 = vrcp.pop %v4732
    %v4765 = vrcp.pop %v4733
    %v4766 = vrcp.pop %v4734
    %v4767 = vrcp.pop %v4735
    %vm4768 = vcmp.ge.f32.partialorder %v4436, 0.0
    %vm4769 = vcmp.ge.f32.partialorder %v4439, 0.0
    %vm4770 = vcmp.ge.f32.partialorder %v4444, 0.0
    %vm4771 = vcmp.ge.f32.partialorder %v4447, 0.0
    %vm4772 = vcmp.ge.f32.partialorder %v4452, 0.0
    %vm4773 = vcmp.ge.f32.partialorder %v4455, 0.0
    %vm4774 = vcmp.ge.f32.partialorder %v4460, 0.0
    %vm4775 = vcmp.ge.f32.partialorder %v4463, 0.0
    %vm4776 = vcmp.ge.f32.partialorder %v4468, 0.0
    %vm4777 = vcmp.ge.f32.partialorder %v4471, 0.0
    %vm4778 = vcmp.ge.f32.partialorder %v4476, 0.0
    %vm4779 = vcmp.ge.f32.partialorder %v4479, 0.0
    %vm4780 = vcmp.ge.f32.partialorder %v4484, 0.0
    %vm4781 = vcmp.ge.f32.partialorder %v4487, 0.0
    %vm4782 = vcmp.ge.f32.partialorder %v4492, 0.0
    %vm4783 = vcmp.ge.f32.partialorder %v4495, 0.0
    %vm4784 = vcmp.ge.f32.partialorder %v4500, 0.0
    %vm4785 = vcmp.ge.f32.partialorder %v4503, 0.0
    %vm4786 = vcmp.ge.f32.partialorder %v4508, 0.0
    %vm4787 = vcmp.ge.f32.partialorder %v4511, 0.0
    %vm4788 = vcmp.ge.f32.partialorder %v4516, 0.0
    %vm4789 = vcmp.ge.f32.partialorder %v4519, 0.0
    %vm4790 = vcmp.ge.f32.partialorder %v4524, 0.0
    %vm4791 = vcmp.ge.f32.partialorder %v4527, 0.0
    %vm4792 = vcmp.ge.f32.partialorder %v4532, 0.0
    %vm4793 = vcmp.ge.f32.partialorder %v4535, 0.0
    %vm4794 = vcmp.ge.f32.partialorder %v4540, 0.0
    %vm4795 = vcmp.ge.f32.partialorder %v4543, 0.0
    %vm4796 = vcmp.ge.f32.partialorder %v4548, 0.0
    %vm4797 = vcmp.ge.f32.partialorder %v4551, 0.0
    %vm4798 = vcmp.ge.f32.partialorder %v4556, 0.0
    %vm4799 = vcmp.ge.f32.partialorder %v4559, 0.0
    %v4800 = vmul.f32 %v4641, %v4736
    %v4801 = vmul.f32 %v4643, %v4737
    %v4802 = vmul.f32 %v4645, %v4738
    %v4803 = vmul.f32 %v4647, %v4739
    %v4804 = vmul.f32 %v4649, %v4740
    %v4805 = vmul.f32 %v4651, %v4741
    %v4806 = vmul.f32 %v4653, %v4742
    %v4807 = vmul.f32 %v4655, %v4743
    %v4808 = vmul.f32 %v4657, %v4744
    %v4809 = vmul.f32 %v4659, %v4745
    %v4810 = vmul.f32 %v4661, %v4746
    %v4811 = vmul.f32 %v4663, %v4747
    %v4812 = vmul.f32 %v4665, %v4748
    %v4813 = vmul.f32 %v4667, %v4749
    %v4814 = vmul.f32 %v4669, %v4750
    %v4815 = vmul.f32 %v4671, %v4751
    %v4816 = vmul.f32 %v4673, %v4752
    %v4817 = vmul.f32 %v4675, %v4753
    %v4818 = vmul.f32 %v4677, %v4754
    %v4819 = vmul.f32 %v4679, %v4755
    %v4820 = vmul.f32 %v4681, %v4756
    %v4821 = vmul.f32 %v4683, %v4757
    %v4822 = vmul.f32 %v4685, %v4758
    %v4823 = vmul.f32 %v4687, %v4759
    %v4824 = vmul.f32 %v4689, %v4760
    %v4825 = vmul.f32 %v4691, %v4761
    %v4826 = vmul.f32 %v4693, %v4762
    %v4827 = vmul.f32 %v4695, %v4763
    %v4828 = vmul.f32 %v4697, %v4764
    %v4829 = vmul.f32 %v4699, %v4765
    %v4830 = vmul.f32 %v4701, %v4766
    %v4831 = vmul.f32 %v4703, %v4767
    %v4832 = vsel %vm4768, %v4736, %v4800
    %v4833 = vsel %vm4769, %v4737, %v4801
    %v4834 = vsel %vm4770, %v4738, %v4802
    %v4835 = vsel %vm4771, %v4739, %v4803
    %v4836 = vsel %vm4772, %v4740, %v4804
    %v4837 = vsel %vm4773, %v4741, %v4805
    %v4838 = vsel %vm4774, %v4742, %v4806
    %v4839 = vsel %vm4775, %v4743, %v4807
    %v4840 = vsel %vm4776, %v4744, %v4808
    %v4841 = vsel %vm4777, %v4745, %v4809
    %v4842 = vsel %vm4778, %v4746, %v4810
    %v4843 = vsel %vm4779, %v4747, %v4811
    %v4844 = vsel %vm4780, %v4748, %v4812
    %v4845 = vsel %vm4781, %v4749, %v4813
    %v4846 = vsel %vm4782, %v4750, %v4814
    %v4847 = vsel %vm4783, %v4751, %v4815
    %v4848 = vsel %vm4784, %v4752, %v4816
    %v4849 = vsel %vm4785, %v4753, %v4817
    %v4850 = vsel %vm4786, %v4754, %v4818
    %v4851 = vsel %vm4787, %v4755, %v4819
    %v4852 = vsel %vm4788, %v4756, %v4820
    %v4853 = vsel %vm4789, %v4757, %v4821
    %v4854 = vsel %vm4790, %v4758, %v4822
    %v4855 = vsel %vm4791, %v4759, %v4823
    %v4856 = vsel %vm4792, %v4760, %v4824
    %v4857 = vsel %vm4793, %v4761, %v4825
    %v4858 = vsel %vm4794, %v4762, %v4826
    %v4859 = vsel %vm4795, %v4763, %v4827
    %v4860 = vsel %vm4796, %v4764, %v4828
    %v4861 = vsel %vm4797, %v4765, %v4829
    %v4862 = vsel %vm4798, %v4766, %v4830
    %v4863 = vsel %vm4799, %v4767, %v4831
    %v4864 = vmax.f32 %v4436, 0.0
    %v4865 = vmax.f32 %v4439, 0.0
    %v4866 = vmax.f32 %v4444, 0.0
    %v4867 = vmax.f32 %v4447, 0.0
    %v4868 = vmax.f32 %v4452, 0.0
    %v4869 = vmax.f32 %v4455, 0.0
    %v4870 = vmax.f32 %v4460, 0.0
    %v4871 = vmax.f32 %v4463, 0.0
    %v4872 = vmax.f32 %v4468, 0.0
    %v4873 = vmax.f32 %v4471, 0.0
    %v4874 = vmax.f32 %v4476, 0.0
    %v4875 = vmax.f32 %v4479, 0.0
    %v4876 = vmax.f32 %v4484, 0.0
    %v4877 = vmax.f32 %v4487, 0.0
    %v4878 = vmax.f32 %v4492, 0.0
    %v4879 = vmax.f32 %v4495, 0.0
    %v4880 = vmax.f32 %v4500, 0.0
    %v4881 = vmax.f32 %v4503, 0.0
    %v4882 = vmax.f32 %v4508, 0.0
    %v4883 = vmax.f32 %v4511, 0.0
    %v4884 = vmax.f32 %v4516, 0.0
    %v4885 = vmax.f32 %v4519, 0.0
    %v4886 = vmax.f32 %v4524, 0.0
    %v4887 = vmax.f32 %v4527, 0.0
    %v4888 = vmax.f32 %v4532, 0.0
    %v4889 = vmax.f32 %v4535, 0.0
    %v4890 = vmax.f32 %v4540, 0.0
    %v4891 = vmax.f32 %v4543, 0.0
    %v4892 = vmax.f32 %v4548, 0.0
    %v4893 = vmax.f32 %v4551, 0.0
    %v4894 = vmax.f32 %v4556, 0.0
    %v4895 = vmax.f32 %v4559, 0.0
    %v4896 = vlog2.pop %v4704
    %v4897 = vmul.f32 %v4896, 0.6931472
    %v4898 = vlog2.pop %v4705
    %v4899 = vmul.f32 %v4898, 0.6931472
    %v4900 = vlog2.pop %v4706
    %v4901 = vmul.f32 %v4900, 0.6931472
    %v4902 = vlog2.pop %v4707
    %v4903 = vmul.f32 %v4902, 0.6931472
    %v4904 = vlog2.pop %v4708
    %v4905 = vmul.f32 %v4904, 0.6931472
    %v4906 = vlog2.pop %v4709
    %v4907 = vmul.f32 %v4906, 0.6931472
    %v4908 = vlog2.pop %v4710
    %v4909 = vmul.f32 %v4908, 0.6931472
    %v4910 = vlog2.pop %v4711
    %v4911 = vmul.f32 %v4910, 0.6931472
    %v4912 = vlog2.pop %v4712
    %v4913 = vmul.f32 %v4912, 0.6931472
    %v4914 = vlog2.pop %v4713
    %v4915 = vmul.f32 %v4914, 0.6931472
    %v4916 = vlog2.pop %v4714
    %v4917 = vmul.f32 %v4916, 0.6931472
    %v4918 = vlog2.pop %v4715
    %v4919 = vmul.f32 %v4918, 0.6931472
    %v4920 = vlog2.pop %v4716
    %v4921 = vmul.f32 %v4920, 0.6931472
    %v4922 = vlog2.pop %v4717
    %v4923 = vmul.f32 %v4922, 0.6931472
    %v4924 = vlog2.pop %v4718
    %v4925 = vmul.f32 %v4924, 0.6931472
    %v4926 = vlog2.pop %v4719
    %v4927 = vmul.f32 %v4926, 0.6931472
    %v4928 = vlog2.pop %v4720
    %v4929 = vmul.f32 %v4928, 0.6931472
    %v4930 = vlog2.pop %v4721
    %v4931 = vmul.f32 %v4930, 0.6931472
    %v4932 = vlog2.pop %v4722
    %v4933 = vmul.f32 %v4932, 0.6931472
    %v4934 = vlog2.pop %v4723
    %v4935 = vmul.f32 %v4934, 0.6931472
    %v4936 = vlog2.pop %v4724
    %v4937 = vmul.f32 %v4936, 0.6931472
    %v4938 = vlog2.pop %v4725
    %v4939 = vmul.f32 %v4938, 0.6931472
    %v4940 = vlog2.pop %v4726
    %v4941 = vmul.f32 %v4940, 0.6931472
    %v4942 = vlog2.pop %v4727
    %v4943 = vmul.f32 %v4942, 0.6931472
    %v4944 = vlog2.pop %v4728
    %v4945 = vmul.f32 %v4944, 0.6931472
    %v4946 = vlog2.pop %v4729
    %v4947 = vmul.f32 %v4946, 0.6931472
    %v4948 = vlog2.pop %v4730
    %v4949 = vmul.f32 %v4948, 0.6931472
    %v4950 = vlog2.pop %v4731
    %v4951 = vmul.f32 %v4950, 0.6931472
    %v4952 = vlog2.pop %v4732
    %v4953 = vmul.f32 %v4952, 0.6931472
    %v4954 = vlog2.pop %v4733
    %v4955 = vmul.f32 %v4954, 0.6931472
    %v4956 = vlog2.pop %v4734
    %v4957 = vmul.f32 %v4956, 0.6931472
    %v4958 = vlog2.pop %v4735
    %v4959 = vmul.f32 %v4958, 0.6931472
    %v4960 = vadd.f32 %v4864, %v4897
    %v4961 = vadd.f32 %v4865, %v4899
    %v4962 = vadd.f32 %v4866, %v4901
    %v4963 = vadd.f32 %v4867, %v4903
    %v4964 = vadd.f32 %v4868, %v4905
    %v4965 = vadd.f32 %v4869, %v4907
    %v4966 = vadd.f32 %v4870, %v4909
    %v4967 = vadd.f32 %v4871, %v4911
    %v4968 = vadd.f32 %v4872, %v4913
    %v4969 = vadd.f32 %v4873, %v4915
    %v4970 = vadd.f32 %v4874, %v4917
    %v4971 = vadd.f32 %v4875, %v4919
    %v4972 = vadd.f32 %v4876, %v4921
    %v4973 = vadd.f32 %v4877, %v4923
    %v4974 = vadd.f32 %v4878, %v4925
    %v4975 = vadd.f32 %v4879, %v4927
    %v4976 = vadd.f32 %v4880, %v4929
    %v4977 = vadd.f32 %v4881, %v4931
    %v4978 = vadd.f32 %v4882, %v4933
    %v4979 = vadd.f32 %v4883, %v4935
    %v4980 = vadd.f32 %v4884, %v4937
    %v4981 = vadd.f32 %v4885, %v4939
    %v4982 = vadd.f32 %v4886, %v4941
    %v4983 = vadd.f32 %v4887, %v4943
    %v4984 = vadd.f32 %v4888, %v4945
    %v4985 = vadd.f32 %v4889, %v4947
    %v4986 = vadd.f32 %v4890, %v4949
    %v4987 = vadd.f32 %v4891, %v4951
    %v4988 = vadd.f32 %v4892, %v4953
    %v4989 = vadd.f32 %v4893, %v4955
    %v4990 = vadd.f32 %v4894, %v4957
    %v4991 = vadd.f32 %v4895, %v4959
    %v4992 = vsel %vm4575, %v4832, 0.0
    %v4993 = vsel %vm4575, %v4833, 0.0
    %v4994 = vsel %vm4575, %v4834, 0.0
    %v4995 = vsel %vm4575, %v4835, 0.0
    %v4996 = vsel %vm4575, %v4836, 0.0
    %v4997 = vsel %vm4575, %v4837, 0.0
    %v4998 = vsel %vm4575, %v4838, 0.0
    %v4999 = vsel %vm4575, %v4839, 0.0
    %v5000 = vsel %vm4575, %v4840, 0.0
    %v5001 = vsel %vm4575, %v4841, 0.0
    %v5002 = vsel %vm4575, %v4842, 0.0
    %v5003 = vsel %vm4575, %v4843, 0.0
    %v5004 = vsel %vm4575, %v4844, 0.0
    %v5005 = vsel %vm4575, %v4845, 0.0
    %v5006 = vsel %vm4575, %v4846, 0.0
    %v5007 = vsel %vm4575, %v4847, 0.0
    %v5008 = vsel %vm4575, %v4848, 0.0
    %v5009 = vsel %vm4575, %v4849, 0.0
    %v5010 = vsel %vm4575, %v4850, 0.0
    %v5011 = vsel %vm4575, %v4851, 0.0
    %v5012 = vsel %vm4575, %v4852, 0.0
    %v5013 = vsel %vm4575, %v4853, 0.0
    %v5014 = vsel %vm4575, %v4854, 0.0
    %v5015 = vsel %vm4575, %v4855, 0.0
    %v5016 = vsel %vm4575, %v4856, 0.0
    %v5017 = vsel %vm4575, %v4857, 0.0
    %v5018 = vsel %vm4575, %v4858, 0.0
    %v5019 = vsel %vm4575, %v4859, 0.0
    %v5020 = vsel %vm4575, %v4860, 0.0
    %v5021 = vsel %vm4575, %v4861, 0.0
    %v5022 = vsel %vm4575, %v4862, 0.0
    %v5023 = vsel %vm4575, %v4863, 0.0
    %v5024 = vsel %vm4568, %v4960, %v4992
    %v5025 = vsel %vm4568, %v4961, %v4993
    %v5026 = vsel %vm4568, %v4962, %v4994
    %v5027 = vsel %vm4568, %v4963, %v4995
    %v5028 = vsel %vm4568, %v4964, %v4996
    %v5029 = vsel %vm4568, %v4965, %v4997
    %v5030 = vsel %vm4568, %v4966, %v4998
    %v5031 = vsel %vm4568, %v4967, %v4999
    %v5032 = vsel %vm4568, %v4968, %v5000
    %v5033 = vsel %vm4568, %v4969, %v5001
    %v5034 = vsel %vm4568, %v4970, %v5002
    %v5035 = vsel %vm4568, %v4971, %v5003
    %v5036 = vsel %vm4568, %v4972, %v5004
    %v5037 = vsel %vm4568, %v4973, %v5005
    %v5038 = vsel %vm4568, %v4974, %v5006
    %v5039 = vsel %vm4568, %v4975, %v5007
    %v5040 = vsel %vm4568, %v4976, %v5008
    %v5041 = vsel %vm4568, %v4977, %v5009
    %v5042 = vsel %vm4568, %v4978, %v5010
    %v5043 = vsel %vm4568, %v4979, %v5011
    %v5044 = vsel %vm4568, %v4980, %v5012
    %v5045 = vsel %vm4568, %v4981, %v5013
    %v5046 = vsel %vm4568, %v4982, %v5014
    %v5047 = vsel %vm4568, %v4983, %v5015
    %v5048 = vsel %vm4568, %v4984, %v5016
    %v5049 = vsel %vm4568, %v4985, %v5017
    %v5050 = vsel %vm4568, %v4986, %v5018
    %v5051 = vsel %vm4568, %v4987, %v5019
    %v5052 = vsel %vm4568, %v4988, %v5020
    %v5053 = vsel %vm4568, %v4989, %v5021
    %v5054 = vsel %vm4568, %v4990, %v5022
    %v5055 = vsel %vm4568, %v4991, %v5023
    %5056 = vst [vmem:[%s6] sm:$0xff] %v5024
    %5057 = vst [vmem:[%s6 + $0x8] sm:$0xff] %v5025
    %5058 = vst [vmem:[%s6 + $0x10] sm:$0xff] %v5026
    %5059 = vst [vmem:[%s6 + $0x18] sm:$0xff] %v5027
    %5060 = vst [vmem:[%s6 + $0x20] sm:$0xff] %v5028
    %5061 = vst [vmem:[%s6 + $0x28] sm:$0xff] %v5029
    %5062 = vst [vmem:[%s6 + $0x30] sm:$0xff] %v5030
    %5063 = vst [vmem:[%s6 + $0x38] sm:$0xff] %v5031
    %5064 = vst [vmem:[%s6 + $0x40] sm:$0xff] %v5032
    %5065 = vst [vmem:[%s6 + $0x48] sm:$0xff] %v5033
    %5066 = vst [vmem:[%s6 + $0x50] sm:$0xff] %v5034
    %5067 = vst [vmem:[%s6 + $0x58] sm:$0xff] %v5035
    %5068 = vst [vmem:[%s6 + $0x60] sm:$0xff] %v5036
    %5069 = vst [vmem:[%s6 + $0x68] sm:$0xff] %v5037
    %5070 = vst [vmem:[%s6 + $0x70] sm:$0xff] %v5038
    %5071 = vst [vmem:[%s6 + $0x78] sm:$0xff] %v5039
    %5072 = vst [vmem:[%s6 + $0x80] sm:$0xff] %v5040
    %5073 = vst [vmem:[%s6 + $0x88] sm:$0xff] %v5041
    %5074 = vst [vmem:[%s6 + $0x90] sm:$0xff] %v5042
    %5075 = vst [vmem:[%s6 + $0x98] sm:$0xff] %v5043
    %5076 = vst [vmem:[%s6 + $0xa0] sm:$0xff] %v5044
    %5077 = vst [vmem:[%s6 + $0xa8] sm:$0xff] %v5045
    %5078 = vst [vmem:[%s6 + $0xb0] sm:$0xff] %v5046
    %5079 = vst [vmem:[%s6 + $0xb8] sm:$0xff] %v5047
    %5080 = vst [vmem:[%s6 + $0xc0] sm:$0xff] %v5048
    %5081 = vst [vmem:[%s6 + $0xc8] sm:$0xff] %v5049
    %5082 = vst [vmem:[%s6 + $0xd0] sm:$0xff] %v5050
    %5083 = vst [vmem:[%s6 + $0xd8] sm:$0xff] %v5051
    %5084 = vst [vmem:[%s6 + $0xe0] sm:$0xff] %v5052
    %5085 = vst [vmem:[%s6 + $0xe8] sm:$0xff] %v5053
    %5086 = vst [vmem:[%s6 + $0xf0] sm:$0xff] %v5054
    %5087 = vst [vmem:[%s6 + $0xf8] sm:$0xff] %v5055
    // Predicated region
    $region30: #{nerfw_forward.1} parent=1 // pred_check
      _
    $region31: #{nerfw_forward.1} parent=1 // pred_check_branch
      %5089 = sbr.rel (0) target = $region33
    $region32: #{nerfw_forward.1} parent=1 // pred_region
      _
    $region33: #{nerfw_forward.1} parent=1 // pred_fallthru
      _
    // Predicated region
    $region34: #{nerfw_forward.1} parent=1 // pred_check
      _
    $region35: #{nerfw_forward.1} parent=1 // pred_check_branch
      %5091 = sbr.rel (0) target = $region37
    $region36: #{nerfw_forward.1} parent=1 // pred_region
      _
    $region37: #{nerfw_forward.1} parent=1 // pred_fallthru
      _
    %5092 = vsyncpa [#allocation3], 1

</llo_original>
